<compile_context>
chip_gen: v7x
topology: tpu7x:2x2x1
jax: 0.10.0
libtpu: 0.0.40
codegen_flags: <defaults>
</compile_context>

<pallas_src>
import functools

import jax
import jax.numpy as jnp
from jax.experimental import pallas as pl
from jax.experimental.pallas import tpu as pltpu

BN_EPS = 1e-5


# -----------------------------------------------------------------------------
# Pallas kernel: fused  (A @ W) + shift  [+ residual]  -> activation
# A, W, residual are bf16; accumulation and epilogue are f32.
# -----------------------------------------------------------------------------
def _fused_kernel(*refs, act, has_residual):
    if has_residual:
        a_ref, w_ref, t_ref, r_ref, o_ref = refs
    else:
        a_ref, w_ref, t_ref, o_ref = refs

    y = jnp.dot(a_ref[...], w_ref[...], preferred_element_type=jnp.float32)
    y = y + t_ref[...]                        # folded conv-bias + BatchNorm shift
    if has_residual:
        y = y + r_ref[...].astype(jnp.float32)    # ResnetBlock skip connection
    if act == "relu":
        y = jnp.maximum(y, 0.0)
    elif act == "tanh":
        y = jnp.tanh(y)                       # EUP slot; effectively free vs MXU
    o_ref[...] = y.astype(o_ref.dtype)


def _round_up(x, m):
    return (x + m - 1) // m * m


def _pick_tm(m):
    # Largest exact-divisor tile (amortizes ~0.35us/step overhead); full-dim
    # fallback is always a legal block shape.
    for tm in (512, 256, 128, 64, 32, 16, 8):
        if m % tm == 0:
            return tm
    return m


def fused_matmul(a, w, shift, act="none", residual=None, out_dtype=jnp.bfloat16):
    """a: (M, K), w: (K, N) (BN scale already folded in), shift: (N,),
    residual: (M, N) or None.  Returns (M, N) in out_dtype."""
    M, K = a.shape
    _, N = w.shape

    # Tiny K pad (multiple of 16) for clean bf16 sublane packing; zero rows in
    # the weight keep the reduction exact.  No M/N padding copies.
    Kp = _round_up(K, 16)
    if Kp != K:
        a = jnp.pad(a, ((0, 0), (0, Kp - K)))
        w = jnp.pad(w, ((0, Kp - K), (0, 0)))
    a = a.astype(jnp.bfloat16)
    w = w.astype(jnp.bfloat16)
    shift2 = shift.reshape(1, N).astype(jnp.float32)

    TM = _pick_tm(M)
    inputs = [a, w, shift2]
    in_specs = [
        pl.BlockSpec((TM, Kp), lambda i: (i, 0)),     # streamed activation rows
        pl.BlockSpec((Kp, N), lambda i: (0, 0)),      # resident weight block
        pl.BlockSpec((1, N), lambda i: (0, 0)),       # per-channel shift
    ]
    has_residual = residual is not None
    if has_residual:
        inputs.append(residual.astype(jnp.bfloat16))
        in_specs.append(pl.BlockSpec((TM, N), lambda i: (i, 0)))

    kernel = functools.partial(_fused_kernel, act=act, has_residual=has_residual)
    out = pl.pallas_call(
        kernel,
        out_shape=jax.ShapeDtypeStruct((M, N), out_dtype),
        grid=(M // TM,),
        in_specs=in_specs,
        out_specs=pl.BlockSpec((TM, N), lambda i: (i, 0)),
        compiler_params=pltpu.CompilerParams(
            dimension_semantics=("parallel",)),
    )(*inputs)
    return out


# -----------------------------------------------------------------------------
# Plain-JAX glue: NHWC padding, im2col, parameter folding, sub-pixel deconv
# -----------------------------------------------------------------------------
def _pad2d_nhwc(x, p, mode):
    if p == 0:
        return x
    widths = ((0, 0), (p, p), (p, p), (0, 0))
    if mode == "reflect":
        return jnp.pad(x, widths, mode="reflect")
    return jnp.pad(x, widths)  # zero padding


def _im2col_nhwc(x, k, stride):
    """x: (N, Hp, Wp, C) already padded -> patches (N*Ho*Wo, k*k*C), n, Ho, Wo.
    Feature ordering along K is (kh, kw, C)."""
    n, hp, wp, c = x.shape
    ho = (hp - k) // stride + 1
    wo = (wp - k) // stride + 1
    cols = []
    for i in range(k):
        for j in range(k):
            cols.append(x[:, i:i + stride * ho:stride, j:j + stride * wo:stride, :])
    patches = jnp.concatenate(cols, axis=-1)             # (n, ho, wo, k*k*c)
    return patches.reshape(n * ho * wo, k * k * c), n, ho, wo


def _fold_affine(conv_bias, bn, cout):
    """Fold eval-mode BatchNorm (+ optional conv bias) into (scale, shift)."""
    if bn is not None:
        s = bn["gamma"] / jnp.sqrt(bn["var"] + BN_EPS)
        t = bn["beta"] - bn["mean"] * s
        if conv_bias is not None:
            t = t + conv_bias * s
    else:
        s = jnp.ones((cout,), jnp.float32)
        t = conv_bias if conv_bias is not None else jnp.zeros((cout,), jnp.float32)
    return s, t


def conv2d_fused(x, w, conv_bias, bn, *, k, stride, pad, pad_mode, act,
                 residual_nhwc=None, out_dtype=jnp.bfloat16):
    """x: (N, H, W, Cin) NHWC; w: (Cout, Cin, kh, kw) (PyTorch layout)."""
    cout = w.shape[0]
    xp = _pad2d_nhwc(x, pad, pad_mode)
    patches, n, ho, wo = _im2col_nhwc(xp, k, stride)
    # Weight -> (kh, kw, Cin, Cout) to match patch K ordering; fold BN scale.
    w_mat = jnp.transpose(w, (2, 3, 1, 0)).reshape(-1, cout)
    scale, shift = _fold_affine(conv_bias, bn, cout)
    w_mat = w_mat * scale[None, :]
    res = None
    if residual_nhwc is not None:
        res = residual_nhwc.reshape(-1, cout)
    out = fused_matmul(patches, w_mat, shift, act=act, residual=res,
                       out_dtype=out_dtype)
    return out.reshape(n, ho, wo, cout)


def conv_transpose2d_fused(x, w_t, conv_bias, bn, *, act,
                           out_dtype=jnp.bfloat16):
    """ConvTranspose2d(k=3, s=2, p=1, output_padding=1) via sub-pixel (4-phase)
    decomposition.  x: (N, H, W, Cin) NHWC; w_t: (Cin, Cout, 3, 3) (PyTorch
    ConvTranspose2d layout).  Output: (N, 2H, 2W, Cout)."""
    n, h, w_, cin = x.shape
    cout = w_t.shape[1]

    # Output pixel (2m+r, 2q+c) = sum_{dr,dc} x[m+dr, q+dc] @ w_t[:,:,r+1-2dr, c+1-2dc]
    # (taps outside [0,3) contribute zero).  Pad bottom/right by 1 so the
    # m+1 / q+1 reads at the boundary pick up zeros.
    xp = jnp.pad(x, ((0, 0), (0, 1), (0, 1), (0, 0)))
    patches, _, _, _ = _im2col_nhwc(xp, 2, 1)             # (N*H*W, 4*Cin), (dr,dc,ci)

    # Phase weight: (dr, dc, ci, r, c, co) -> (4*Cin, 4*Cout)   [trace-time loop]
    wp = jnp.zeros((2, 2, cin, 2, 2, cout), jnp.float32)
    for dr in range(2):
        for dc in range(2):
            for r in range(2):
                for c in range(2):
                    kh = r + 1 - 2 * dr
                    kw = c + 1 - 2 * dc
                    if 0 <= kh < 3 and 0 <= kw < 3:
                        wp = wp.at[dr, dc, :, r, c, :].set(w_t[:, :, kh, kw])
    w_mat = wp.reshape(4 * cin, 4 * cout)

    scale, shift = _fold_affine(conv_bias, bn, cout)
    w_mat = w_mat * jnp.tile(scale, 4)[None, :]           # per (r,c,co) column
    shift4 = jnp.tile(shift, 4)

    out = fused_matmul(patches, w_mat, shift4, act=act, out_dtype=out_dtype)
    # Pixel shuffle: (N*H*W, (r,c,co)) -> (N, 2H, 2W, Cout)
    out = out.reshape(n, h, w_, 2, 2, cout)
    out = out.transpose(0, 1, 3, 2, 4, 5).reshape(n, 2 * h, 2 * w_, cout)
    return out


# -----------------------------------------------------------------------------
# Parameter init (deterministic, synthetic) and full forward
# -----------------------------------------------------------------------------
def init_params(key, input_nc=3, output_nc=3, ngf=8, n_blocks=2):
    keys = iter(jax.random.split(key, 128))

    def conv_w(shape):
        return 0.05 * jax.random.normal(next(keys), shape, jnp.float32)

    def bn_p(c):
        return dict(
            gamma=1.0 + 0.1 * jax.random.normal(next(keys), (c,), jnp.float32),
            beta=0.1 * jax.random.normal(next(keys), (c,), jnp.float32),
            mean=0.1 * jax.random.normal(next(keys), (c,), jnp.float32),
            var=1.0 + 0.1 * jnp.abs(jax.random.normal(next(keys), (c,), jnp.float32)),
        )

    p = {}
    # initial 7x7 conv (reflection pad 3), no bias (BatchNorm)
    p["c1_w"] = conv_w((ngf, input_nc, 7, 7))
    p["bn1"] = bn_p(ngf)
    # 2 downsampling convs
    p["d1_w"] = conv_w((ngf * 2, ngf, 3, 3))
    p["bn_d1"] = bn_p(ngf * 2)
    p["d2_w"] = conv_w((ngf * 4, ngf * 2, 3, 3))
    p["bn_d2"] = bn_p(ngf * 4)
    # resnet blocks at ngf*4
    dim = ngf * 4
    p["blocks"] = []
    for _ in range(n_blocks):
        p["blocks"].append(dict(
            w1=conv_w((dim, dim, 3, 3)), bn1=bn_p(dim),
            w2=conv_w((dim, dim, 3, 3)), bn2=bn_p(dim),
        ))
    # 2 upsampling conv-transposes (PyTorch weight layout (Cin, Cout, k, k))
    p["u1_w"] = conv_w((ngf * 4, ngf * 2, 3, 3))
    p["bn_u1"] = bn_p(ngf * 2)
    p["u2_w"] = conv_w((ngf * 2, ngf, 3, 3))
    p["bn_u2"] = bn_p(ngf)
    # final 7x7 conv (reflection pad 3), bias=True, no norm, Tanh
    p["cf_w"] = conv_w((output_nc, ngf, 7, 7))
    p["cf_b"] = 0.05 * jax.random.normal(next(keys), (output_nc,), jnp.float32)
    return p


def resnet_generator_forward(x_nchw, p):
    # NCHW -> NHWC once; the whole network stays channels-last.
    x = jnp.transpose(x_nchw, (0, 2, 3, 1))
    # ReflectionPad2d(3) + Conv7x7 + BN + ReLU
    y = conv2d_fused(x, p["c1_w"], None, p["bn1"], k=7, stride=1, pad=3,
                     pad_mode="reflect", act="relu")
    # downsampling: Conv3x3 s2 p1 + BN + ReLU  (x2)
    y = conv2d_fused(y, p["d1_w"], None, p["bn_d1"], k=3, stride=2, pad=1,
                     pad_mode="zero", act="relu")
    y = conv2d_fused(y, p["d2_w"], None, p["bn_d2"], k=3, stride=2, pad=1,
                     pad_mode="zero", act="relu")
    # resnet blocks (reflect pad 1 + conv + BN + ReLU, reflect pad 1 + conv + BN, + skip)
    for blk in p["blocks"]:
        h = conv2d_fused(y, blk["w1"], None, blk["bn1"], k=3, stride=1, pad=1,
                         pad_mode="reflect", act="relu")
        y = conv2d_fused(h, blk["w2"], None, blk["bn2"], k=3, stride=1, pad=1,
                         pad_mode="reflect", act="none", residual_nhwc=y)
    # upsampling: ConvTranspose2d(k=3, s=2, p=1, op=1) + BN + ReLU  (x2)
    y = conv_transpose2d_fused(y, p["u1_w"], None, p["bn_u1"], act="relu")
    y = conv_transpose2d_fused(y, p["u2_w"], None, p["bn_u2"], act="relu")
    # ReflectionPad2d(3) + Conv7x7 (bias) + Tanh  -- keep final output in f32
    y = conv2d_fused(y, p["cf_w"], p["cf_b"], None, k=7, stride=1, pad=3,
                     pad_mode="reflect", act="tanh", out_dtype=jnp.float32)
    # NHWC -> NCHW once, to match the PyTorch interface.
    return jnp.transpose(y, (0, 3, 1, 2))


if __name__ == "__main__":
    key = jax.random.PRNGKey(0)
    k_x, k_p = jax.random.split(key)

    batch, input_nc, output_nc, ngf, n_blocks = 2, 3, 3, 8, 2
    H = W = 16
    x = jax.random.normal(k_x, (batch, input_nc, H, W), jnp.float32)

    params = init_params(k_p, input_nc=input_nc, output_nc=output_nc,
                         ngf=ngf, n_blocks=n_blocks)

    fwd = jax.jit(resnet_generator_forward)
    out = fwd(x, params)
    out = jax.block_until_ready(out)

    assert out.shape == (batch, output_nc, H, W), out.shape
    assert bool(jnp.all(jnp.isfinite(out)))
    assert bool(jnp.all(jnp.abs(out) <= 1.0 + 1e-6))  # tanh range
    print("KERNEL_OK")
</pallas_src>

<mosaic_0001>
module attributes {stable_mosaic.version = 11 : i64} {
  func.func @_fused_kernel(%arg0: i32, %arg1: memref<512x160xbf16, #tpu.memory_space<vmem>>, %arg2: memref<160x8xbf16, #tpu.memory_space<vmem>>, %arg3: memref<1x8xf32, #tpu.memory_space<vmem>>, %arg4: memref<512x8xbf16, #tpu.memory_space<vmem>>) attributes {dimension_semantics = [#tpu.dimension_semantics<parallel>], iteration_bounds = array<i64: 1>, scalar_prefetch = 0 : i64, scratch_operands = 0 : i64, tpu.core_type = #tpu.core_type<tc>, window_params = [{transform_indices = @transform_0, window_bounds = array<i64: 512, 160>}, {pipeline_mode = #tpu.pipeline_mode<synchronous>, transform_indices = @transform_1, window_bounds = array<i64: 160, 8>}, {pipeline_mode = #tpu.pipeline_mode<synchronous>, transform_indices = @transform_2, window_bounds = array<i64: 1, 8>}, {transform_indices = @transform_3, window_bounds = array<i64: 512, 8>}]} {
    %c0 = arith.constant 0 : index
    %c0_0 = arith.constant 0 : index
    %0 = vector.load %arg1[%c0, %c0_0] : memref<512x160xbf16, #tpu.memory_space<vmem>>, vector<512x160xbf16>
    %c0_1 = arith.constant 0 : index
    %c0_2 = arith.constant 0 : index
    %1 = vector.load %arg2[%c0_1, %c0_2] : memref<160x8xbf16, #tpu.memory_space<vmem>>, vector<160x8xbf16>
    %cst = arith.constant dense<0.000000e+00> : vector<512x8xf32>
    %2 = tpu.matmul %0, %1, %cst {dimension_numbers = #tpu.dot_dimension_numbers<[1], [0], [0], [1], [0, 0, 1, 1], [], []>} : vector<512x160xbf16>, vector<160x8xbf16>, vector<512x8xf32> -> vector<512x8xf32>
    %c0_3 = arith.constant 0 : index
    %c0_4 = arith.constant 0 : index
    %3 = vector.load %arg3[%c0_3, %c0_4] : memref<1x8xf32, #tpu.memory_space<vmem>>, vector<1x8xf32>
    %4 = vector.broadcast %3 : vector<1x8xf32> to vector<512x8xf32>
    %5 = arith.addf %2, %4 : vector<512x8xf32>
    %cst_5 = arith.constant 0.000000e+00 : f32
    %6 = vector.broadcast %cst_5 : f32 to vector<512x8xf32>
    %7 = arith.maximumf %5, %6 : vector<512x8xf32>
    %8 = arith.truncf %7 : vector<512x8xf32> to vector<512x8xbf16>
    %c0_6 = arith.constant 0 : index
    %c0_7 = arith.constant 0 : index
    %9 = vector.load %arg4[%c0_6, %c0_7] : memref<512x8xbf16, #tpu.memory_space<vmem>>, vector<512x8xbf16>
    tpu.vector_store %arg4[%c0_6, %c0_7], %8 {strides = array<i32>} : memref<512x8xbf16, #tpu.memory_space<vmem>>, vector<512x8xbf16>,
    return
  }
  func.func @transform_0(%arg0: i32) -> (i32, i32) {
    %c0_i32 = arith.constant 0 : i32
    %c0_i32_0 = arith.constant 0 : i32
    return %arg0, %c0_i32 : i32, i32
  }
  func.func @transform_1(%arg0: i32) -> (i32, i32) {
    %c0_i32 = arith.constant 0 : i32
    %c0_i32_0 = arith.constant 0 : i32
    %c0_i32_1 = arith.constant 0 : i32
    return %c0_i32, %c0_i32_0 : i32, i32
  }
  func.func @transform_2(%arg0: i32) -> (i32, i32) {
    %c0_i32 = arith.constant 0 : i32
    %c0_i32_0 = arith.constant 0 : i32
    %c0_i32_1 = arith.constant 0 : i32
    return %c0_i32, %c0_i32_0 : i32, i32
  }
  func.func @transform_3(%arg0: i32) -> (i32, i32) {
    %c0_i32 = arith.constant 0 : i32
    %c0_i32_0 = arith.constant 0 : i32
    return %arg0, %c0_i32 : i32, i32
  }
}

module attributes {stable_mosaic.version = 11 : i64} {
  func.func @_fused_kernel(%arg0: i32, %arg1: memref<128x80xbf16, #tpu.memory_space<vmem>>, %arg2: memref<80x16xbf16, #tpu.memory_space<vmem>>, %arg3: memref<1x16xf32, #tpu.memory_space<vmem>>, %arg4: memref<128x16xbf16, #tpu.memory_space<vmem>>) attributes {dimension_semantics = [#tpu.dimension_semantics<parallel>], iteration_bounds = array<i64: 1>, scalar_prefetch = 0 : i64, scratch_operands = 0 : i64, tpu.core_type = #tpu.core_type<tc>, window_params = [{transform_indices = @transform_0, window_bounds = array<i64: 128, 80>}, {pipeline_mode = #tpu.pipeline_mode<synchronous>, transform_indices = @transform_1, window_bounds = array<i64: 80, 16>}, {pipeline_mode = #tpu.pipeline_mode<synchronous>, transform_indices = @transform_2, window_bounds = array<i64: 1, 16>}, {transform_indices = @transform_3, window_bounds = array<i64: 128, 16>}]} {
    %c0 = arith.constant 0 : index
    %c0_0 = arith.constant 0 : index
    %0 = vector.load %arg1[%c0, %c0_0] : memref<128x80xbf16, #tpu.memory_space<vmem>>, vector<128x80xbf16>
    %c0_1 = arith.constant 0 : index
    %c0_2 = arith.constant 0 : index
    %1 = vector.load %arg2[%c0_1, %c0_2] : memref<80x16xbf16, #tpu.memory_space<vmem>>, vector<80x16xbf16>
    %cst = arith.constant dense<0.000000e+00> : vector<128x16xf32>
    %2 = tpu.matmul %0, %1, %cst {dimension_numbers = #tpu.dot_dimension_numbers<[1], [0], [0], [1], [0, 0, 1, 1], [], []>} : vector<128x80xbf16>, vector<80x16xbf16>, vector<128x16xf32> -> vector<128x16xf32>
    %c0_3 = arith.constant 0 : index
    %c0_4 = arith.constant 0 : index
    %3 = vector.load %arg3[%c0_3, %c0_4] : memref<1x16xf32, #tpu.memory_space<vmem>>, vector<1x16xf32>
    %4 = vector.broadcast %3 : vector<1x16xf32> to vector<128x16xf32>
    %5 = arith.addf %2, %4 : vector<128x16xf32>
    %cst_5 = arith.constant 0.000000e+00 : f32
    %6 = vector.broadcast %cst_5 : f32 to vector<128x16xf32>
    %7 = arith.maximumf %5, %6 : vector<128x16xf32>
    %8 = arith.truncf %7 : vector<128x16xf32> to vector<128x16xbf16>
    %c0_6 = arith.constant 0 : index
    %c0_7 = arith.constant 0 : index
    %9 = vector.load %arg4[%c0_6, %c0_7] : memref<128x16xbf16, #tpu.memory_space<vmem>>, vector<128x16xbf16>
    tpu.vector_store %arg4[%c0_6, %c0_7], %8 {strides = array<i32>} : memref<128x16xbf16, #tpu.memory_space<vmem>>, vector<128x16xbf16>,
    return
  }
  func.func @transform_0(%arg0: i32) -> (i32, i32) {
    %c0_i32 = arith.constant 0 : i32
    %c0_i32_0 = arith.constant 0 : i32
    return %arg0, %c0_i32 : i32, i32
  }
  func.func @transform_1(%arg0: i32) -> (i32, i32) {
    %c0_i32 = arith.constant 0 : i32
    %c0_i32_0 = arith.constant 0 : i32
    %c0_i32_1 = arith.constant 0 : i32
    return %c0_i32, %c0_i32_0 : i32, i32
  }
  func.func @transform_2(%arg0: i32) -> (i32, i32) {
    %c0_i32 = arith.constant 0 : i32
    %c0_i32_0 = arith.constant 0 : i32
    %c0_i32_1 = arith.constant 0 : i32
    return %c0_i32, %c0_i32_0 : i32, i32
  }
  func.func @transform_3(%arg0: i32) -> (i32, i32) {
    %c0_i32 = arith.constant 0 : i32
    %c0_i32_0 = arith.constant 0 : i32
    return %arg0, %c0_i32 : i32, i32
  }
}

module attributes {stable_mosaic.version = 11 : i64} {
  func.func @_fused_kernel(%arg0: i32, %arg1: memref<32x144xbf16, #tpu.memory_space<vmem>>, %arg2: memref<144x32xbf16, #tpu.memory_space<vmem>>, %arg3: memref<1x32xf32, #tpu.memory_space<vmem>>, %arg4: memref<32x32xbf16, #tpu.memory_space<vmem>>) attributes {dimension_semantics = [#tpu.dimension_semantics<parallel>], iteration_bounds = array<i64: 1>, scalar_prefetch = 0 : i64, scratch_operands = 0 : i64, tpu.core_type = #tpu.core_type<tc>, window_params = [{transform_indices = @transform_0, window_bounds = array<i64: 32, 144>}, {pipeline_mode = #tpu.pipeline_mode<synchronous>, transform_indices = @transform_1, window_bounds = array<i64: 144, 32>}, {pipeline_mode = #tpu.pipeline_mode<synchronous>, transform_indices = @transform_2, window_bounds = array<i64: 1, 32>}, {transform_indices = @transform_3, window_bounds = array<i64: 32, 32>}]} {
    %c0 = arith.constant 0 : index
    %c0_0 = arith.constant 0 : index
    %0 = vector.load %arg1[%c0, %c0_0] : memref<32x144xbf16, #tpu.memory_space<vmem>>, vector<32x144xbf16>
    %c0_1 = arith.constant 0 : index
    %c0_2 = arith.constant 0 : index
    %1 = vector.load %arg2[%c0_1, %c0_2] : memref<144x32xbf16, #tpu.memory_space<vmem>>, vector<144x32xbf16>
    %cst = arith.constant dense<0.000000e+00> : vector<32x32xf32>
    %2 = tpu.matmul %0, %1, %cst {dimension_numbers = #tpu.dot_dimension_numbers<[1], [0], [0], [1], [0, 0, 1, 1], [], []>} : vector<32x144xbf16>, vector<144x32xbf16>, vector<32x32xf32> -> vector<32x32xf32>
    %c0_3 = arith.constant 0 : index
    %c0_4 = arith.constant 0 : index
    %3 = vector.load %arg3[%c0_3, %c0_4] : memref<1x32xf32, #tpu.memory_space<vmem>>, vector<1x32xf32>
    %4 = vector.broadcast %3 : vector<1x32xf32> to vector<32x32xf32>
    %5 = arith.addf %2, %4 : vector<32x32xf32>
    %cst_5 = arith.constant 0.000000e+00 : f32
    %6 = vector.broadcast %cst_5 : f32 to vector<32x32xf32>
    %7 = arith.maximumf %5, %6 : vector<32x32xf32>
    %8 = arith.truncf %7 : vector<32x32xf32> to vector<32x32xbf16>
    %c0_6 = arith.constant 0 : index
    %c0_7 = arith.constant 0 : index
    %9 = vector.load %arg4[%c0_6, %c0_7] : memref<32x32xbf16, #tpu.memory_space<vmem>>, vector<32x32xbf16>
    tpu.vector_store %arg4[%c0_6, %c0_7], %8 {strides = array<i32>} : memref<32x32xbf16, #tpu.memory_space<vmem>>, vector<32x32xbf16>,
    return
  }
  func.func @transform_0(%arg0: i32) -> (i32, i32) {
    %c0_i32 = arith.constant 0 : i32
    %c0_i32_0 = arith.constant 0 : i32
    return %arg0, %c0_i32 : i32, i32
  }
  func.func @transform_1(%arg0: i32) -> (i32, i32) {
    %c0_i32 = arith.constant 0 : i32
    %c0_i32_0 = arith.constant 0 : i32
    %c0_i32_1 = arith.constant 0 : i32
    return %c0_i32, %c0_i32_0 : i32, i32
  }
  func.func @transform_2(%arg0: i32) -> (i32, i32) {
    %c0_i32 = arith.constant 0 : i32
    %c0_i32_0 = arith.constant 0 : i32
    %c0_i32_1 = arith.constant 0 : i32
    return %c0_i32, %c0_i32_0 : i32, i32
  }
  func.func @transform_3(%arg0: i32) -> (i32, i32) {
    %c0_i32 = arith.constant 0 : i32
    %c0_i32_0 = arith.constant 0 : i32
    return %arg0, %c0_i32 : i32, i32
  }
}

module attributes {stable_mosaic.version = 11 : i64} {
  func.func @_fused_kernel(%arg0: i32, %arg1: memref<32x288xbf16, #tpu.memory_space<vmem>>, %arg2: memref<288x32xbf16, #tpu.memory_space<vmem>>, %arg3: memref<1x32xf32, #tpu.memory_space<vmem>>, %arg4: memref<32x32xbf16, #tpu.memory_space<vmem>>) attributes {dimension_semantics = [#tpu.dimension_semantics<parallel>], iteration_bounds = array<i64: 1>, scalar_prefetch = 0 : i64, scratch_operands = 0 : i64, tpu.core_type = #tpu.core_type<tc>, window_params = [{transform_indices = @transform_0, window_bounds = array<i64: 32, 288>}, {pipeline_mode = #tpu.pipeline_mode<synchronous>, transform_indices = @transform_1, window_bounds = array<i64: 288, 32>}, {pipeline_mode = #tpu.pipeline_mode<synchronous>, transform_indices = @transform_2, window_bounds = array<i64: 1, 32>}, {transform_indices = @transform_3, window_bounds = array<i64: 32, 32>}]} {
    %c0 = arith.constant 0 : index
    %c0_0 = arith.constant 0 : index
    %0 = vector.load %arg1[%c0, %c0_0] : memref<32x288xbf16, #tpu.memory_space<vmem>>, vector<32x288xbf16>
    %c0_1 = arith.constant 0 : index
    %c0_2 = arith.constant 0 : index
    %1 = vector.load %arg2[%c0_1, %c0_2] : memref<288x32xbf16, #tpu.memory_space<vmem>>, vector<288x32xbf16>
    %cst = arith.constant dense<0.000000e+00> : vector<32x32xf32>
    %2 = tpu.matmul %0, %1, %cst {dimension_numbers = #tpu.dot_dimension_numbers<[1], [0], [0], [1], [0, 0, 1, 1], [], []>} : vector<32x288xbf16>, vector<288x32xbf16>, vector<32x32xf32> -> vector<32x32xf32>
    %c0_3 = arith.constant 0 : index
    %c0_4 = arith.constant 0 : index
    %3 = vector.load %arg3[%c0_3, %c0_4] : memref<1x32xf32, #tpu.memory_space<vmem>>, vector<1x32xf32>
    %4 = vector.broadcast %3 : vector<1x32xf32> to vector<32x32xf32>
    %5 = arith.addf %2, %4 : vector<32x32xf32>
    %cst_5 = arith.constant 0.000000e+00 : f32
    %6 = vector.broadcast %cst_5 : f32 to vector<32x32xf32>
    %7 = arith.maximumf %5, %6 : vector<32x32xf32>
    %8 = arith.truncf %7 : vector<32x32xf32> to vector<32x32xbf16>
    %c0_6 = arith.constant 0 : index
    %c0_7 = arith.constant 0 : index
    %9 = vector.load %arg4[%c0_6, %c0_7] : memref<32x32xbf16, #tpu.memory_space<vmem>>, vector<32x32xbf16>
    tpu.vector_store %arg4[%c0_6, %c0_7], %8 {strides = array<i32>} : memref<32x32xbf16, #tpu.memory_space<vmem>>, vector<32x32xbf16>,
    return
  }
  func.func @transform_0(%arg0: i32) -> (i32, i32) {
    %c0_i32 = arith.constant 0 : i32
    %c0_i32_0 = arith.constant 0 : i32
    return %arg0, %c0_i32 : i32, i32
  }
  func.func @transform_1(%arg0: i32) -> (i32, i32) {
    %c0_i32 = arith.constant 0 : i32
    %c0_i32_0 = arith.constant 0 : i32
    %c0_i32_1 = arith.constant 0 : i32
    return %c0_i32, %c0_i32_0 : i32, i32
  }
  func.func @transform_2(%arg0: i32) -> (i32, i32) {
    %c0_i32 = arith.constant 0 : i32
    %c0_i32_0 = arith.constant 0 : i32
    %c0_i32_1 = arith.constant 0 : i32
    return %c0_i32, %c0_i32_0 : i32, i32
  }
  func.func @transform_3(%arg0: i32) -> (i32, i32) {
    %c0_i32 = arith.constant 0 : i32
    %c0_i32_0 = arith.constant 0 : i32
    return %arg0, %c0_i32 : i32, i32
  }
}

module attributes {stable_mosaic.version = 11 : i64} {
  func.func @_fused_kernel(%arg0: i32, %arg1: memref<32x288xbf16, #tpu.memory_space<vmem>>, %arg2: memref<288x32xbf16, #tpu.memory_space<vmem>>, %arg3: memref<1x32xf32, #tpu.memory_space<vmem>>, %arg4: memref<32x32xbf16, #tpu.memory_space<vmem>>, %arg5: memref<32x32xbf16, #tpu.memory_space<vmem>>) attributes {dimension_semantics = [#tpu.dimension_semantics<parallel>], iteration_bounds = array<i64: 1>, scalar_prefetch = 0 : i64, scratch_operands = 0 : i64, tpu.core_type = #tpu.core_type<tc>, window_params = [{transform_indices = @transform_0, window_bounds = array<i64: 32, 288>}, {pipeline_mode = #tpu.pipeline_mode<synchronous>, transform_indices = @transform_1, window_bounds = array<i64: 288, 32>}, {pipeline_mode = #tpu.pipeline_mode<synchronous>, transform_indices = @transform_2, window_bounds = array<i64: 1, 32>}, {transform_indices = @transform_3, window_bounds = array<i64: 32, 32>}, {transform_indices = @transform_4, window_bounds = array<i64: 32, 32>}]} {
    %c0 = arith.constant 0 : index
    %c0_0 = arith.constant 0 : index
    %0 = vector.load %arg1[%c0, %c0_0] : memref<32x288xbf16, #tpu.memory_space<vmem>>, vector<32x288xbf16>
    %c0_1 = arith.constant 0 : index
    %c0_2 = arith.constant 0 : index
    %1 = vector.load %arg2[%c0_1, %c0_2] : memref<288x32xbf16, #tpu.memory_space<vmem>>, vector<288x32xbf16>
    %cst = arith.constant dense<0.000000e+00> : vector<32x32xf32>
    %2 = tpu.matmul %0, %1, %cst {dimension_numbers = #tpu.dot_dimension_numbers<[1], [0], [0], [1], [0, 0, 1, 1], [], []>} : vector<32x288xbf16>, vector<288x32xbf16>, vector<32x32xf32> -> vector<32x32xf32>
    %c0_3 = arith.constant 0 : index
    %c0_4 = arith.constant 0 : index
    %3 = vector.load %arg3[%c0_3, %c0_4] : memref<1x32xf32, #tpu.memory_space<vmem>>, vector<1x32xf32>
    %4 = vector.broadcast %3 : vector<1x32xf32> to vector<32x32xf32>
    %5 = arith.addf %2, %4 : vector<32x32xf32>
    %c0_5 = arith.constant 0 : index
    %c0_6 = arith.constant 0 : index
    %6 = vector.load %arg4[%c0_5, %c0_6] : memref<32x32xbf16, #tpu.memory_space<vmem>>, vector<32x32xbf16>
    %7 = arith.extf %6 : vector<32x32xbf16> to vector<32x32xf32>
    %8 = arith.addf %5, %7 : vector<32x32xf32>
    %9 = arith.truncf %8 : vector<32x32xf32> to vector<32x32xbf16>
    %c0_7 = arith.constant 0 : index
    %c0_8 = arith.constant 0 : index
    %10 = vector.load %arg5[%c0_7, %c0_8] : memref<32x32xbf16, #tpu.memory_space<vmem>>, vector<32x32xbf16>
    tpu.vector_store %arg5[%c0_7, %c0_8], %9 {strides = array<i32>} : memref<32x32xbf16, #tpu.memory_space<vmem>>, vector<32x32xbf16>,
    return
  }
  func.func @transform_0(%arg0: i32) -> (i32, i32) {
    %c0_i32 = arith.constant 0 : i32
    %c0_i32_0 = arith.constant 0 : i32
    return %arg0, %c0_i32 : i32, i32
  }
  func.func @transform_1(%arg0: i32) -> (i32, i32) {
    %c0_i32 = arith.constant 0 : i32
    %c0_i32_0 = arith.constant 0 : i32
    %c0_i32_1 = arith.constant 0 : i32
    return %c0_i32, %c0_i32_0 : i32, i32
  }
  func.func @transform_2(%arg0: i32) -> (i32, i32) {
    %c0_i32 = arith.constant 0 : i32
    %c0_i32_0 = arith.constant 0 : i32
    %c0_i32_1 = arith.constant 0 : i32
    return %c0_i32, %c0_i32_0 : i32, i32
  }
  func.func @transform_3(%arg0: i32) -> (i32, i32) {
    %c0_i32 = arith.constant 0 : i32
    %c0_i32_0 = arith.constant 0 : i32
    return %arg0, %c0_i32 : i32, i32
  }
  func.func @transform_4(%arg0: i32) -> (i32, i32) {
    %c0_i32 = arith.constant 0 : i32
    %c0_i32_0 = arith.constant 0 : i32
    return %arg0, %c0_i32 : i32, i32
  }
}

module attributes {stable_mosaic.version = 11 : i64} {
  func.func @_fused_kernel(%arg0: i32, %arg1: memref<32x128xbf16, #tpu.memory_space<vmem>>, %arg2: memref<128x64xbf16, #tpu.memory_space<vmem>>, %arg3: memref<1x64xf32, #tpu.memory_space<vmem>>, %arg4: memref<32x64xbf16, #tpu.memory_space<vmem>>) attributes {dimension_semantics = [#tpu.dimension_semantics<parallel>], iteration_bounds = array<i64: 1>, scalar_prefetch = 0 : i64, scratch_operands = 0 : i64, tpu.core_type = #tpu.core_type<tc>, window_params = [{transform_indices = @transform_0, window_bounds = array<i64: 32, 128>}, {pipeline_mode = #tpu.pipeline_mode<synchronous>, transform_indices = @transform_1, window_bounds = array<i64: 128, 64>}, {pipeline_mode = #tpu.pipeline_mode<synchronous>, transform_indices = @transform_2, window_bounds = array<i64: 1, 64>}, {transform_indices = @transform_3, window_bounds = array<i64: 32, 64>}]} {
    %c0 = arith.constant 0 : index
    %c0_0 = arith.constant 0 : index
    %0 = vector.load %arg1[%c0, %c0_0] : memref<32x128xbf16, #tpu.memory_space<vmem>>, vector<32x128xbf16>
    %c0_1 = arith.constant 0 : index
    %c0_2 = arith.constant 0 : index
    %1 = vector.load %arg2[%c0_1, %c0_2] : memref<128x64xbf16, #tpu.memory_space<vmem>>, vector<128x64xbf16>
    %cst = arith.constant dense<0.000000e+00> : vector<32x64xf32>
    %2 = tpu.matmul %0, %1, %cst {dimension_numbers = #tpu.dot_dimension_numbers<[1], [0], [0], [1], [0, 0, 1, 1], [], []>} : vector<32x128xbf16>, vector<128x64xbf16>, vector<32x64xf32> -> vector<32x64xf32>
    %c0_3 = arith.constant 0 : index
    %c0_4 = arith.constant 0 : index
    %3 = vector.load %arg3[%c0_3, %c0_4] : memref<1x64xf32, #tpu.memory_space<vmem>>, vector<1x64xf32>
    %4 = vector.broadcast %3 : vector<1x64xf32> to vector<32x64xf32>
    %5 = arith.addf %2, %4 : vector<32x64xf32>
    %cst_5 = arith.constant 0.000000e+00 : f32
    %6 = vector.broadcast %cst_5 : f32 to vector<32x64xf32>
    %7 = arith.maximumf %5, %6 : vector<32x64xf32>
    %8 = arith.truncf %7 : vector<32x64xf32> to vector<32x64xbf16>
    %c0_6 = arith.constant 0 : index
    %c0_7 = arith.constant 0 : index
    %9 = vector.load %arg4[%c0_6, %c0_7] : memref<32x64xbf16, #tpu.memory_space<vmem>>, vector<32x64xbf16>
    tpu.vector_store %arg4[%c0_6, %c0_7], %8 {strides = array<i32>} : memref<32x64xbf16, #tpu.memory_space<vmem>>, vector<32x64xbf16>,
    return
  }
  func.func @transform_0(%arg0: i32) -> (i32, i32) {
    %c0_i32 = arith.constant 0 : i32
    %c0_i32_0 = arith.constant 0 : i32
    return %arg0, %c0_i32 : i32, i32
  }
  func.func @transform_1(%arg0: i32) -> (i32, i32) {
    %c0_i32 = arith.constant 0 : i32
    %c0_i32_0 = arith.constant 0 : i32
    %c0_i32_1 = arith.constant 0 : i32
    return %c0_i32, %c0_i32_0 : i32, i32
  }
  func.func @transform_2(%arg0: i32) -> (i32, i32) {
    %c0_i32 = arith.constant 0 : i32
    %c0_i32_0 = arith.constant 0 : i32
    %c0_i32_1 = arith.constant 0 : i32
    return %c0_i32, %c0_i32_0 : i32, i32
  }
  func.func @transform_3(%arg0: i32) -> (i32, i32) {
    %c0_i32 = arith.constant 0 : i32
    %c0_i32_0 = arith.constant 0 : i32
    return %arg0, %c0_i32 : i32, i32
  }
}

module attributes {stable_mosaic.version = 11 : i64} {
  func.func @_fused_kernel(%arg0: i32, %arg1: memref<128x64xbf16, #tpu.memory_space<vmem>>, %arg2: memref<64x32xbf16, #tpu.memory_space<vmem>>, %arg3: memref<1x32xf32, #tpu.memory_space<vmem>>, %arg4: memref<128x32xbf16, #tpu.memory_space<vmem>>) attributes {dimension_semantics = [#tpu.dimension_semantics<parallel>], iteration_bounds = array<i64: 1>, scalar_prefetch = 0 : i64, scratch_operands = 0 : i64, tpu.core_type = #tpu.core_type<tc>, window_params = [{transform_indices = @transform_0, window_bounds = array<i64: 128, 64>}, {pipeline_mode = #tpu.pipeline_mode<synchronous>, transform_indices = @transform_1, window_bounds = array<i64: 64, 32>}, {pipeline_mode = #tpu.pipeline_mode<synchronous>, transform_indices = @transform_2, window_bounds = array<i64: 1, 32>}, {transform_indices = @transform_3, window_bounds = array<i64: 128, 32>}]} {
    %c0 = arith.constant 0 : index
    %c0_0 = arith.constant 0 : index
    %0 = vector.load %arg1[%c0, %c0_0] : memref<128x64xbf16, #tpu.memory_space<vmem>>, vector<128x64xbf16>
    %c0_1 = arith.constant 0 : index
    %c0_2 = arith.constant 0 : index
    %1 = vector.load %arg2[%c0_1, %c0_2] : memref<64x32xbf16, #tpu.memory_space<vmem>>, vector<64x32xbf16>
    %cst = arith.constant dense<0.000000e+00> : vector<128x32xf32>
    %2 = tpu.matmul %0, %1, %cst {dimension_numbers = #tpu.dot_dimension_numbers<[1], [0], [0], [1], [0, 0, 1, 1], [], []>} : vector<128x64xbf16>, vector<64x32xbf16>, vector<128x32xf32> -> vector<128x32xf32>
    %c0_3 = arith.constant 0 : index
    %c0_4 = arith.constant 0 : index
    %3 = vector.load %arg3[%c0_3, %c0_4] : memref<1x32xf32, #tpu.memory_space<vmem>>, vector<1x32xf32>
    %4 = vector.broadcast %3 : vector<1x32xf32> to vector<128x32xf32>
    %5 = arith.addf %2, %4 : vector<128x32xf32>
    %cst_5 = arith.constant 0.000000e+00 : f32
    %6 = vector.broadcast %cst_5 : f32 to vector<128x32xf32>
    %7 = arith.maximumf %5, %6 : vector<128x32xf32>
    %8 = arith.truncf %7 : vector<128x32xf32> to vector<128x32xbf16>
    %c0_6 = arith.constant 0 : index
    %c0_7 = arith.constant 0 : index
    %9 = vector.load %arg4[%c0_6, %c0_7] : memref<128x32xbf16, #tpu.memory_space<vmem>>, vector<128x32xbf16>
    tpu.vector_store %arg4[%c0_6, %c0_7], %8 {strides = array<i32>} : memref<128x32xbf16, #tpu.memory_space<vmem>>, vector<128x32xbf16>,
    return
  }
  func.func @transform_0(%arg0: i32) -> (i32, i32) {
    %c0_i32 = arith.constant 0 : i32
    %c0_i32_0 = arith.constant 0 : i32
    return %arg0, %c0_i32 : i32, i32
  }
  func.func @transform_1(%arg0: i32) -> (i32, i32) {
    %c0_i32 = arith.constant 0 : i32
    %c0_i32_0 = arith.constant 0 : i32
    %c0_i32_1 = arith.constant 0 : i32
    return %c0_i32, %c0_i32_0 : i32, i32
  }
  func.func @transform_2(%arg0: i32) -> (i32, i32) {
    %c0_i32 = arith.constant 0 : i32
    %c0_i32_0 = arith.constant 0 : i32
    %c0_i32_1 = arith.constant 0 : i32
    return %c0_i32, %c0_i32_0 : i32, i32
  }
  func.func @transform_3(%arg0: i32) -> (i32, i32) {
    %c0_i32 = arith.constant 0 : i32
    %c0_i32_0 = arith.constant 0 : i32
    return %arg0, %c0_i32 : i32, i32
  }
}

module attributes {stable_mosaic.version = 11 : i64} {
  func.func @_fused_kernel(%arg0: i32, %arg1: memref<512x400xbf16, #tpu.memory_space<vmem>>, %arg2: memref<400x3xbf16, #tpu.memory_space<vmem>>, %arg3: memref<1x3xf32, #tpu.memory_space<vmem>>, %arg4: memref<512x3xf32, #tpu.memory_space<vmem>>) attributes {dimension_semantics = [#tpu.dimension_semantics<parallel>], iteration_bounds = array<i64: 1>, scalar_prefetch = 0 : i64, scratch_operands = 0 : i64, tpu.core_type = #tpu.core_type<tc>, window_params = [{transform_indices = @transform_0, window_bounds = array<i64: 512, 400>}, {pipeline_mode = #tpu.pipeline_mode<synchronous>, transform_indices = @transform_1, window_bounds = array<i64: 400, 3>}, {pipeline_mode = #tpu.pipeline_mode<synchronous>, transform_indices = @transform_2, window_bounds = array<i64: 1, 3>}, {transform_indices = @transform_3, window_bounds = array<i64: 512, 3>}]} {
    %c0 = arith.constant 0 : index
    %c0_0 = arith.constant 0 : index
    %0 = vector.load %arg1[%c0, %c0_0] : memref<512x400xbf16, #tpu.memory_space<vmem>>, vector<512x400xbf16>
    %c0_1 = arith.constant 0 : index
    %c0_2 = arith.constant 0 : index
    %1 = vector.load %arg2[%c0_1, %c0_2] : memref<400x3xbf16, #tpu.memory_space<vmem>>, vector<400x3xbf16>
    %cst = arith.constant dense<0.000000e+00> : vector<512x3xf32>
    %2 = tpu.matmul %0, %1, %cst {dimension_numbers = #tpu.dot_dimension_numbers<[1], [0], [0], [1], [0, 0, 1, 1], [], []>} : vector<512x400xbf16>, vector<400x3xbf16>, vector<512x3xf32> -> vector<512x3xf32>
    %c0_3 = arith.constant 0 : index
    %c0_4 = arith.constant 0 : index
    %3 = vector.load %arg3[%c0_3, %c0_4] : memref<1x3xf32, #tpu.memory_space<vmem>>, vector<1x3xf32>
    %4 = vector.broadcast %3 : vector<1x3xf32> to vector<512x3xf32>
    %5 = arith.addf %2, %4 : vector<512x3xf32>
    %6 = math.tanh %5 : vector<512x3xf32>
    %c0_5 = arith.constant 0 : index
    %c0_6 = arith.constant 0 : index
    %7 = vector.load %arg4[%c0_5, %c0_6] : memref<512x3xf32, #tpu.memory_space<vmem>>, vector<512x3xf32>
    tpu.vector_store %arg4[%c0_5, %c0_6], %6 {strides = array<i32>} : memref<512x3xf32, #tpu.memory_space<vmem>>, vector<512x3xf32>,
    return
  }
  func.func @transform_0(%arg0: i32) -> (i32, i32) {
    %c0_i32 = arith.constant 0 : i32
    %c0_i32_0 = arith.constant 0 : i32
    return %arg0, %c0_i32 : i32, i32
  }
  func.func @transform_1(%arg0: i32) -> (i32, i32) {
    %c0_i32 = arith.constant 0 : i32
    %c0_i32_0 = arith.constant 0 : i32
    %c0_i32_1 = arith.constant 0 : i32
    return %c0_i32, %c0_i32_0 : i32, i32
  }
  func.func @transform_2(%arg0: i32) -> (i32, i32) {
    %c0_i32 = arith.constant 0 : i32
    %c0_i32_0 = arith.constant 0 : i32
    %c0_i32_1 = arith.constant 0 : i32
    return %c0_i32, %c0_i32_0 : i32, i32
  }
  func.func @transform_3(%arg0: i32) -> (i32, i32) {
    %c0_i32 = arith.constant 0 : i32
    %c0_i32_0 = arith.constant 0 : i32
    return %arg0, %c0_i32 : i32, i32
  }
}

</mosaic_0001>

<llo_original>
// kernel: resnet_generator_forward.10
$region0: #{resnet_generator_forward.10}
  #allocation0 [shape = 'u32[]', space=smem, size = 0x4, offset = 0x4, fixed_abs, tag = 'smem constant byte address 0x4 - core index']
  #allocation1 [shape = 'u32[144,128]{1,0:T(1,128)}', space=vmem, size = 0x12000, scoped, tag = 'internal scratch']
  %s0 = inlined_call_operand.vmem [shape: bf16[512,160], index: 0, kind: input, shape index: {}]
  %s1 = inlined_call_operand.vmem [shape: bf16[160,8], index: 1, kind: input, shape index: {}]
  %s2 = inlined_call_operand.vmem [shape: f32[1,8], index: 2, kind: input, shape index: {}]
  %s3 = inlined_call_operand.vmem [shape: bf16[512,8], index: 3, kind: output, shape index: {}]
  %s4 = sld [smem:[#allocation0]]
  $region22: #{resnet_generator_forward.10} parent=0
    _
  %s6 = ssub.s32 1, %s4
  %s7 = scalar_select 0, %s6, %s4
  // Predicated region
  $region2: #{resnet_generator_forward.10} parent=0 // pred_check
    _
  $region3: #{resnet_generator_forward.10} parent=0 // pred_check_branch
    %9 = sbr.rel (0) target = $region5
  $region4: #{resnet_generator_forward.10} parent=0 // pred_region
    _
  $region5: #{resnet_generator_forward.10} parent=0 // pred_fallthru
    _
  // Predicated region
  $region6: #{resnet_generator_forward.10} parent=0 // pred_check
    _
  $region7: #{resnet_generator_forward.10} parent=0 // pred_check_branch
    %11 = sbr.rel (0) target = $region9
  $region8: #{resnet_generator_forward.10} parent=0 // pred_region
    _
  $region9: #{resnet_generator_forward.10} parent=0 // pred_fallthru
    _
  // Predicated region
  $region10: #{resnet_generator_forward.10} parent=0 // pred_check
    _
  $region11: #{resnet_generator_forward.10} parent=0 // pred_check_branch
    %13 = sbr.rel (0) target = $region13
  $region12: #{resnet_generator_forward.10} parent=0 // pred_region
    _
  $region13: #{resnet_generator_forward.10} parent=0 // pred_fallthru
    _
  %v15 = vld [vmem:[%s0] sm:$0xff]
  %v16 = vld [vmem:[%s0 + $0x8] sm:$0xff]
  %v17 = vld [vmem:[%s0 + $0x10] sm:$0xff]
  %v18 = vld [vmem:[%s0 + $0x18] sm:$0xff]
  %v19 = vld [vmem:[%s0 + $0x20] sm:$0xff]
  %v20 = vld [vmem:[%s0 + $0x28] sm:$0xff]
  %v21 = vld [vmem:[%s0 + $0x30] sm:$0xff]
  %v22 = vld [vmem:[%s0 + $0x38] sm:$0xff]
  %v23 = vld [vmem:[%s0 + $0x40] sm:$0xff]
  %v24 = vld [vmem:[%s0 + $0x48] sm:$0xff]
  %v25 = vld [vmem:[%s0 + $0x50] sm:$0xff]
  %v26 = vld [vmem:[%s0 + $0x58] sm:$0xff]
  %v27 = vld [vmem:[%s0 + $0x60] sm:$0xff]
  %v28 = vld [vmem:[%s0 + $0x68] sm:$0xff]
  %v29 = vld [vmem:[%s0 + $0x70] sm:$0xff]
  %v30 = vld [vmem:[%s0 + $0x78] sm:$0xff]
  %v31 = vld [vmem:[%s0 + $0x80] sm:$0xff]
  %v32 = vld [vmem:[%s0 + $0x88] sm:$0xff]
  %v33 = vld [vmem:[%s0 + $0x90] sm:$0xff]
  %v34 = vld [vmem:[%s0 + $0x98] sm:$0xff]
  %v35 = vld [vmem:[%s0 + $0xa0] sm:$0xff]
  %v36 = vld [vmem:[%s0 + $0xa8] sm:$0xff]
  %v37 = vld [vmem:[%s0 + $0xb0] sm:$0xff]
  %v38 = vld [vmem:[%s0 + $0xb8] sm:$0xff]
  %v39 = vld [vmem:[%s0 + $0xc0] sm:$0xff]
  %v40 = vld [vmem:[%s0 + $0xc8] sm:$0xff]
  %v41 = vld [vmem:[%s0 + $0xd0] sm:$0xff]
  %v42 = vld [vmem:[%s0 + $0xd8] sm:$0xff]
  %v43 = vld [vmem:[%s0 + $0xe0] sm:$0xff]
  %v44 = vld [vmem:[%s0 + $0xe8] sm:$0xff]
  %v45 = vld [vmem:[%s0 + $0xf0] sm:$0xff]
  %v46 = vld [vmem:[%s0 + $0xf8] sm:$0xff]
  %v47 = vld [vmem:[%s0 + $0x100] sm:$0xff]
  %v48 = vld [vmem:[%s0 + $0x108] sm:$0xff]
  %v49 = vld [vmem:[%s0 + $0x110] sm:$0xff]
  %v50 = vld [vmem:[%s0 + $0x118] sm:$0xff]
  %v51 = vld [vmem:[%s0 + $0x120] sm:$0xff]
  %v52 = vld [vmem:[%s0 + $0x128] sm:$0xff]
  %v53 = vld [vmem:[%s0 + $0x130] sm:$0xff]
  %v54 = vld [vmem:[%s0 + $0x138] sm:$0xff]
  %v55 = vld [vmem:[%s0 + $0x140] sm:$0xff]
  %v56 = vld [vmem:[%s0 + $0x148] sm:$0xff]
  %v57 = vld [vmem:[%s0 + $0x150] sm:$0xff]
  %v58 = vld [vmem:[%s0 + $0x158] sm:$0xff]
  %v59 = vld [vmem:[%s0 + $0x160] sm:$0xff]
  %v60 = vld [vmem:[%s0 + $0x168] sm:$0xff]
  %v61 = vld [vmem:[%s0 + $0x170] sm:$0xff]
  %v62 = vld [vmem:[%s0 + $0x178] sm:$0xff]
  %v63 = vld [vmem:[%s0 + $0x180] sm:$0xff]
  %v64 = vld [vmem:[%s0 + $0x188] sm:$0xff]
  %v65 = vld [vmem:[%s0 + $0x190] sm:$0xff]
  %v66 = vld [vmem:[%s0 + $0x198] sm:$0xff]
  %v67 = vld [vmem:[%s0 + $0x1a0] sm:$0xff]
  %v68 = vld [vmem:[%s0 + $0x1a8] sm:$0xff]
  %v69 = vld [vmem:[%s0 + $0x1b0] sm:$0xff]
  %v70 = vld [vmem:[%s0 + $0x1b8] sm:$0xff]
  %v71 = vld [vmem:[%s0 + $0x1c0] sm:$0xff]
  %v72 = vld [vmem:[%s0 + $0x1c8] sm:$0xff]
  %v73 = vld [vmem:[%s0 + $0x1d0] sm:$0xff]
  %v74 = vld [vmem:[%s0 + $0x1d8] sm:$0xff]
  %v75 = vld [vmem:[%s0 + $0x1e0] sm:$0xff]
  %v76 = vld [vmem:[%s0 + $0x1e8] sm:$0xff]
  %v77 = vld [vmem:[%s0 + $0x1f0] sm:$0xff]
  %v78 = vld [vmem:[%s0 + $0x1f8] sm:$0xff]
  %v79 = vld [vmem:[%s1] sm:$0xf]
  %v80 = vld [vmem:[%s1 + $0x4] sm:$0xf]
  %v81 = vld [vmem:[%s1 + $0x8] sm:$0xf]
  %v82 = vld [vmem:[%s1 + $0xc] sm:$0xf]
  %v83 = vld [vmem:[%s1 + $0x10] sm:$0xf]
  %v84 = vld [vmem:[%s1 + $0x14] sm:$0xf]
  %v85 = vld [vmem:[%s1 + $0x18] sm:$0xf]
  %v86 = vld [vmem:[%s1 + $0x1c] sm:$0xf]
  %v87 = vld [vmem:[%s1 + $0x20] sm:$0xf]
  %v88 = vld [vmem:[%s1 + $0x24] sm:$0xf]
  %v89 = vld [vmem:[%s1 + $0x28] sm:$0xf]
  %v90 = vld [vmem:[%s1 + $0x2c] sm:$0xf]
  %v91 = vld [vmem:[%s1 + $0x30] sm:$0xf]
  %v92 = vld [vmem:[%s1 + $0x34] sm:$0xf]
  %v93 = vld [vmem:[%s1 + $0x38] sm:$0xf]
  %v94 = vld [vmem:[%s1 + $0x3c] sm:$0xf]
  %v95 = vld [vmem:[%s1 + $0x40] sm:$0xf]
  %v96 = vld [vmem:[%s1 + $0x44] sm:$0xf]
  %v97 = vld [vmem:[%s1 + $0x48] sm:$0xf]
  %v98 = vld [vmem:[%s1 + $0x4c] sm:$0xf]
  %v99 = vld [vmem:[%s2] sm:$0x1]
  %v101 = vlaneseq
  %v102 = vshrl.u32 %v101, 7
  %v103 = vsub.s32 0, %v102
  %v104 = vrot.slane %v99, %v103
  %v170 = vunpack.c.l.b16 %v15
  %v171 = vunpack.c.h.b16 %v15
  %v172 = vunpack.c.l.b16 %v16
  %v173 = vunpack.c.h.b16 %v16
  %v174 = vunpack.c.l.b16 %v17
  %v175 = vunpack.c.h.b16 %v17
  %v176 = vunpack.c.l.b16 %v18
  %v177 = vunpack.c.h.b16 %v18
  %v178 = vunpack.c.l.b16 %v19
  %v179 = vunpack.c.h.b16 %v19
  %v180 = vunpack.c.l.b16 %v20
  %v181 = vunpack.c.h.b16 %v20
  %v182 = vunpack.c.l.b16 %v21
  %v183 = vunpack.c.h.b16 %v21
  %v184 = vunpack.c.l.b16 %v22
  %v185 = vunpack.c.h.b16 %v22
  %v186 = vunpack.c.l.b16 %v23
  %v187 = vunpack.c.h.b16 %v23
  %v188 = vunpack.c.l.b16 %v24
  %v189 = vunpack.c.h.b16 %v24
  %v190 = vunpack.c.l.b16 %v25
  %v191 = vunpack.c.h.b16 %v25
  %v192 = vunpack.c.l.b16 %v26
  %v193 = vunpack.c.h.b16 %v26
  %v194 = vunpack.c.l.b16 %v27
  %v195 = vunpack.c.h.b16 %v27
  %v196 = vunpack.c.l.b16 %v28
  %v197 = vunpack.c.h.b16 %v28
  %v198 = vunpack.c.l.b16 %v29
  %v199 = vunpack.c.h.b16 %v29
  %v200 = vunpack.c.l.b16 %v30
  %v201 = vunpack.c.h.b16 %v30
  %v202 = vunpack.c.l.b16 %v31
  %v203 = vunpack.c.h.b16 %v31
  %v204 = vunpack.c.l.b16 %v32
  %v205 = vunpack.c.h.b16 %v32
  %v206 = vunpack.c.l.b16 %v33
  %v207 = vunpack.c.h.b16 %v33
  %v208 = vunpack.c.l.b16 %v34
  %v209 = vunpack.c.h.b16 %v34
  %v210 = vunpack.c.l.b16 %v35
  %v211 = vunpack.c.h.b16 %v35
  %v212 = vunpack.c.l.b16 %v36
  %v213 = vunpack.c.h.b16 %v36
  %v214 = vunpack.c.l.b16 %v37
  %v215 = vunpack.c.h.b16 %v37
  %v216 = vunpack.c.l.b16 %v38
  %v217 = vunpack.c.h.b16 %v38
  %v218 = vunpack.c.l.b16 %v39
  %v219 = vunpack.c.h.b16 %v39
  %v220 = vunpack.c.l.b16 %v40
  %v221 = vunpack.c.h.b16 %v40
  %v222 = vunpack.c.l.b16 %v41
  %v223 = vunpack.c.h.b16 %v41
  %v224 = vunpack.c.l.b16 %v42
  %v225 = vunpack.c.h.b16 %v42
  %v226 = vunpack.c.l.b16 %v43
  %v227 = vunpack.c.h.b16 %v43
  %v228 = vunpack.c.l.b16 %v44
  %v229 = vunpack.c.h.b16 %v44
  %v230 = vunpack.c.l.b16 %v45
  %v231 = vunpack.c.h.b16 %v45
  %v232 = vunpack.c.l.b16 %v46
  %v233 = vunpack.c.h.b16 %v46
  %v234 = vunpack.c.l.b16 %v47
  %v235 = vunpack.c.h.b16 %v47
  %v236 = vunpack.c.l.b16 %v48
  %v237 = vunpack.c.h.b16 %v48
  %v238 = vunpack.c.l.b16 %v49
  %v239 = vunpack.c.h.b16 %v49
  %v240 = vunpack.c.l.b16 %v50
  %v241 = vunpack.c.h.b16 %v50
  %v242 = vunpack.c.l.b16 %v51
  %v243 = vunpack.c.h.b16 %v51
  %v244 = vunpack.c.l.b16 %v52
  %v245 = vunpack.c.h.b16 %v52
  %v246 = vunpack.c.l.b16 %v53
  %v247 = vunpack.c.h.b16 %v53
  %v248 = vunpack.c.l.b16 %v54
  %v249 = vunpack.c.h.b16 %v54
  %v250 = vunpack.c.l.b16 %v55
  %v251 = vunpack.c.h.b16 %v55
  %v252 = vunpack.c.l.b16 %v56
  %v253 = vunpack.c.h.b16 %v56
  %v254 = vunpack.c.l.b16 %v57
  %v255 = vunpack.c.h.b16 %v57
  %v256 = vunpack.c.l.b16 %v58
  %v257 = vunpack.c.h.b16 %v58
  %v258 = vunpack.c.l.b16 %v59
  %v259 = vunpack.c.h.b16 %v59
  %v260 = vunpack.c.l.b16 %v60
  %v261 = vunpack.c.h.b16 %v60
  %v262 = vunpack.c.l.b16 %v61
  %v263 = vunpack.c.h.b16 %v61
  %v264 = vunpack.c.l.b16 %v62
  %v265 = vunpack.c.h.b16 %v62
  %v266 = vunpack.c.l.b16 %v63
  %v267 = vunpack.c.h.b16 %v63
  %v268 = vunpack.c.l.b16 %v64
  %v269 = vunpack.c.h.b16 %v64
  %v270 = vunpack.c.l.b16 %v65
  %v271 = vunpack.c.h.b16 %v65
  %v272 = vunpack.c.l.b16 %v66
  %v273 = vunpack.c.h.b16 %v66
  %v274 = vunpack.c.l.b16 %v67
  %v275 = vunpack.c.h.b16 %v67
  %v276 = vunpack.c.l.b16 %v68
  %v277 = vunpack.c.h.b16 %v68
  %v278 = vunpack.c.l.b16 %v69
  %v279 = vunpack.c.h.b16 %v69
  %v280 = vunpack.c.l.b16 %v70
  %v281 = vunpack.c.h.b16 %v70
  %v282 = vunpack.c.l.b16 %v71
  %v283 = vunpack.c.h.b16 %v71
  %v284 = vunpack.c.l.b16 %v72
  %v285 = vunpack.c.h.b16 %v72
  %v286 = vunpack.c.l.b16 %v73
  %v287 = vunpack.c.h.b16 %v73
  %v288 = vunpack.c.l.b16 %v74
  %v289 = vunpack.c.h.b16 %v74
  %v290 = vunpack.c.l.b16 %v75
  %v291 = vunpack.c.h.b16 %v75
  %v292 = vunpack.c.l.b16 %v76
  %v293 = vunpack.c.h.b16 %v76
  %v294 = vunpack.c.l.b16 %v77
  %v295 = vunpack.c.h.b16 %v77
  %v296 = vunpack.c.l.b16 %v78
  %v297 = vunpack.c.h.b16 %v78
  %v298 = vpack.c.b16 %v172, %v170
  %v299 = vpack.c.b16 %v173, %v171
  %v300 = vpack.c.b16 %v176, %v174
  %v301 = vpack.c.b16 %v177, %v175
  %v302 = vpack.c.b16 %v180, %v178
  %v303 = vpack.c.b16 %v181, %v179
  %v304 = vpack.c.b16 %v184, %v182
  %v305 = vpack.c.b16 %v185, %v183
  %v306 = vpack.c.b16 %v188, %v186
  %v307 = vpack.c.b16 %v189, %v187
  %v308 = vpack.c.b16 %v192, %v190
  %v309 = vpack.c.b16 %v193, %v191
  %v310 = vpack.c.b16 %v196, %v194
  %v311 = vpack.c.b16 %v197, %v195
  %v312 = vpack.c.b16 %v200, %v198
  %v313 = vpack.c.b16 %v201, %v199
  %v314 = vpack.c.b16 %v204, %v202
  %v315 = vpack.c.b16 %v205, %v203
  %v316 = vpack.c.b16 %v208, %v206
  %v317 = vpack.c.b16 %v209, %v207
  %v318 = vpack.c.b16 %v212, %v210
  %v319 = vpack.c.b16 %v213, %v211
  %v320 = vpack.c.b16 %v216, %v214
  %v321 = vpack.c.b16 %v217, %v215
  %v322 = vpack.c.b16 %v220, %v218
  %v323 = vpack.c.b16 %v221, %v219
  %v324 = vpack.c.b16 %v224, %v222
  %v325 = vpack.c.b16 %v225, %v223
  %v326 = vpack.c.b16 %v228, %v226
  %v327 = vpack.c.b16 %v229, %v227
  %v328 = vpack.c.b16 %v232, %v230
  %v329 = vpack.c.b16 %v233, %v231
  %v330 = vpack.c.b16 %v236, %v234
  %v331 = vpack.c.b16 %v237, %v235
  %v332 = vpack.c.b16 %v240, %v238
  %v333 = vpack.c.b16 %v241, %v239
  %v334 = vpack.c.b16 %v244, %v242
  %v335 = vpack.c.b16 %v245, %v243
  %v336 = vpack.c.b16 %v248, %v246
  %v337 = vpack.c.b16 %v249, %v247
  %v338 = vpack.c.b16 %v252, %v250
  %v339 = vpack.c.b16 %v253, %v251
  %v340 = vpack.c.b16 %v256, %v254
  %v341 = vpack.c.b16 %v257, %v255
  %v342 = vpack.c.b16 %v260, %v258
  %v343 = vpack.c.b16 %v261, %v259
  %v344 = vpack.c.b16 %v264, %v262
  %v345 = vpack.c.b16 %v265, %v263
  %v346 = vpack.c.b16 %v268, %v266
  %v347 = vpack.c.b16 %v269, %v267
  %v348 = vpack.c.b16 %v272, %v270
  %v349 = vpack.c.b16 %v273, %v271
  %v350 = vpack.c.b16 %v276, %v274
  %v351 = vpack.c.b16 %v277, %v275
  %v352 = vpack.c.b16 %v280, %v278
  %v353 = vpack.c.b16 %v281, %v279
  %v354 = vpack.c.b16 %v284, %v282
  %v355 = vpack.c.b16 %v285, %v283
  %v356 = vpack.c.b16 %v288, %v286
  %v357 = vpack.c.b16 %v289, %v287
  %v358 = vpack.c.b16 %v292, %v290
  %v359 = vpack.c.b16 %v293, %v291
  %v360 = vpack.c.b16 %v296, %v294
  %v361 = vpack.c.b16 %v297, %v295
  %v414 = vunpack.c.l.b16 %v79
  %v415 = vunpack.c.l.b16 %v80
  %v416 = vunpack.c.l.b16 %v81
  %v417 = vunpack.c.l.b16 %v82
  %v418 = vunpack.c.l.b16 %v83
  %v419 = vunpack.c.l.b16 %v84
  %v420 = vunpack.c.l.b16 %v85
  %v421 = vunpack.c.l.b16 %v86
  %v422 = vunpack.c.l.b16 %v87
  %v423 = vunpack.c.l.b16 %v88
  %v424 = vunpack.c.l.b16 %v89
  %v425 = vunpack.c.l.b16 %v90
  %v426 = vunpack.c.l.b16 %v91
  %v427 = vunpack.c.l.b16 %v92
  %v428 = vunpack.c.l.b16 %v93
  %v429 = vunpack.c.l.b16 %v94
  %v430 = vunpack.c.l.b16 %v95
  %v431 = vunpack.c.l.b16 %v96
  %v432 = vunpack.c.l.b16 %v97
  %v433 = vunpack.c.l.b16 %v98
  %v434 = vpack.c.b16 %v415, %v414
  %v435 = vpack.c.b16 %v417, %v416
  %v436 = vpack.c.b16 %v419, %v418
  %v437 = vpack.c.b16 %v421, %v420
  %v438 = vpack.c.b16 %v423, %v422
  %v439 = vpack.c.b16 %v425, %v424
  %v440 = vpack.c.b16 %v427, %v426
  %v441 = vpack.c.b16 %v429, %v428
  %v442 = vpack.c.b16 %v431, %v430
  %v443 = vpack.c.b16 %v433, %v432
  %vm454 = vcmask 261120
  %v456 = vsel %vm454, %v299, 0
  %v459 = vsel %vm454, %v301, 0
  %v462 = vsel %vm454, %v303, 0
  %v465 = vsel %vm454, %v305, 0
  %v468 = vsel %vm454, %v307, 0
  %v471 = vsel %vm454, %v309, 0
  %v474 = vsel %vm454, %v311, 0
  %v477 = vsel %vm454, %v313, 0
  %v480 = vsel %vm454, %v315, 0
  %v483 = vsel %vm454, %v317, 0
  %v486 = vsel %vm454, %v319, 0
  %v489 = vsel %vm454, %v321, 0
  %v492 = vsel %vm454, %v323, 0
  %v495 = vsel %vm454, %v325, 0
  %v498 = vsel %vm454, %v327, 0
  %v501 = vsel %vm454, %v329, 0
  %v504 = vsel %vm454, %v331, 0
  %v507 = vsel %vm454, %v333, 0
  %v510 = vsel %vm454, %v335, 0
  %v513 = vsel %vm454, %v337, 0
  %v516 = vsel %vm454, %v339, 0
  %v519 = vsel %vm454, %v341, 0
  %v522 = vsel %vm454, %v343, 0
  %v525 = vsel %vm454, %v345, 0
  %v528 = vsel %vm454, %v347, 0
  %v531 = vsel %vm454, %v349, 0
  %v534 = vsel %vm454, %v351, 0
  %v537 = vsel %vm454, %v353, 0
  %v540 = vsel %vm454, %v355, 0
  %v543 = vsel %vm454, %v357, 0
  %v546 = vsel %vm454, %v359, 0
  %v549 = vsel %vm454, %v361, 0
  %551 = vmatprep.subr.bf16.mxu0 0
  %552 = vmatpush1.bf16.msra.mxu0 %v434
  %553 = vmatprep.subr.bf16.mxu0 0
  %554 = vmatpush1.bf16.msra.mxu0 %v435
  %555 = vmatprep.subr.bf16.mxu0 0
  %556 = vmatpush1.bf16.msra.mxu0 %v436
  %557 = vmatprep.subr.bf16.mxu0 0
  %558 = vmatpush1.bf16.msra.mxu0 %v437
  %559 = vmatprep.subr.bf16.mxu0 0
  %560 = vmatpush1.bf16.msra.mxu0 %v438
  %561 = vmatprep.subr.bf16.mxu0 0
  %562 = vmatpush1.bf16.msra.mxu0 %v439
  %563 = vmatprep.subr.bf16.mxu0 0
  %564 = vmatpush1.bf16.msra.mxu0 %v440
  %565 = vmatprep.subr.bf16.mxu0 0
  %566 = vmatpush1.bf16.msra.mxu0 %v441
  %567 = vmatprep.subr.bf16.mxu0 0
  %568 = vmatpush1.bf16.msra.mxu0 %v442
  %569 = vmatprep.subr.bf16.mxu0 0
  %570 = vmatpush1.bf16.msra.mxu0 %v443
  %571 = vmatprep.subr.bf16.mxu0 0
  %572 = vmatpush1.bf16.msra.mxu0 0
  %573 = vmatprep.subr.bf16.mxu0 0
  %574 = vmatpush1.bf16.msra.mxu0 0
  %575 = vmatprep.subr.bf16.mxu0 0
  %576 = vmatpush1.bf16.msra.mxu0 0
  %577 = vmatprep.subr.bf16.mxu0 0
  %578 = vmatpush1.bf16.msra.mxu0 0
  %579 = vmatprep.subr.bf16.mxu0 0
  %580 = vmatpush1.bf16.msra.mxu0 0
  %581 = vmatprep.subr.bf16.mxu0 0
  %582 = vmatpush1.bf16.msra.mxu0 0
  %583 = vmatprep.mubr.bf16.mxu0 %v456
  %584 = vmatmul.mubr.bf16.gmra.mrb[0].mxu0 %v298
  %v585 = vpop.f32.mrb[0].mxu0
  %v586 = vadd.f32 %v104, %v585
  %v587 = vpop.f32.mrb[0].mxu0
  %v588 = vpop.f32.mrb[0].mxu0
  %v589 = vadd.f32 %v104, %v588
  %v590 = vpop.f32.mrb[0].mxu0
  %591 = vmatprep.mubr.bf16.mxu0 %v459
  %592 = vmatmul.mubr.bf16.gmra.mrb[0].mxu0 %v300
  %v593 = vpop.f32.mrb[0].mxu0
  %v594 = vadd.f32 %v104, %v593
  %v595 = vpop.f32.mrb[0].mxu0
  %v596 = vpop.f32.mrb[0].mxu0
  %v597 = vadd.f32 %v104, %v596
  %v598 = vpop.f32.mrb[0].mxu0
  %599 = vmatprep.mubr.bf16.mxu0 %v462
  %600 = vmatmul.mubr.bf16.gmra.mrb[0].mxu0 %v302
  %v601 = vpop.f32.mrb[0].mxu0
  %v602 = vadd.f32 %v104, %v601
  %v603 = vpop.f32.mrb[0].mxu0
  %v604 = vpop.f32.mrb[0].mxu0
  %v605 = vadd.f32 %v104, %v604
  %v606 = vpop.f32.mrb[0].mxu0
  %607 = vmatprep.mubr.bf16.mxu0 %v465
  %608 = vmatmul.mubr.bf16.gmra.mrb[0].mxu0 %v304
  %v609 = vpop.f32.mrb[0].mxu0
  %v610 = vadd.f32 %v104, %v609
  %v611 = vpop.f32.mrb[0].mxu0
  %v612 = vpop.f32.mrb[0].mxu0
  %v613 = vadd.f32 %v104, %v612
  %v614 = vpop.f32.mrb[0].mxu0
  %615 = vmatprep.mubr.bf16.mxu0 %v468
  %616 = vmatmul.mubr.bf16.gmra.mrb[0].mxu0 %v306
  %v617 = vpop.f32.mrb[0].mxu0
  %v618 = vadd.f32 %v104, %v617
  %v619 = vpop.f32.mrb[0].mxu0
  %v620 = vpop.f32.mrb[0].mxu0
  %v621 = vadd.f32 %v104, %v620
  %v622 = vpop.f32.mrb[0].mxu0
  %623 = vmatprep.mubr.bf16.mxu0 %v471
  %624 = vmatmul.mubr.bf16.gmra.mrb[0].mxu0 %v308
  %v625 = vpop.f32.mrb[0].mxu0
  %v626 = vadd.f32 %v104, %v625
  %v627 = vpop.f32.mrb[0].mxu0
  %v628 = vpop.f32.mrb[0].mxu0
  %v629 = vadd.f32 %v104, %v628
  %v630 = vpop.f32.mrb[0].mxu0
  %631 = vmatprep.mubr.bf16.mxu0 %v474
  %632 = vmatmul.mubr.bf16.gmra.mrb[0].mxu0 %v310
  %v633 = vpop.f32.mrb[0].mxu0
  %v634 = vadd.f32 %v104, %v633
  %v635 = vpop.f32.mrb[0].mxu0
  %v636 = vpop.f32.mrb[0].mxu0
  %v637 = vadd.f32 %v104, %v636
  %v638 = vpop.f32.mrb[0].mxu0
  %639 = vmatprep.mubr.bf16.mxu0 %v477
  %640 = vmatmul.mubr.bf16.gmra.mrb[0].mxu0 %v312
  %v641 = vpop.f32.mrb[0].mxu0
  %v642 = vadd.f32 %v104, %v641
  %v643 = vpop.f32.mrb[0].mxu0
  %v644 = vpop.f32.mrb[0].mxu0
  %v645 = vadd.f32 %v104, %v644
  %v646 = vpop.f32.mrb[0].mxu0
  %647 = vmatprep.mubr.bf16.mxu0 %v480
  %648 = vmatmul.mubr.bf16.gmra.mrb[0].mxu0 %v314
  %v649 = vpop.f32.mrb[0].mxu0
  %v650 = vadd.f32 %v104, %v649
  %v651 = vpop.f32.mrb[0].mxu0
  %v652 = vpop.f32.mrb[0].mxu0
  %v653 = vadd.f32 %v104, %v652
  %v654 = vpop.f32.mrb[0].mxu0
  %655 = vmatprep.mubr.bf16.mxu0 %v483
  %656 = vmatmul.mubr.bf16.gmra.mrb[0].mxu0 %v316
  %v657 = vpop.f32.mrb[0].mxu0
  %v658 = vadd.f32 %v104, %v657
  %v659 = vpop.f32.mrb[0].mxu0
  %v660 = vpop.f32.mrb[0].mxu0
  %v661 = vadd.f32 %v104, %v660
  %v662 = vpop.f32.mrb[0].mxu0
  %663 = vmatprep.mubr.bf16.mxu0 %v486
  %664 = vmatmul.mubr.bf16.gmra.mrb[0].mxu0 %v318
  %v665 = vpop.f32.mrb[0].mxu0
  %v666 = vadd.f32 %v104, %v665
  %v667 = vpop.f32.mrb[0].mxu0
  %v668 = vpop.f32.mrb[0].mxu0
  %v669 = vadd.f32 %v104, %v668
  %v670 = vpop.f32.mrb[0].mxu0
  %671 = vmatprep.mubr.bf16.mxu0 %v489
  %672 = vmatmul.mubr.bf16.gmra.mrb[0].mxu0 %v320
  %v673 = vpop.f32.mrb[0].mxu0
  %v674 = vadd.f32 %v104, %v673
  %v675 = vpop.f32.mrb[0].mxu0
  %v676 = vpop.f32.mrb[0].mxu0
  %v677 = vadd.f32 %v104, %v676
  %v678 = vpop.f32.mrb[0].mxu0
  %679 = vmatprep.mubr.bf16.mxu0 %v492
  %680 = vmatmul.mubr.bf16.gmra.mrb[0].mxu0 %v322
  %v681 = vpop.f32.mrb[0].mxu0
  %v682 = vadd.f32 %v104, %v681
  %v683 = vpop.f32.mrb[0].mxu0
  %v684 = vpop.f32.mrb[0].mxu0
  %v685 = vadd.f32 %v104, %v684
  %v686 = vpop.f32.mrb[0].mxu0
  %687 = vmatprep.mubr.bf16.mxu0 %v495
  %688 = vmatmul.mubr.bf16.gmra.mrb[0].mxu0 %v324
  %v689 = vpop.f32.mrb[0].mxu0
  %v690 = vadd.f32 %v104, %v689
  %v691 = vpop.f32.mrb[0].mxu0
  %v692 = vpop.f32.mrb[0].mxu0
  %v693 = vadd.f32 %v104, %v692
  %v694 = vpop.f32.mrb[0].mxu0
  %695 = vmatprep.mubr.bf16.mxu0 %v498
  %696 = vmatmul.mubr.bf16.gmra.mrb[0].mxu0 %v326
  %v697 = vpop.f32.mrb[0].mxu0
  %v698 = vadd.f32 %v104, %v697
  %v699 = vpop.f32.mrb[0].mxu0
  %v700 = vpop.f32.mrb[0].mxu0
  %v701 = vadd.f32 %v104, %v700
  %v702 = vpop.f32.mrb[0].mxu0
  %703 = vmatprep.mubr.bf16.mxu0 %v501
  %704 = vmatmul.mubr.bf16.gmra.mrb[0].mxu0 %v328
  %v705 = vpop.f32.mrb[0].mxu0
  %v706 = vadd.f32 %v104, %v705
  %v707 = vpop.f32.mrb[0].mxu0
  %v708 = vpop.f32.mrb[0].mxu0
  %v709 = vadd.f32 %v104, %v708
  %v710 = vpop.f32.mrb[0].mxu0
  %711 = vmatprep.mubr.bf16.mxu0 %v504
  %712 = vmatmul.mubr.bf16.gmra.mrb[0].mxu0 %v330
  %v713 = vpop.f32.mrb[0].mxu0
  %v714 = vadd.f32 %v104, %v713
  %v715 = vpop.f32.mrb[0].mxu0
  %v716 = vpop.f32.mrb[0].mxu0
  %v717 = vadd.f32 %v104, %v716
  %v718 = vpop.f32.mrb[0].mxu0
  %719 = vmatprep.mubr.bf16.mxu0 %v507
  %720 = vmatmul.mubr.bf16.gmra.mrb[0].mxu0 %v332
  %v721 = vpop.f32.mrb[0].mxu0
  %v722 = vadd.f32 %v104, %v721
  %v723 = vpop.f32.mrb[0].mxu0
  %v724 = vpop.f32.mrb[0].mxu0
  %v725 = vadd.f32 %v104, %v724
  %v726 = vpop.f32.mrb[0].mxu0
  %727 = vmatprep.mubr.bf16.mxu0 %v510
  %728 = vmatmul.mubr.bf16.gmra.mrb[0].mxu0 %v334
  %v729 = vpop.f32.mrb[0].mxu0
  %v730 = vadd.f32 %v104, %v729
  %v731 = vpop.f32.mrb[0].mxu0
  %v732 = vpop.f32.mrb[0].mxu0
  %v733 = vadd.f32 %v104, %v732
  %v734 = vpop.f32.mrb[0].mxu0
  %735 = vmatprep.mubr.bf16.mxu0 %v513
  %736 = vmatmul.mubr.bf16.gmra.mrb[0].mxu0 %v336
  %v737 = vpop.f32.mrb[0].mxu0
  %v738 = vadd.f32 %v104, %v737
  %v739 = vpop.f32.mrb[0].mxu0
  %v740 = vpop.f32.mrb[0].mxu0
  %v741 = vadd.f32 %v104, %v740
  %v742 = vpop.f32.mrb[0].mxu0
  %743 = vmatprep.mubr.bf16.mxu0 %v516
  %744 = vmatmul.mubr.bf16.gmra.mrb[0].mxu0 %v338
  %v745 = vpop.f32.mrb[0].mxu0
  %v746 = vadd.f32 %v104, %v745
  %v747 = vpop.f32.mrb[0].mxu0
  %v748 = vpop.f32.mrb[0].mxu0
  %v749 = vadd.f32 %v104, %v748
  %v750 = vpop.f32.mrb[0].mxu0
  %751 = vmatprep.mubr.bf16.mxu0 %v519
  %752 = vmatmul.mubr.bf16.gmra.mrb[0].mxu0 %v340
  %v753 = vpop.f32.mrb[0].mxu0
  %v754 = vadd.f32 %v104, %v753
  %v755 = vpop.f32.mrb[0].mxu0
  %v756 = vpop.f32.mrb[0].mxu0
  %v757 = vadd.f32 %v104, %v756
  %v758 = vpop.f32.mrb[0].mxu0
  %759 = vmatprep.mubr.bf16.mxu0 %v522
  %760 = vmatmul.mubr.bf16.gmra.mrb[0].mxu0 %v342
  %v761 = vpop.f32.mrb[0].mxu0
  %v762 = vadd.f32 %v104, %v761
  %v763 = vpop.f32.mrb[0].mxu0
  %v764 = vpop.f32.mrb[0].mxu0
  %v765 = vadd.f32 %v104, %v764
  %v766 = vpop.f32.mrb[0].mxu0
  %767 = vmatprep.mubr.bf16.mxu0 %v525
  %768 = vmatmul.mubr.bf16.gmra.mrb[0].mxu0 %v344
  %v769 = vpop.f32.mrb[0].mxu0
  %v770 = vadd.f32 %v104, %v769
  %v771 = vpop.f32.mrb[0].mxu0
  %v772 = vpop.f32.mrb[0].mxu0
  %v773 = vadd.f32 %v104, %v772
  %v774 = vpop.f32.mrb[0].mxu0
  %775 = vmatprep.mubr.bf16.mxu0 %v528
  %776 = vmatmul.mubr.bf16.gmra.mrb[0].mxu0 %v346
  %v777 = vpop.f32.mrb[0].mxu0
  %v778 = vadd.f32 %v104, %v777
  %v779 = vpop.f32.mrb[0].mxu0
  %v780 = vpop.f32.mrb[0].mxu0
  %v781 = vadd.f32 %v104, %v780
  %v782 = vpop.f32.mrb[0].mxu0
  %783 = vmatprep.mubr.bf16.mxu0 %v531
  %784 = vmatmul.mubr.bf16.gmra.mrb[0].mxu0 %v348
  %v785 = vpop.f32.mrb[0].mxu0
  %v786 = vadd.f32 %v104, %v785
  %v787 = vpop.f32.mrb[0].mxu0
  %v788 = vpop.f32.mrb[0].mxu0
  %v789 = vadd.f32 %v104, %v788
  %v790 = vpop.f32.mrb[0].mxu0
  %791 = vmatprep.mubr.bf16.mxu0 %v534
  %792 = vmatmul.mubr.bf16.gmra.mrb[0].mxu0 %v350
  %v793 = vpop.f32.mrb[0].mxu0
  %v794 = vadd.f32 %v104, %v793
  %v795 = vpop.f32.mrb[0].mxu0
  %v796 = vpop.f32.mrb[0].mxu0
  %v797 = vadd.f32 %v104, %v796
  %v798 = vpop.f32.mrb[0].mxu0
  %799 = vmatprep.mubr.bf16.mxu0 %v537
  %800 = vmatmul.mubr.bf16.gmra.mrb[0].mxu0 %v352
  %v801 = vpop.f32.mrb[0].mxu0
  %v802 = vadd.f32 %v104, %v801
  %v803 = vpop.f32.mrb[0].mxu0
  %v804 = vpop.f32.mrb[0].mxu0
  %v805 = vadd.f32 %v104, %v804
  %v806 = vpop.f32.mrb[0].mxu0
  %807 = vmatprep.mubr.bf16.mxu0 %v540
  %808 = vmatmul.mubr.bf16.gmra.mrb[0].mxu0 %v354
  %v809 = vpop.f32.mrb[0].mxu0
  %v810 = vadd.f32 %v104, %v809
  %v811 = vpop.f32.mrb[0].mxu0
  %v812 = vpop.f32.mrb[0].mxu0
  %v813 = vadd.f32 %v104, %v812
  %v814 = vpop.f32.mrb[0].mxu0
  %815 = vmatprep.mubr.bf16.mxu0 %v543
  %816 = vmatmul.mubr.bf16.gmra.mrb[0].mxu0 %v356
  %v817 = vpop.f32.mrb[0].mxu0
  %v818 = vadd.f32 %v104, %v817
  %v819 = vpop.f32.mrb[0].mxu0
  %v820 = vpop.f32.mrb[0].mxu0
  %v821 = vadd.f32 %v104, %v820
  %v822 = vpop.f32.mrb[0].mxu0
  %823 = vmatprep.mubr.bf16.mxu0 %v546
  %824 = vmatmul.mubr.bf16.gmra.mrb[0].mxu0 %v358
  %v825 = vpop.f32.mrb[0].mxu0
  %v826 = vadd.f32 %v104, %v825
  %v827 = vpop.f32.mrb[0].mxu0
  %v828 = vpop.f32.mrb[0].mxu0
  %v829 = vadd.f32 %v104, %v828
  %v830 = vpop.f32.mrb[0].mxu0
  %831 = vmatprep.mubr.bf16.mxu0 %v549
  %832 = vmatmul.mubr.bf16.gmra.mrb[0].mxu0 %v360
  %v833 = vpop.f32.mrb[0].mxu0
  %v834 = vadd.f32 %v104, %v833
  %v835 = vpop.f32.mrb[0].mxu0
  %v836 = vpop.f32.mrb[0].mxu0
  %v837 = vadd.f32 %v104, %v836
  %v838 = vpop.f32.mrb[0].mxu0
  %839 = vdwg.mxu0
  %v840 = vmax.f32 %v586, 0.0
  %v841 = vmax.f32 %v589, 0.0
  %v842 = vmax.f32 %v594, 0.0
  %v843 = vmax.f32 %v597, 0.0
  %v844 = vmax.f32 %v602, 0.0
  %v845 = vmax.f32 %v605, 0.0
  %v846 = vmax.f32 %v610, 0.0
  %v847 = vmax.f32 %v613, 0.0
  %v848 = vmax.f32 %v618, 0.0
  %v849 = vmax.f32 %v621, 0.0
  %v850 = vmax.f32 %v626, 0.0
  %v851 = vmax.f32 %v629, 0.0
  %v852 = vmax.f32 %v634, 0.0
  %v853 = vmax.f32 %v637, 0.0
  %v854 = vmax.f32 %v642, 0.0
  %v855 = vmax.f32 %v645, 0.0
  %v856 = vmax.f32 %v650, 0.0
  %v857 = vmax.f32 %v653, 0.0
  %v858 = vmax.f32 %v658, 0.0
  %v859 = vmax.f32 %v661, 0.0
  %v860 = vmax.f32 %v666, 0.0
  %v861 = vmax.f32 %v669, 0.0
  %v862 = vmax.f32 %v674, 0.0
  %v863 = vmax.f32 %v677, 0.0
  %v864 = vmax.f32 %v682, 0.0
  %v865 = vmax.f32 %v685, 0.0
  %v866 = vmax.f32 %v690, 0.0
  %v867 = vmax.f32 %v693, 0.0
  %v868 = vmax.f32 %v698, 0.0
  %v869 = vmax.f32 %v701, 0.0
  %v870 = vmax.f32 %v706, 0.0
  %v871 = vmax.f32 %v709, 0.0
  %v872 = vmax.f32 %v714, 0.0
  %v873 = vmax.f32 %v717, 0.0
  %v874 = vmax.f32 %v722, 0.0
  %v875 = vmax.f32 %v725, 0.0
  %v876 = vmax.f32 %v730, 0.0
  %v877 = vmax.f32 %v733, 0.0
  %v878 = vmax.f32 %v738, 0.0
  %v879 = vmax.f32 %v741, 0.0
  %v880 = vmax.f32 %v746, 0.0
  %v881 = vmax.f32 %v749, 0.0
  %v882 = vmax.f32 %v754, 0.0
  %v883 = vmax.f32 %v757, 0.0
  %v884 = vmax.f32 %v762, 0.0
  %v885 = vmax.f32 %v765, 0.0
  %v886 = vmax.f32 %v770, 0.0
  %v887 = vmax.f32 %v773, 0.0
  %v888 = vmax.f32 %v778, 0.0
  %v889 = vmax.f32 %v781, 0.0
  %v890 = vmax.f32 %v786, 0.0
  %v891 = vmax.f32 %v789, 0.0
  %v892 = vmax.f32 %v794, 0.0
  %v893 = vmax.f32 %v797, 0.0
  %v894 = vmax.f32 %v802, 0.0
  %v895 = vmax.f32 %v805, 0.0
  %v896 = vmax.f32 %v810, 0.0
  %v897 = vmax.f32 %v813, 0.0
  %v898 = vmax.f32 %v818, 0.0
  %v899 = vmax.f32 %v821, 0.0
  %v900 = vmax.f32 %v826, 0.0
  %v901 = vmax.f32 %v829, 0.0
  %v902 = vmax.f32 %v834, 0.0
  %v903 = vmax.f32 %v837, 0.0
  %v904 = vpack.c.bf16 %v841, %v840
  %v905 = vpack.c.bf16 %v843, %v842
  %v906 = vpack.c.bf16 %v845, %v844
  %v907 = vpack.c.bf16 %v847, %v846
  %v908 = vpack.c.bf16 %v849, %v848
  %v909 = vpack.c.bf16 %v851, %v850
  %v910 = vpack.c.bf16 %v853, %v852
  %v911 = vpack.c.bf16 %v855, %v854
  %v912 = vpack.c.bf16 %v857, %v856
  %v913 = vpack.c.bf16 %v859, %v858
  %v914 = vpack.c.bf16 %v861, %v860
  %v915 = vpack.c.bf16 %v863, %v862
  %v916 = vpack.c.bf16 %v865, %v864
  %v917 = vpack.c.bf16 %v867, %v866
  %v918 = vpack.c.bf16 %v869, %v868
  %v919 = vpack.c.bf16 %v871, %v870
  %v920 = vpack.c.bf16 %v873, %v872
  %v921 = vpack.c.bf16 %v875, %v874
  %v922 = vpack.c.bf16 %v877, %v876
  %v923 = vpack.c.bf16 %v879, %v878
  %v924 = vpack.c.bf16 %v881, %v880
  %v925 = vpack.c.bf16 %v883, %v882
  %v926 = vpack.c.bf16 %v885, %v884
  %v927 = vpack.c.bf16 %v887, %v886
  %v928 = vpack.c.bf16 %v889, %v888
  %v929 = vpack.c.bf16 %v891, %v890
  %v930 = vpack.c.bf16 %v893, %v892
  %v931 = vpack.c.bf16 %v895, %v894
  %v932 = vpack.c.bf16 %v897, %v896
  %v933 = vpack.c.bf16 %v899, %v898
  %v934 = vpack.c.bf16 %v901, %v900
  %v935 = vpack.c.bf16 %v903, %v902
  %v968 = vunpack.c.l.b16 %v904
  %v969 = vunpack.c.h.b16 %v904
  %v970 = vunpack.c.l.b16 %v905
  %v971 = vunpack.c.h.b16 %v905
  %v972 = vunpack.c.l.b16 %v906
  %v973 = vunpack.c.h.b16 %v906
  %v974 = vunpack.c.l.b16 %v907
  %v975 = vunpack.c.h.b16 %v907
  %v976 = vunpack.c.l.b16 %v908
  %v977 = vunpack.c.h.b16 %v908
  %v978 = vunpack.c.l.b16 %v909
  %v979 = vunpack.c.h.b16 %v909
  %v980 = vunpack.c.l.b16 %v910
  %v981 = vunpack.c.h.b16 %v910
  %v982 = vunpack.c.l.b16 %v911
  %v983 = vunpack.c.h.b16 %v911
  %v984 = vunpack.c.l.b16 %v912
  %v985 = vunpack.c.h.b16 %v912
  %v986 = vunpack.c.l.b16 %v913
  %v987 = vunpack.c.h.b16 %v913
  %v988 = vunpack.c.l.b16 %v914
  %v989 = vunpack.c.h.b16 %v914
  %v990 = vunpack.c.l.b16 %v915
  %v991 = vunpack.c.h.b16 %v915
  %v992 = vunpack.c.l.b16 %v916
  %v993 = vunpack.c.h.b16 %v916
  %v994 = vunpack.c.l.b16 %v917
  %v995 = vunpack.c.h.b16 %v917
  %v996 = vunpack.c.l.b16 %v918
  %v997 = vunpack.c.h.b16 %v918
  %v998 = vunpack.c.l.b16 %v919
  %v999 = vunpack.c.h.b16 %v919
  %v1000 = vunpack.c.l.b16 %v920
  %v1001 = vunpack.c.h.b16 %v920
  %v1002 = vunpack.c.l.b16 %v921
  %v1003 = vunpack.c.h.b16 %v921
  %v1004 = vunpack.c.l.b16 %v922
  %v1005 = vunpack.c.h.b16 %v922
  %v1006 = vunpack.c.l.b16 %v923
  %v1007 = vunpack.c.h.b16 %v923
  %v1008 = vunpack.c.l.b16 %v924
  %v1009 = vunpack.c.h.b16 %v924
  %v1010 = vunpack.c.l.b16 %v925
  %v1011 = vunpack.c.h.b16 %v925
  %v1012 = vunpack.c.l.b16 %v926
  %v1013 = vunpack.c.h.b16 %v926
  %v1014 = vunpack.c.l.b16 %v927
  %v1015 = vunpack.c.h.b16 %v927
  %v1016 = vunpack.c.l.b16 %v928
  %v1017 = vunpack.c.h.b16 %v928
  %v1018 = vunpack.c.l.b16 %v929
  %v1019 = vunpack.c.h.b16 %v929
  %v1020 = vunpack.c.l.b16 %v930
  %v1021 = vunpack.c.h.b16 %v930
  %v1022 = vunpack.c.l.b16 %v931
  %v1023 = vunpack.c.h.b16 %v931
  %v1024 = vunpack.c.l.b16 %v932
  %v1025 = vunpack.c.h.b16 %v932
  %v1026 = vunpack.c.l.b16 %v933
  %v1027 = vunpack.c.h.b16 %v933
  %v1028 = vunpack.c.l.b16 %v934
  %v1029 = vunpack.c.h.b16 %v934
  %v1030 = vunpack.c.l.b16 %v935
  %v1031 = vunpack.c.h.b16 %v935
  %v1032 = vpack.c.b16 %v968, %v968
  %v1033 = vpack.c.b16 %v969, %v969
  %v1034 = vpack.c.b16 %v970, %v970
  %v1035 = vpack.c.b16 %v971, %v971
  %v1036 = vpack.c.b16 %v972, %v972
  %v1037 = vpack.c.b16 %v973, %v973
  %v1038 = vpack.c.b16 %v974, %v974
  %v1039 = vpack.c.b16 %v975, %v975
  %v1040 = vpack.c.b16 %v976, %v976
  %v1041 = vpack.c.b16 %v977, %v977
  %v1042 = vpack.c.b16 %v978, %v978
  %v1043 = vpack.c.b16 %v979, %v979
  %v1044 = vpack.c.b16 %v980, %v980
  %v1045 = vpack.c.b16 %v981, %v981
  %v1046 = vpack.c.b16 %v982, %v982
  %v1047 = vpack.c.b16 %v983, %v983
  %v1048 = vpack.c.b16 %v984, %v984
  %v1049 = vpack.c.b16 %v985, %v985
  %v1050 = vpack.c.b16 %v986, %v986
  %v1051 = vpack.c.b16 %v987, %v987
  %v1052 = vpack.c.b16 %v988, %v988
  %v1053 = vpack.c.b16 %v989, %v989
  %v1054 = vpack.c.b16 %v990, %v990
  %v1055 = vpack.c.b16 %v991, %v991
  %v1056 = vpack.c.b16 %v992, %v992
  %v1057 = vpack.c.b16 %v993, %v993
  %v1058 = vpack.c.b16 %v994, %v994
  %v1059 = vpack.c.b16 %v995, %v995
  %v1060 = vpack.c.b16 %v996, %v996
  %v1061 = vpack.c.b16 %v997, %v997
  %v1062 = vpack.c.b16 %v998, %v998
  %v1063 = vpack.c.b16 %v999, %v999
  %v1064 = vpack.c.b16 %v1000, %v1000
  %v1065 = vpack.c.b16 %v1001, %v1001
  %v1066 = vpack.c.b16 %v1002, %v1002
  %v1067 = vpack.c.b16 %v1003, %v1003
  %v1068 = vpack.c.b16 %v1004, %v1004
  %v1069 = vpack.c.b16 %v1005, %v1005
  %v1070 = vpack.c.b16 %v1006, %v1006
  %v1071 = vpack.c.b16 %v1007, %v1007
  %v1072 = vpack.c.b16 %v1008, %v1008
  %v1073 = vpack.c.b16 %v1009, %v1009
  %v1074 = vpack.c.b16 %v1010, %v1010
  %v1075 = vpack.c.b16 %v1011, %v1011
  %v1076 = vpack.c.b16 %v1012, %v1012
  %v1077 = vpack.c.b16 %v1013, %v1013
  %v1078 = vpack.c.b16 %v1014, %v1014
  %v1079 = vpack.c.b16 %v1015, %v1015
  %v1080 = vpack.c.b16 %v1016, %v1016
  %v1081 = vpack.c.b16 %v1017, %v1017
  %v1082 = vpack.c.b16 %v1018, %v1018
  %v1083 = vpack.c.b16 %v1019, %v1019
  %v1084 = vpack.c.b16 %v1020, %v1020
  %v1085 = vpack.c.b16 %v1021, %v1021
  %v1086 = vpack.c.b16 %v1022, %v1022
  %v1087 = vpack.c.b16 %v1023, %v1023
  %v1088 = vpack.c.b16 %v1024, %v1024
  %v1089 = vpack.c.b16 %v1025, %v1025
  %v1090 = vpack.c.b16 %v1026, %v1026
  %v1091 = vpack.c.b16 %v1027, %v1027
  %v1092 = vpack.c.b16 %v1028, %v1028
  %v1093 = vpack.c.b16 %v1029, %v1029
  %v1094 = vpack.c.b16 %v1030, %v1030
  %v1095 = vpack.c.b16 %v1031, %v1031
  %vm1160 = vcmask 60416
  %1161 = vst.msk [vmem:[%s3] sm:$0xf] %vm1160, %v1032
  %1162 = vst.msk [vmem:[%s3 + $0x4] sm:$0xf] %vm1160, %v1033
  %1163 = vst.msk [vmem:[%s3 + $0x8] sm:$0xf] %vm1160, %v1034
  %1164 = vst.msk [vmem:[%s3 + $0xc] sm:$0xf] %vm1160, %v1035
  %1165 = vst.msk [vmem:[%s3 + $0x10] sm:$0xf] %vm1160, %v1036
  %1166 = vst.msk [vmem:[%s3 + $0x14] sm:$0xf] %vm1160, %v1037
  %1167 = vst.msk [vmem:[%s3 + $0x18] sm:$0xf] %vm1160, %v1038
  %1168 = vst.msk [vmem:[%s3 + $0x1c] sm:$0xf] %vm1160, %v1039
  %1169 = vst.msk [vmem:[%s3 + $0x20] sm:$0xf] %vm1160, %v1040
  %1170 = vst.msk [vmem:[%s3 + $0x24] sm:$0xf] %vm1160, %v1041
  %1171 = vst.msk [vmem:[%s3 + $0x28] sm:$0xf] %vm1160, %v1042
  %1172 = vst.msk [vmem:[%s3 + $0x2c] sm:$0xf] %vm1160, %v1043
  %1173 = vst.msk [vmem:[%s3 + $0x30] sm:$0xf] %vm1160, %v1044
  %1174 = vst.msk [vmem:[%s3 + $0x34] sm:$0xf] %vm1160, %v1045
  %1175 = vst.msk [vmem:[%s3 + $0x38] sm:$0xf] %vm1160, %v1046
  %1176 = vst.msk [vmem:[%s3 + $0x3c] sm:$0xf] %vm1160, %v1047
  %1177 = vst.msk [vmem:[%s3 + $0x40] sm:$0xf] %vm1160, %v1048
  %1178 = vst.msk [vmem:[%s3 + $0x44] sm:$0xf] %vm1160, %v1049
  %1179 = vst.msk [vmem:[%s3 + $0x48] sm:$0xf] %vm1160, %v1050
  %1180 = vst.msk [vmem:[%s3 + $0x4c] sm:$0xf] %vm1160, %v1051
  %1181 = vst.msk [vmem:[%s3 + $0x50] sm:$0xf] %vm1160, %v1052
  %1182 = vst.msk [vmem:[%s3 + $0x54] sm:$0xf] %vm1160, %v1053
  %1183 = vst.msk [vmem:[%s3 + $0x58] sm:$0xf] %vm1160, %v1054
  %1184 = vst.msk [vmem:[%s3 + $0x5c] sm:$0xf] %vm1160, %v1055
  %1185 = vst.msk [vmem:[%s3 + $0x60] sm:$0xf] %vm1160, %v1056
  %1186 = vst.msk [vmem:[%s3 + $0x64] sm:$0xf] %vm1160, %v1057
  %1187 = vst.msk [vmem:[%s3 + $0x68] sm:$0xf] %vm1160, %v1058
  %1188 = vst.msk [vmem:[%s3 + $0x6c] sm:$0xf] %vm1160, %v1059
  %1189 = vst.msk [vmem:[%s3 + $0x70] sm:$0xf] %vm1160, %v1060
  %1190 = vst.msk [vmem:[%s3 + $0x74] sm:$0xf] %vm1160, %v1061
  %1191 = vst.msk [vmem:[%s3 + $0x78] sm:$0xf] %vm1160, %v1062
  %1192 = vst.msk [vmem:[%s3 + $0x7c] sm:$0xf] %vm1160, %v1063
  %1193 = vst.msk [vmem:[%s3 + $0x80] sm:$0xf] %vm1160, %v1064
  %1194 = vst.msk [vmem:[%s3 + $0x84] sm:$0xf] %vm1160, %v1065
  %1195 = vst.msk [vmem:[%s3 + $0x88] sm:$0xf] %vm1160, %v1066
  %1196 = vst.msk [vmem:[%s3 + $0x8c] sm:$0xf] %vm1160, %v1067
  %1197 = vst.msk [vmem:[%s3 + $0x90] sm:$0xf] %vm1160, %v1068
  %1198 = vst.msk [vmem:[%s3 + $0x94] sm:$0xf] %vm1160, %v1069
  %1199 = vst.msk [vmem:[%s3 + $0x98] sm:$0xf] %vm1160, %v1070
  %1200 = vst.msk [vmem:[%s3 + $0x9c] sm:$0xf] %vm1160, %v1071
  %1201 = vst.msk [vmem:[%s3 + $0xa0] sm:$0xf] %vm1160, %v1072
  %1202 = vst.msk [vmem:[%s3 + $0xa4] sm:$0xf] %vm1160, %v1073
  %1203 = vst.msk [vmem:[%s3 + $0xa8] sm:$0xf] %vm1160, %v1074
  %1204 = vst.msk [vmem:[%s3 + $0xac] sm:$0xf] %vm1160, %v1075
  %1205 = vst.msk [vmem:[%s3 + $0xb0] sm:$0xf] %vm1160, %v1076
  %1206 = vst.msk [vmem:[%s3 + $0xb4] sm:$0xf] %vm1160, %v1077
  %1207 = vst.msk [vmem:[%s3 + $0xb8] sm:$0xf] %vm1160, %v1078
  %1208 = vst.msk [vmem:[%s3 + $0xbc] sm:$0xf] %vm1160, %v1079
  %1209 = vst.msk [vmem:[%s3 + $0xc0] sm:$0xf] %vm1160, %v1080
  %1210 = vst.msk [vmem:[%s3 + $0xc4] sm:$0xf] %vm1160, %v1081
  %1211 = vst.msk [vmem:[%s3 + $0xc8] sm:$0xf] %vm1160, %v1082
  %1212 = vst.msk [vmem:[%s3 + $0xcc] sm:$0xf] %vm1160, %v1083
  %1213 = vst.msk [vmem:[%s3 + $0xd0] sm:$0xf] %vm1160, %v1084
  %1214 = vst.msk [vmem:[%s3 + $0xd4] sm:$0xf] %vm1160, %v1085
  %1215 = vst.msk [vmem:[%s3 + $0xd8] sm:$0xf] %vm1160, %v1086
  %1216 = vst.msk [vmem:[%s3 + $0xdc] sm:$0xf] %vm1160, %v1087
  %1217 = vst.msk [vmem:[%s3 + $0xe0] sm:$0xf] %vm1160, %v1088
  %1218 = vst.msk [vmem:[%s3 + $0xe4] sm:$0xf] %vm1160, %v1089
  %1219 = vst.msk [vmem:[%s3 + $0xe8] sm:$0xf] %vm1160, %v1090
  %1220 = vst.msk [vmem:[%s3 + $0xec] sm:$0xf] %vm1160, %v1091
  %1221 = vst.msk [vmem:[%s3 + $0xf0] sm:$0xf] %vm1160, %v1092
  %1222 = vst.msk [vmem:[%s3 + $0xf4] sm:$0xf] %vm1160, %v1093
  %1223 = vst.msk [vmem:[%s3 + $0xf8] sm:$0xf] %vm1160, %v1094
  %1224 = vst.msk [vmem:[%s3 + $0xfc] sm:$0xf] %vm1160, %v1095
  // Predicated region
  $region14: #{resnet_generator_forward.10} parent=0 // pred_check
    _
  $region15: #{resnet_generator_forward.10} parent=0 // pred_check_branch
    %1226 = sbr.rel (0) target = $region17
  $region16: #{resnet_generator_forward.10} parent=0 // pred_region
    _
  $region17: #{resnet_generator_forward.10} parent=0 // pred_fallthru
    _
  // Predicated region
  $region18: #{resnet_generator_forward.10} parent=0 // pred_check
    _
  $region19: #{resnet_generator_forward.10} parent=0 // pred_check_branch
    %1228 = sbr.rel (0) target = $region21
  $region20: #{resnet_generator_forward.10} parent=0 // pred_region
    _
  $region21: #{resnet_generator_forward.10} parent=0 // pred_fallthru
    _

// kernel: resnet_generator_forward.11
$region0: #{resnet_generator_forward.11}
  #allocation0 [shape = 'u32[]', space=smem, size = 0x4, offset = 0x4, fixed_abs, tag = 'smem constant byte address 0x4 - core index']
  #allocation1 [shape = 'u32[144,128]{1,0:T(1,128)}', space=vmem, size = 0x12000, scoped, tag = 'internal scratch']
  %s0 = inlined_call_operand.vmem [shape: bf16[128,80], index: 0, kind: input, shape index: {}]
  %s1 = inlined_call_operand.vmem [shape: bf16[80,16], index: 1, kind: input, shape index: {}]
  %s2 = inlined_call_operand.vmem [shape: f32[1,16], index: 2, kind: input, shape index: {}]
  %s3 = inlined_call_operand.vmem [shape: bf16[128,16], index: 3, kind: output, shape index: {}]
  %s4 = sld [smem:[#allocation0]]
  $region22: #{resnet_generator_forward.11} parent=0
    _
  %s6 = ssub.s32 1, %s4
  %s7 = scalar_select 0, %s6, %s4
  // Predicated region
  $region2: #{resnet_generator_forward.11} parent=0 // pred_check
    _
  $region3: #{resnet_generator_forward.11} parent=0 // pred_check_branch
    %9 = sbr.rel (0) target = $region5
  $region4: #{resnet_generator_forward.11} parent=0 // pred_region
    _
  $region5: #{resnet_generator_forward.11} parent=0 // pred_fallthru
    _
  // Predicated region
  $region6: #{resnet_generator_forward.11} parent=0 // pred_check
    _
  $region7: #{resnet_generator_forward.11} parent=0 // pred_check_branch
    %11 = sbr.rel (0) target = $region9
  $region8: #{resnet_generator_forward.11} parent=0 // pred_region
    _
  $region9: #{resnet_generator_forward.11} parent=0 // pred_fallthru
    _
  // Predicated region
  $region10: #{resnet_generator_forward.11} parent=0 // pred_check
    _
  $region11: #{resnet_generator_forward.11} parent=0 // pred_check_branch
    %13 = sbr.rel (0) target = $region13
  $region12: #{resnet_generator_forward.11} parent=0 // pred_region
    _
  $region13: #{resnet_generator_forward.11} parent=0 // pred_fallthru
    _
  %v15 = vld [vmem:[%s0] sm:$0xf]
  %v16 = vld [vmem:[%s0 + $0x4] sm:$0xf]
  %v17 = vld [vmem:[%s0 + $0x8] sm:$0xf]
  %v18 = vld [vmem:[%s0 + $0xc] sm:$0xf]
  %v19 = vld [vmem:[%s0 + $0x10] sm:$0xf]
  %v20 = vld [vmem:[%s0 + $0x14] sm:$0xf]
  %v21 = vld [vmem:[%s0 + $0x18] sm:$0xf]
  %v22 = vld [vmem:[%s0 + $0x1c] sm:$0xf]
  %v23 = vld [vmem:[%s0 + $0x20] sm:$0xf]
  %v24 = vld [vmem:[%s0 + $0x24] sm:$0xf]
  %v25 = vld [vmem:[%s0 + $0x28] sm:$0xf]
  %v26 = vld [vmem:[%s0 + $0x2c] sm:$0xf]
  %v27 = vld [vmem:[%s0 + $0x30] sm:$0xf]
  %v28 = vld [vmem:[%s0 + $0x34] sm:$0xf]
  %v29 = vld [vmem:[%s0 + $0x38] sm:$0xf]
  %v30 = vld [vmem:[%s0 + $0x3c] sm:$0xf]
  %v31 = vld [vmem:[%s1] sm:$0xf]
  %v32 = vld [vmem:[%s1 + $0x4] sm:$0xf]
  %v33 = vld [vmem:[%s1 + $0x8] sm:$0xf]
  %v34 = vld [vmem:[%s1 + $0xc] sm:$0xf]
  %v35 = vld [vmem:[%s1 + $0x10] sm:$0xf]
  %v36 = vld [vmem:[%s1 + $0x14] sm:$0xf]
  %v37 = vld [vmem:[%s1 + $0x18] sm:$0xf]
  %v38 = vld [vmem:[%s1 + $0x1c] sm:$0xf]
  %v39 = vld [vmem:[%s1 + $0x20] sm:$0xf]
  %v40 = vld [vmem:[%s1 + $0x24] sm:$0xf]
  %v41 = vld [vmem:[%s2] sm:$0x1]
  %v43 = vlaneseq
  %v44 = vshrl.u32 %v43, 7
  %v45 = vsub.s32 0, %v44
  %v46 = vrot.slane %v41, %v45
  %v64 = vunpack.c.l.b16 %v15
  %v65 = vunpack.c.l.b16 %v16
  %v66 = vunpack.c.l.b16 %v17
  %v67 = vunpack.c.l.b16 %v18
  %v68 = vunpack.c.l.b16 %v19
  %v69 = vunpack.c.l.b16 %v20
  %v70 = vunpack.c.l.b16 %v21
  %v71 = vunpack.c.l.b16 %v22
  %v72 = vunpack.c.l.b16 %v23
  %v73 = vunpack.c.l.b16 %v24
  %v74 = vunpack.c.l.b16 %v25
  %v75 = vunpack.c.l.b16 %v26
  %v76 = vunpack.c.l.b16 %v27
  %v77 = vunpack.c.l.b16 %v28
  %v78 = vunpack.c.l.b16 %v29
  %v79 = vunpack.c.l.b16 %v30
  %v80 = vpack.c.b16 %v65, %v64
  %v81 = vpack.c.b16 %v67, %v66
  %v82 = vpack.c.b16 %v69, %v68
  %v83 = vpack.c.b16 %v71, %v70
  %v84 = vpack.c.b16 %v73, %v72
  %v85 = vpack.c.b16 %v75, %v74
  %v86 = vpack.c.b16 %v77, %v76
  %v87 = vpack.c.b16 %v79, %v78
  %v98 = vunpack.c.l.b16 %v31
  %v99 = vunpack.c.l.b16 %v32
  %v100 = vunpack.c.l.b16 %v33
  %v101 = vunpack.c.l.b16 %v34
  %v102 = vunpack.c.l.b16 %v35
  %v103 = vunpack.c.l.b16 %v36
  %v104 = vunpack.c.l.b16 %v37
  %v105 = vunpack.c.l.b16 %v38
  %v106 = vunpack.c.l.b16 %v39
  %v107 = vunpack.c.l.b16 %v40
  %v108 = vpack.c.b16 %v99, %v98
  %v109 = vpack.c.b16 %v101, %v100
  %v110 = vpack.c.b16 %v103, %v102
  %v111 = vpack.c.b16 %v105, %v104
  %v112 = vpack.c.b16 %v107, %v106
  %vm118 = vcmask 654336
  %v120 = vsel %vm118, %v80, 0
  %v123 = vsel %vm118, %v81, 0
  %v126 = vsel %vm118, %v82, 0
  %v129 = vsel %vm118, %v83, 0
  %v132 = vsel %vm118, %v84, 0
  %v135 = vsel %vm118, %v85, 0
  %v138 = vsel %vm118, %v86, 0
  %v141 = vsel %vm118, %v87, 0
  %143 = vmatprep.subr.bf16.mxu0 0
  %144 = vmatpush1.bf16.msra.mxu0 %v108
  %145 = vmatprep.subr.bf16.mxu0 0
  %146 = vmatpush1.bf16.msra.mxu0 %v109
  %147 = vmatprep.subr.bf16.mxu0 0
  %148 = vmatpush1.bf16.msra.mxu0 %v110
  %149 = vmatprep.subr.bf16.mxu0 0
  %150 = vmatpush1.bf16.msra.mxu0 %v111
  %151 = vmatprep.subr.bf16.mxu0 0
  %152 = vmatpush1.bf16.msra.mxu0 %v112
  %153 = vmatprep.subr.bf16.mxu0 0
  %154 = vmatpush1.bf16.msra.mxu0 0
  %155 = vmatprep.subr.bf16.mxu0 0
  %156 = vmatpush1.bf16.msra.mxu0 0
  %157 = vmatprep.subr.bf16.mxu0 0
  %158 = vmatpush1.bf16.msra.mxu0 0
  %159 = vmatprep.subr.bf16.mxu0 0
  %160 = vmatpush1.bf16.msra.mxu0 0
  %161 = vmatprep.subr.bf16.mxu0 0
  %162 = vmatpush1.bf16.msra.mxu0 0
  %163 = vmatprep.subr.bf16.mxu0 0
  %164 = vmatpush1.bf16.msra.mxu0 0
  %165 = vmatprep.subr.bf16.mxu0 0
  %166 = vmatpush1.bf16.msra.mxu0 0
  %167 = vmatprep.subr.bf16.mxu0 0
  %168 = vmatpush1.bf16.msra.mxu0 0
  %169 = vmatprep.subr.bf16.mxu0 0
  %170 = vmatpush1.bf16.msra.mxu0 0
  %171 = vmatprep.subr.bf16.mxu0 0
  %172 = vmatpush1.bf16.msra.mxu0 0
  %173 = vmatprep.subr.bf16.mxu0 0
  %174 = vmatpush1.bf16.msra.mxu0 0
  %175 = vmatprep.mubr.bf16.mxu0 0
  %176 = vmatmul.mubr.bf16.gmra.mrb[0].mxu0 %v120
  %v177 = vpop.f32.mrb[0].mxu0
  %v178 = vadd.f32 %v46, %v177
  %v179 = vpop.f32.mrb[0].mxu0
  %v180 = vpop.f32.mrb[0].mxu0
  %v181 = vadd.f32 %v46, %v180
  %v182 = vpop.f32.mrb[0].mxu0
  %183 = vmatprep.mubr.bf16.mxu0 0
  %184 = vmatmul.mubr.bf16.gmra.mrb[0].mxu0 %v123
  %v185 = vpop.f32.mrb[0].mxu0
  %v186 = vadd.f32 %v46, %v185
  %v187 = vpop.f32.mrb[0].mxu0
  %v188 = vpop.f32.mrb[0].mxu0
  %v189 = vadd.f32 %v46, %v188
  %v190 = vpop.f32.mrb[0].mxu0
  %191 = vmatprep.mubr.bf16.mxu0 0
  %192 = vmatmul.mubr.bf16.gmra.mrb[0].mxu0 %v126
  %v193 = vpop.f32.mrb[0].mxu0
  %v194 = vadd.f32 %v46, %v193
  %v195 = vpop.f32.mrb[0].mxu0
  %v196 = vpop.f32.mrb[0].mxu0
  %v197 = vadd.f32 %v46, %v196
  %v198 = vpop.f32.mrb[0].mxu0
  %199 = vmatprep.mubr.bf16.mxu0 0
  %200 = vmatmul.mubr.bf16.gmra.mrb[0].mxu0 %v129
  %v201 = vpop.f32.mrb[0].mxu0
  %v202 = vadd.f32 %v46, %v201
  %v203 = vpop.f32.mrb[0].mxu0
  %v204 = vpop.f32.mrb[0].mxu0
  %v205 = vadd.f32 %v46, %v204
  %v206 = vpop.f32.mrb[0].mxu0
  %207 = vmatprep.mubr.bf16.mxu0 0
  %208 = vmatmul.mubr.bf16.gmra.mrb[0].mxu0 %v132
  %v209 = vpop.f32.mrb[0].mxu0
  %v210 = vadd.f32 %v46, %v209
  %v211 = vpop.f32.mrb[0].mxu0
  %v212 = vpop.f32.mrb[0].mxu0
  %v213 = vadd.f32 %v46, %v212
  %v214 = vpop.f32.mrb[0].mxu0
  %215 = vmatprep.mubr.bf16.mxu0 0
  %216 = vmatmul.mubr.bf16.gmra.mrb[0].mxu0 %v135
  %v217 = vpop.f32.mrb[0].mxu0
  %v218 = vadd.f32 %v46, %v217
  %v219 = vpop.f32.mrb[0].mxu0
  %v220 = vpop.f32.mrb[0].mxu0
  %v221 = vadd.f32 %v46, %v220
  %v222 = vpop.f32.mrb[0].mxu0
  %223 = vmatprep.mubr.bf16.mxu0 0
  %224 = vmatmul.mubr.bf16.gmra.mrb[0].mxu0 %v138
  %v225 = vpop.f32.mrb[0].mxu0
  %v226 = vadd.f32 %v46, %v225
  %v227 = vpop.f32.mrb[0].mxu0
  %v228 = vpop.f32.mrb[0].mxu0
  %v229 = vadd.f32 %v46, %v228
  %v230 = vpop.f32.mrb[0].mxu0
  %231 = vmatprep.mubr.bf16.mxu0 0
  %232 = vmatmul.mubr.bf16.gmra.mrb[0].mxu0 %v141
  %v233 = vpop.f32.mrb[0].mxu0
  %v234 = vadd.f32 %v46, %v233
  %v235 = vpop.f32.mrb[0].mxu0
  %v236 = vpop.f32.mrb[0].mxu0
  %v237 = vadd.f32 %v46, %v236
  %v238 = vpop.f32.mrb[0].mxu0
  %239 = vdwg.mxu0
  %v240 = vmax.f32 %v178, 0.0
  %v241 = vmax.f32 %v181, 0.0
  %v242 = vmax.f32 %v186, 0.0
  %v243 = vmax.f32 %v189, 0.0
  %v244 = vmax.f32 %v194, 0.0
  %v245 = vmax.f32 %v197, 0.0
  %v246 = vmax.f32 %v202, 0.0
  %v247 = vmax.f32 %v205, 0.0
  %v248 = vmax.f32 %v210, 0.0
  %v249 = vmax.f32 %v213, 0.0
  %v250 = vmax.f32 %v218, 0.0
  %v251 = vmax.f32 %v221, 0.0
  %v252 = vmax.f32 %v226, 0.0
  %v253 = vmax.f32 %v229, 0.0
  %v254 = vmax.f32 %v234, 0.0
  %v255 = vmax.f32 %v237, 0.0
  %v256 = vpack.c.bf16 %v241, %v240
  %v257 = vpack.c.bf16 %v243, %v242
  %v258 = vpack.c.bf16 %v245, %v244
  %v259 = vpack.c.bf16 %v247, %v246
  %v260 = vpack.c.bf16 %v249, %v248
  %v261 = vpack.c.bf16 %v251, %v250
  %v262 = vpack.c.bf16 %v253, %v252
  %v263 = vpack.c.bf16 %v255, %v254
  %v272 = vunpack.c.l.b16 %v256
  %v273 = vunpack.c.h.b16 %v256
  %v274 = vunpack.c.l.b16 %v257
  %v275 = vunpack.c.h.b16 %v257
  %v276 = vunpack.c.l.b16 %v258
  %v277 = vunpack.c.h.b16 %v258
  %v278 = vunpack.c.l.b16 %v259
  %v279 = vunpack.c.h.b16 %v259
  %v280 = vunpack.c.l.b16 %v260
  %v281 = vunpack.c.h.b16 %v260
  %v282 = vunpack.c.l.b16 %v261
  %v283 = vunpack.c.h.b16 %v261
  %v284 = vunpack.c.l.b16 %v262
  %v285 = vunpack.c.h.b16 %v262
  %v286 = vunpack.c.l.b16 %v263
  %v287 = vunpack.c.h.b16 %v263
  %v288 = vpack.c.b16 %v272, %v272
  %v289 = vpack.c.b16 %v273, %v273
  %v290 = vpack.c.b16 %v274, %v274
  %v291 = vpack.c.b16 %v275, %v275
  %v292 = vpack.c.b16 %v276, %v276
  %v293 = vpack.c.b16 %v277, %v277
  %v294 = vpack.c.b16 %v278, %v278
  %v295 = vpack.c.b16 %v279, %v279
  %v296 = vpack.c.b16 %v280, %v280
  %v297 = vpack.c.b16 %v281, %v281
  %v298 = vpack.c.b16 %v282, %v282
  %v299 = vpack.c.b16 %v283, %v283
  %v300 = vpack.c.b16 %v284, %v284
  %v301 = vpack.c.b16 %v285, %v285
  %v302 = vpack.c.b16 %v286, %v286
  %v303 = vpack.c.b16 %v287, %v287
  %vm320 = vcmask 125952
  %321 = vst.msk [vmem:[%s3] sm:$0xf] %vm320, %v288
  %322 = vst.msk [vmem:[%s3 + $0x4] sm:$0xf] %vm320, %v289
  %323 = vst.msk [vmem:[%s3 + $0x8] sm:$0xf] %vm320, %v290
  %324 = vst.msk [vmem:[%s3 + $0xc] sm:$0xf] %vm320, %v291
  %325 = vst.msk [vmem:[%s3 + $0x10] sm:$0xf] %vm320, %v292
  %326 = vst.msk [vmem:[%s3 + $0x14] sm:$0xf] %vm320, %v293
  %327 = vst.msk [vmem:[%s3 + $0x18] sm:$0xf] %vm320, %v294
  %328 = vst.msk [vmem:[%s3 + $0x1c] sm:$0xf] %vm320, %v295
  %329 = vst.msk [vmem:[%s3 + $0x20] sm:$0xf] %vm320, %v296
  %330 = vst.msk [vmem:[%s3 + $0x24] sm:$0xf] %vm320, %v297
  %331 = vst.msk [vmem:[%s3 + $0x28] sm:$0xf] %vm320, %v298
  %332 = vst.msk [vmem:[%s3 + $0x2c] sm:$0xf] %vm320, %v299
  %333 = vst.msk [vmem:[%s3 + $0x30] sm:$0xf] %vm320, %v300
  %334 = vst.msk [vmem:[%s3 + $0x34] sm:$0xf] %vm320, %v301
  %335 = vst.msk [vmem:[%s3 + $0x38] sm:$0xf] %vm320, %v302
  %336 = vst.msk [vmem:[%s3 + $0x3c] sm:$0xf] %vm320, %v303
  // Predicated region
  $region14: #{resnet_generator_forward.11} parent=0 // pred_check
    _
  $region15: #{resnet_generator_forward.11} parent=0 // pred_check_branch
    %338 = sbr.rel (0) target = $region17
  $region16: #{resnet_generator_forward.11} parent=0 // pred_region
    _
  $region17: #{resnet_generator_forward.11} parent=0 // pred_fallthru
    _
  // Predicated region
  $region18: #{resnet_generator_forward.11} parent=0 // pred_check
    _
  $region19: #{resnet_generator_forward.11} parent=0 // pred_check_branch
    %340 = sbr.rel (0) target = $region21
  $region20: #{resnet_generator_forward.11} parent=0 // pred_region
    _
  $region21: #{resnet_generator_forward.11} parent=0 // pred_fallthru
    _

// kernel: resnet_generator_forward.12
$region0: #{resnet_generator_forward.12}
  #allocation0 [shape = 'u32[]', space=smem, size = 0x4, offset = 0x4, fixed_abs, tag = 'smem constant byte address 0x4 - core index']
  #allocation1 [shape = 'u32[144,128]{1,0:T(1,128)}', space=vmem, size = 0x12000, scoped, tag = 'internal scratch']
  %s0 = inlined_call_operand.vmem [shape: bf16[32,144], index: 0, kind: input, shape index: {}]
  %s1 = inlined_call_operand.vmem [shape: bf16[144,32], index: 1, kind: input, shape index: {}]
  %s2 = inlined_call_operand.vmem [shape: f32[1,32], index: 2, kind: input, shape index: {}]
  %s3 = inlined_call_operand.vmem [shape: bf16[32,32], index: 3, kind: output, shape index: {}]
  %s4 = sld [smem:[#allocation0]]
  $region22: #{resnet_generator_forward.12} parent=0
    _
  %s6 = ssub.s32 1, %s4
  %s7 = scalar_select 0, %s6, %s4
  // Predicated region
  $region2: #{resnet_generator_forward.12} parent=0 // pred_check
    _
  $region3: #{resnet_generator_forward.12} parent=0 // pred_check_branch
    %9 = sbr.rel (0) target = $region5
  $region4: #{resnet_generator_forward.12} parent=0 // pred_region
    _
  $region5: #{resnet_generator_forward.12} parent=0 // pred_fallthru
    _
  // Predicated region
  $region6: #{resnet_generator_forward.12} parent=0 // pred_check
    _
  $region7: #{resnet_generator_forward.12} parent=0 // pred_check_branch
    %11 = sbr.rel (0) target = $region9
  $region8: #{resnet_generator_forward.12} parent=0 // pred_region
    _
  $region9: #{resnet_generator_forward.12} parent=0 // pred_fallthru
    _
  // Predicated region
  $region10: #{resnet_generator_forward.12} parent=0 // pred_check
    _
  $region11: #{resnet_generator_forward.12} parent=0 // pred_check_branch
    %13 = sbr.rel (0) target = $region13
  $region12: #{resnet_generator_forward.12} parent=0 // pred_region
    _
  $region13: #{resnet_generator_forward.12} parent=0 // pred_fallthru
    _
  %v15 = vld [vmem:[%s0] sm:$0xff]
  %v16 = vld [vmem:[%s0 + $0x8] sm:$0xff]
  %v17 = vld [vmem:[%s0 + $0x10] sm:$0xff]
  %v18 = vld [vmem:[%s0 + $0x18] sm:$0xff]
  %v19 = vld [vmem:[%s1] sm:$0xf]
  %v20 = vld [vmem:[%s1 + $0x4] sm:$0xf]
  %v21 = vld [vmem:[%s1 + $0x8] sm:$0xf]
  %v22 = vld [vmem:[%s1 + $0xc] sm:$0xf]
  %v23 = vld [vmem:[%s1 + $0x10] sm:$0xf]
  %v24 = vld [vmem:[%s1 + $0x14] sm:$0xf]
  %v25 = vld [vmem:[%s1 + $0x18] sm:$0xf]
  %v26 = vld [vmem:[%s1 + $0x1c] sm:$0xf]
  %v27 = vld [vmem:[%s1 + $0x20] sm:$0xf]
  %v28 = vld [vmem:[%s1 + $0x24] sm:$0xf]
  %v29 = vld [vmem:[%s1 + $0x28] sm:$0xf]
  %v30 = vld [vmem:[%s1 + $0x2c] sm:$0xf]
  %v31 = vld [vmem:[%s1 + $0x30] sm:$0xf]
  %v32 = vld [vmem:[%s1 + $0x34] sm:$0xf]
  %v33 = vld [vmem:[%s1 + $0x38] sm:$0xf]
  %v34 = vld [vmem:[%s1 + $0x3c] sm:$0xf]
  %v35 = vld [vmem:[%s1 + $0x40] sm:$0xf]
  %v36 = vld [vmem:[%s1 + $0x44] sm:$0xf]
  %v37 = vld [vmem:[%s2] sm:$0x1]
  %v39 = vlaneseq
  %v40 = vshrl.u32 %v39, 7
  %v41 = vsub.s32 0, %v40
  %v42 = vrot.slane %v37, %v41
  %v48 = vunpack.c.l.b16 %v15
  %v49 = vunpack.c.h.b16 %v15
  %v50 = vunpack.c.l.b16 %v16
  %v51 = vunpack.c.h.b16 %v16
  %v52 = vunpack.c.l.b16 %v17
  %v53 = vunpack.c.h.b16 %v17
  %v54 = vunpack.c.l.b16 %v18
  %v55 = vunpack.c.h.b16 %v18
  %v56 = vpack.c.b16 %v50, %v48
  %v57 = vpack.c.b16 %v51, %v49
  %v58 = vpack.c.b16 %v54, %v52
  %v59 = vpack.c.b16 %v55, %v53
  %v80 = vunpack.c.l.b16 %v19
  %v81 = vunpack.c.l.b16 %v20
  %v82 = vunpack.c.l.b16 %v21
  %v83 = vunpack.c.l.b16 %v22
  %v84 = vunpack.c.l.b16 %v23
  %v85 = vunpack.c.l.b16 %v24
  %v86 = vunpack.c.l.b16 %v25
  %v87 = vunpack.c.l.b16 %v26
  %v88 = vunpack.c.l.b16 %v27
  %v89 = vunpack.c.l.b16 %v28
  %v90 = vunpack.c.l.b16 %v29
  %v91 = vunpack.c.l.b16 %v30
  %v92 = vunpack.c.l.b16 %v31
  %v93 = vunpack.c.l.b16 %v32
  %v94 = vunpack.c.l.b16 %v33
  %v95 = vunpack.c.l.b16 %v34
  %v96 = vunpack.c.l.b16 %v35
  %v97 = vunpack.c.l.b16 %v36
  %v98 = vpack.c.b16 %v81, %v80
  %v99 = vpack.c.b16 %v83, %v82
  %v100 = vpack.c.b16 %v85, %v84
  %v101 = vpack.c.b16 %v87, %v86
  %v102 = vpack.c.b16 %v89, %v88
  %v103 = vpack.c.b16 %v91, %v90
  %v104 = vpack.c.b16 %v93, %v92
  %v105 = vpack.c.b16 %v95, %v94
  %v106 = vpack.c.b16 %v97, %v96
  %vm116 = vcmask 130048
  %v118 = vsel %vm116, %v57, 0
  %v121 = vsel %vm116, %v59, 0
  %123 = vmatprep.subr.bf16.mxu0 0
  %124 = vmatpush1.bf16.msra.mxu0 %v98
  %125 = vmatprep.subr.bf16.mxu0 0
  %126 = vmatpush1.bf16.msra.mxu0 %v99
  %127 = vmatprep.subr.bf16.mxu0 0
  %128 = vmatpush1.bf16.msra.mxu0 %v100
  %129 = vmatprep.subr.bf16.mxu0 0
  %130 = vmatpush1.bf16.msra.mxu0 %v101
  %131 = vmatprep.subr.bf16.mxu0 0
  %132 = vmatpush1.bf16.msra.mxu0 %v102
  %133 = vmatprep.subr.bf16.mxu0 0
  %134 = vmatpush1.bf16.msra.mxu0 %v103
  %135 = vmatprep.subr.bf16.mxu0 0
  %136 = vmatpush1.bf16.msra.mxu0 %v104
  %137 = vmatprep.subr.bf16.mxu0 0
  %138 = vmatpush1.bf16.msra.mxu0 %v105
  %139 = vmatprep.subr.bf16.mxu0 0
  %140 = vmatpush1.bf16.msra.mxu0 %v106
  %141 = vmatprep.subr.bf16.mxu0 0
  %142 = vmatpush1.bf16.msra.mxu0 0
  %143 = vmatprep.subr.bf16.mxu0 0
  %144 = vmatpush1.bf16.msra.mxu0 0
  %145 = vmatprep.subr.bf16.mxu0 0
  %146 = vmatpush1.bf16.msra.mxu0 0
  %147 = vmatprep.subr.bf16.mxu0 0
  %148 = vmatpush1.bf16.msra.mxu0 0
  %149 = vmatprep.subr.bf16.mxu0 0
  %150 = vmatpush1.bf16.msra.mxu0 0
  %151 = vmatprep.subr.bf16.mxu0 0
  %152 = vmatpush1.bf16.msra.mxu0 0
  %153 = vmatprep.subr.bf16.mxu0 0
  %154 = vmatpush1.bf16.msra.mxu0 0
  %155 = vmatprep.mubr.bf16.mxu0 %v118
  %156 = vmatmul.mubr.bf16.gmra.mrb[0].mxu0 %v56
  %v157 = vpop.f32.mrb[0].mxu0
  %v158 = vadd.f32 %v42, %v157
  %v159 = vpop.f32.mrb[0].mxu0
  %v160 = vpop.f32.mrb[0].mxu0
  %v161 = vadd.f32 %v42, %v160
  %v162 = vpop.f32.mrb[0].mxu0
  %163 = vmatprep.mubr.bf16.mxu0 %v121
  %164 = vmatmul.mubr.bf16.gmra.mrb[0].mxu0 %v58
  %v165 = vpop.f32.mrb[0].mxu0
  %v166 = vadd.f32 %v42, %v165
  %v167 = vpop.f32.mrb[0].mxu0
  %v168 = vpop.f32.mrb[0].mxu0
  %v169 = vadd.f32 %v42, %v168
  %v170 = vpop.f32.mrb[0].mxu0
  %171 = vdwg.mxu0
  %v172 = vmax.f32 %v158, 0.0
  %v173 = vmax.f32 %v161, 0.0
  %v174 = vmax.f32 %v166, 0.0
  %v175 = vmax.f32 %v169, 0.0
  %v176 = vpack.c.bf16 %v173, %v172
  %v177 = vpack.c.bf16 %v175, %v174
  %v180 = vunpack.c.l.b16 %v176
  %v181 = vunpack.c.h.b16 %v176
  %v182 = vunpack.c.l.b16 %v177
  %v183 = vunpack.c.h.b16 %v177
  %v184 = vpack.c.b16 %v180, %v180
  %v185 = vpack.c.b16 %v181, %v181
  %v186 = vpack.c.b16 %v182, %v182
  %v187 = vpack.c.b16 %v183, %v183
  %vm192 = vcmask 257024
  %193 = vst.msk [vmem:[%s3] sm:$0xf] %vm192, %v184
  %194 = vst.msk [vmem:[%s3 + $0x4] sm:$0xf] %vm192, %v185
  %195 = vst.msk [vmem:[%s3 + $0x8] sm:$0xf] %vm192, %v186
  %196 = vst.msk [vmem:[%s3 + $0xc] sm:$0xf] %vm192, %v187
  // Predicated region
  $region14: #{resnet_generator_forward.12} parent=0 // pred_check
    _
  $region15: #{resnet_generator_forward.12} parent=0 // pred_check_branch
    %198 = sbr.rel (0) target = $region17
  $region16: #{resnet_generator_forward.12} parent=0 // pred_region
    _
  $region17: #{resnet_generator_forward.12} parent=0 // pred_fallthru
    _
  // Predicated region
  $region18: #{resnet_generator_forward.12} parent=0 // pred_check
    _
  $region19: #{resnet_generator_forward.12} parent=0 // pred_check_branch
    %200 = sbr.rel (0) target = $region21
  $region20: #{resnet_generator_forward.12} parent=0 // pred_region
    _
  $region21: #{resnet_generator_forward.12} parent=0 // pred_fallthru
    _

// kernel: tile.23
$region0: #{tile.23}
  #allocation0 [shape = 's32[1]{0}', space=sflag, size = 0x4, scoped, tag = 'scoped memory for tile.23']
  %s0 = inlined_call_operand.vmem [shape: f32[16], index: 0, kind: input, shape index: {}]
  %s1 = inlined_call_operand.vmem [shape: f32[4,16], index: 1, kind: output, shape index: {}]
  // Predicated region
  $region2: #{tile.23} parent=0 // pred_check
    _
  $region3: #{tile.23} parent=0 // pred_check_branch
    %3 = sbr.rel (0) target = $region5
  $region4: #{tile.23} parent=0 // pred_region
    _
  $region5: #{tile.23} parent=0 // pred_fallthru
    _
  %v4 = vld [vmem:[%s0] ss:$0 sm:$0xff]
  %5 = vst [vmem:[%s1] sm:$0xf] %v4

// kernel: mul.82
$region0: #{mul.82}
  %s0 = inlined_call_operand.vmem [shape: f32[4,16], index: 0, kind: input, shape index: {}]
  %s1 = inlined_call_operand.vmem [shape: f32[64], index: 1, kind: output, shape index: {}]
  $region1: #{mul.82} parent=0
    #allocation0 [shape = 'u8[4096]{0}', space=vmem, size = 0x1000, scoped, tag = 'scoped mem for output reshape']
    #allocation1 [shape = 'u8[4096]{0}', space=vmem, size = 0x1000, scoped, tag = 'scoped mem for input reshape']
    %s3 = sshllo.u32 0, 4
    %v4 = vld [vmem:[%s0] sm:%s3]
    %5 = vst [vmem:[#allocation1] sm:%s3] %v4
    %v6 = vld [vmem:[#allocation1] sm:$0x1]
    %vm7 = vcmask 130048
    %8 = vst.msk [vmem:[#allocation0] sm:$0x1] %vm7, %v6
    %s9 = scalar_lea.vmem [#allocation1], 3
    %v10 = vld [vmem:[%s9] sm:$0x1]
    %11 = vrot.lane.b32.xlu0 %v10, 48
    %v12 = vpop.permute.xlu0 %11
    %vm13 = vcmask 523648
    %14 = vst.msk [vmem:[#allocation0] sm:$0x1] %vm13, %v12
    %s15 = scalar_lea.vmem [#allocation1], 2
    %v16 = vld [vmem:[%s15] sm:$0x1]
    %17 = vrot.lane.b32.xlu0 %v16, 32
    %v18 = vpop.permute.xlu0 %17
    %vm19 = vcmask 392448
    %20 = vst.msk [vmem:[#allocation0] sm:$0x1] %vm19, %v18
    %s21 = scalar_lea.vmem [#allocation1], 1
    %v22 = vld [vmem:[%s21] sm:$0x1]
    %23 = vrot.lane.b32.xlu0 %v22, 16
    %v24 = vpop.permute.xlu0 %23
    %vm25 = vcmask 261248
    %26 = vst.msk [vmem:[#allocation0] sm:$0x1] %vm25, %v24
    %s28 = sshllo.u32 0, 1
    %v30 = vld [vmem:[#allocation0] sm:%s28]
    %s31 = sshllo.u32 0, 1
    %32 = vst [vmem:[%s1] sm:%s31] %v30

// kernel: resnet_generator_forward.13
$region0: #{resnet_generator_forward.13}
  #allocation0 [shape = 'u32[]', space=smem, size = 0x4, offset = 0x4, fixed_abs, tag = 'smem constant byte address 0x4 - core index']
  #allocation1 [shape = 'u32[144,128]{1,0:T(1,128)}', space=vmem, size = 0x12000, scoped, tag = 'internal scratch']
  %s0 = inlined_call_operand.vmem [shape: bf16[32,288], index: 0, kind: input, shape index: {}]
  %s1 = inlined_call_operand.vmem [shape: bf16[288,32], index: 1, kind: input, shape index: {}]
  %s2 = inlined_call_operand.vmem [shape: f32[1,32], index: 2, kind: input, shape index: {}]
  %s3 = inlined_call_operand.vmem [shape: bf16[32,32], index: 3, kind: output, shape index: {}]
  %s4 = sld [smem:[#allocation0]]
  $region22: #{resnet_generator_forward.13} parent=0
    _
  %s6 = ssub.s32 1, %s4
  %s7 = scalar_select 0, %s6, %s4
  // Predicated region
  $region2: #{resnet_generator_forward.13} parent=0 // pred_check
    _
  $region3: #{resnet_generator_forward.13} parent=0 // pred_check_branch
    %9 = sbr.rel (0) target = $region5
  $region4: #{resnet_generator_forward.13} parent=0 // pred_region
    _
  $region5: #{resnet_generator_forward.13} parent=0 // pred_fallthru
    _
  // Predicated region
  $region6: #{resnet_generator_forward.13} parent=0 // pred_check
    _
  $region7: #{resnet_generator_forward.13} parent=0 // pred_check_branch
    %11 = sbr.rel (0) target = $region9
  $region8: #{resnet_generator_forward.13} parent=0 // pred_region
    _
  $region9: #{resnet_generator_forward.13} parent=0 // pred_fallthru
    _
  // Predicated region
  $region10: #{resnet_generator_forward.13} parent=0 // pred_check
    _
  $region11: #{resnet_generator_forward.13} parent=0 // pred_check_branch
    %13 = sbr.rel (0) target = $region13
  $region12: #{resnet_generator_forward.13} parent=0 // pred_region
    _
  $region13: #{resnet_generator_forward.13} parent=0 // pred_fallthru
    _
  %v15 = vld [vmem:[%s0] sm:$0xff]
  %v16 = vld [vmem:[%s0 + $0x8] sm:$0xf]
  %v17 = vld [vmem:[%s0 + $0xc] sm:$0xff]
  %v18 = vld [vmem:[%s0 + $0x14] sm:$0xf]
  %v19 = vld [vmem:[%s0 + $0x18] sm:$0xff]
  %v20 = vld [vmem:[%s0 + $0x20] sm:$0xf]
  %v21 = vld [vmem:[%s0 + $0x24] sm:$0xff]
  %v22 = vld [vmem:[%s0 + $0x2c] sm:$0xf]
  %v23 = vld [vmem:[%s1] sm:$0xf]
  %v24 = vld [vmem:[%s1 + $0x4] sm:$0xf]
  %v25 = vld [vmem:[%s1 + $0x8] sm:$0xf]
  %v26 = vld [vmem:[%s1 + $0xc] sm:$0xf]
  %v27 = vld [vmem:[%s1 + $0x10] sm:$0xf]
  %v28 = vld [vmem:[%s1 + $0x14] sm:$0xf]
  %v29 = vld [vmem:[%s1 + $0x18] sm:$0xf]
  %v30 = vld [vmem:[%s1 + $0x1c] sm:$0xf]
  %v31 = vld [vmem:[%s1 + $0x20] sm:$0xf]
  %v32 = vld [vmem:[%s1 + $0x24] sm:$0xf]
  %v33 = vld [vmem:[%s1 + $0x28] sm:$0xf]
  %v34 = vld [vmem:[%s1 + $0x2c] sm:$0xf]
  %v35 = vld [vmem:[%s1 + $0x30] sm:$0xf]
  %v36 = vld [vmem:[%s1 + $0x34] sm:$0xf]
  %v37 = vld [vmem:[%s1 + $0x38] sm:$0xf]
  %v38 = vld [vmem:[%s1 + $0x3c] sm:$0xf]
  %v39 = vld [vmem:[%s1 + $0x40] sm:$0xf]
  %v40 = vld [vmem:[%s1 + $0x44] sm:$0xf]
  %v41 = vld [vmem:[%s1 + $0x48] sm:$0xf]
  %v42 = vld [vmem:[%s1 + $0x4c] sm:$0xf]
  %v43 = vld [vmem:[%s1 + $0x50] sm:$0xf]
  %v44 = vld [vmem:[%s1 + $0x54] sm:$0xf]
  %v45 = vld [vmem:[%s1 + $0x58] sm:$0xf]
  %v46 = vld [vmem:[%s1 + $0x5c] sm:$0xf]
  %v47 = vld [vmem:[%s1 + $0x60] sm:$0xf]
  %v48 = vld [vmem:[%s1 + $0x64] sm:$0xf]
  %v49 = vld [vmem:[%s1 + $0x68] sm:$0xf]
  %v50 = vld [vmem:[%s1 + $0x6c] sm:$0xf]
  %v51 = vld [vmem:[%s1 + $0x70] sm:$0xf]
  %v52 = vld [vmem:[%s1 + $0x74] sm:$0xf]
  %v53 = vld [vmem:[%s1 + $0x78] sm:$0xf]
  %v54 = vld [vmem:[%s1 + $0x7c] sm:$0xf]
  %v55 = vld [vmem:[%s1 + $0x80] sm:$0xf]
  %v56 = vld [vmem:[%s1 + $0x84] sm:$0xf]
  %v57 = vld [vmem:[%s1 + $0x88] sm:$0xf]
  %v58 = vld [vmem:[%s1 + $0x8c] sm:$0xf]
  %v59 = vld [vmem:[%s2] sm:$0x1]
  %v61 = vlaneseq
  %v62 = vshrl.u32 %v61, 7
  %v63 = vsub.s32 0, %v62
  %v64 = vrot.slane %v59, %v63
  %v74 = vunpack.c.l.b16 %v15
  %v75 = vunpack.c.h.b16 %v15
  %v76 = vunpack.c.l.b16 %v16
  %v77 = vunpack.c.l.b16 %v17
  %v78 = vunpack.c.h.b16 %v17
  %v79 = vunpack.c.l.b16 %v18
  %v80 = vunpack.c.l.b16 %v19
  %v81 = vunpack.c.h.b16 %v19
  %v82 = vunpack.c.l.b16 %v20
  %v83 = vunpack.c.l.b16 %v21
  %v84 = vunpack.c.h.b16 %v21
  %v85 = vunpack.c.l.b16 %v22
  %v86 = vpack.c.b16 %v77, %v74
  %v87 = vpack.c.b16 %v78, %v75
  %v88 = vpack.c.b16 %v79, %v76
  %v89 = vpack.c.b16 %v83, %v80
  %v90 = vpack.c.b16 %v84, %v81
  %v91 = vpack.c.b16 %v85, %v82
  %v132 = vunpack.c.l.b16 %v23
  %v133 = vunpack.c.l.b16 %v24
  %v134 = vunpack.c.l.b16 %v25
  %v135 = vunpack.c.l.b16 %v26
  %v136 = vunpack.c.l.b16 %v27
  %v137 = vunpack.c.l.b16 %v28
  %v138 = vunpack.c.l.b16 %v29
  %v139 = vunpack.c.l.b16 %v30
  %v140 = vunpack.c.l.b16 %v31
  %v141 = vunpack.c.l.b16 %v32
  %v142 = vunpack.c.l.b16 %v33
  %v143 = vunpack.c.l.b16 %v34
  %v144 = vunpack.c.l.b16 %v35
  %v145 = vunpack.c.l.b16 %v36
  %v146 = vunpack.c.l.b16 %v37
  %v147 = vunpack.c.l.b16 %v38
  %v148 = vunpack.c.l.b16 %v39
  %v149 = vunpack.c.l.b16 %v40
  %v150 = vunpack.c.l.b16 %v41
  %v151 = vunpack.c.l.b16 %v42
  %v152 = vunpack.c.l.b16 %v43
  %v153 = vunpack.c.l.b16 %v44
  %v154 = vunpack.c.l.b16 %v45
  %v155 = vunpack.c.l.b16 %v46
  %v156 = vunpack.c.l.b16 %v47
  %v157 = vunpack.c.l.b16 %v48
  %v158 = vunpack.c.l.b16 %v49
  %v159 = vunpack.c.l.b16 %v50
  %v160 = vunpack.c.l.b16 %v51
  %v161 = vunpack.c.l.b16 %v52
  %v162 = vunpack.c.l.b16 %v53
  %v163 = vunpack.c.l.b16 %v54
  %v164 = vunpack.c.l.b16 %v55
  %v165 = vunpack.c.l.b16 %v56
  %v166 = vunpack.c.l.b16 %v57
  %v167 = vunpack.c.l.b16 %v58
  %v168 = vpack.c.b16 %v133, %v132
  %v169 = vpack.c.b16 %v135, %v134
  %v170 = vpack.c.b16 %v137, %v136
  %v171 = vpack.c.b16 %v139, %v138
  %v172 = vpack.c.b16 %v141, %v140
  %v173 = vpack.c.b16 %v143, %v142
  %v174 = vpack.c.b16 %v145, %v144
  %v175 = vpack.c.b16 %v147, %v146
  %v176 = vpack.c.b16 %v149, %v148
  %v177 = vpack.c.b16 %v151, %v150
  %v178 = vpack.c.b16 %v153, %v152
  %v179 = vpack.c.b16 %v155, %v154
  %v180 = vpack.c.b16 %v157, %v156
  %v181 = vpack.c.b16 %v159, %v158
  %v182 = vpack.c.b16 %v161, %v160
  %v183 = vpack.c.b16 %v163, %v162
  %v184 = vpack.c.b16 %v165, %v164
  %v185 = vpack.c.b16 %v167, %v166
  %vm204 = vcmask 261120
  %v206 = vsel %vm204, %v88, 0
  %v209 = vsel %vm204, %v91, 0
  %211 = vmatprep.subr.bf16.mxu0 0
  %212 = vmatpush1.bf16.msra.mxu0 %v168
  %213 = vmatprep.subr.bf16.mxu0 0
  %214 = vmatpush1.bf16.msra.mxu0 %v169
  %215 = vmatprep.subr.bf16.mxu0 0
  %216 = vmatpush1.bf16.msra.mxu0 %v170
  %217 = vmatprep.subr.bf16.mxu0 0
  %218 = vmatpush1.bf16.msra.mxu0 %v171
  %219 = vmatprep.subr.bf16.mxu0 0
  %220 = vmatpush1.bf16.msra.mxu0 %v172
  %221 = vmatprep.subr.bf16.mxu0 0
  %222 = vmatpush1.bf16.msra.mxu0 %v173
  %223 = vmatprep.subr.bf16.mxu0 0
  %224 = vmatpush1.bf16.msra.mxu0 %v174
  %225 = vmatprep.subr.bf16.mxu0 0
  %226 = vmatpush1.bf16.msra.mxu0 %v175
  %227 = vmatprep.subr.bf16.mxu0 0
  %228 = vmatpush1.bf16.msra.mxu0 %v176
  %229 = vmatprep.subr.bf16.mxu0 0
  %230 = vmatpush1.bf16.msra.mxu0 %v177
  %231 = vmatprep.subr.bf16.mxu0 0
  %232 = vmatpush1.bf16.msra.mxu0 %v178
  %233 = vmatprep.subr.bf16.mxu0 0
  %234 = vmatpush1.bf16.msra.mxu0 %v179
  %235 = vmatprep.subr.bf16.mxu0 0
  %236 = vmatpush1.bf16.msra.mxu0 %v180
  %237 = vmatprep.subr.bf16.mxu0 0
  %238 = vmatpush1.bf16.msra.mxu0 %v181
  %239 = vmatprep.subr.bf16.mxu0 0
  %240 = vmatpush1.bf16.msra.mxu0 %v182
  %241 = vmatprep.subr.bf16.mxu0 0
  %242 = vmatpush1.bf16.msra.mxu0 %v183
  %243 = vmatprep.mubr.bf16.mxu0 %v87
  %244 = vmatmul.mubr.bf16.gmra.mrb[0].mxu0 %v86
  %v245 = vpop.f32.mrb[0].mxu0
  %v246 = vadd.f32 %v64, %v245
  %v247 = vpop.f32.mrb[0].mxu0
  %v248 = vpop.f32.mrb[0].mxu0
  %v249 = vadd.f32 %v64, %v248
  %v250 = vpop.f32.mrb[0].mxu0
  %251 = vmatprep.mubr.bf16.mxu0 %v90
  %252 = vmatmul.mubr.bf16.gmra.mrb[0].mxu0 %v89
  %v253 = vpop.f32.mrb[0].mxu0
  %v254 = vadd.f32 %v64, %v253
  %v255 = vpop.f32.mrb[0].mxu0
  %v256 = vpop.f32.mrb[0].mxu0
  %v257 = vadd.f32 %v64, %v256
  %v258 = vpop.f32.mrb[0].mxu0
  %259 = vdwg.mxu0
  %260 = vmatprep.subr.bf16.mxu0 0
  %261 = vmatpush1.bf16.msra.mxu0 %v184
  %262 = vmatprep.subr.bf16.mxu0 0
  %263 = vmatpush1.bf16.msra.mxu0 %v185
  %264 = vmatprep.subr.bf16.mxu0 0
  %265 = vmatpush1.bf16.msra.mxu0 0
  %266 = vmatprep.subr.bf16.mxu0 0
  %267 = vmatpush1.bf16.msra.mxu0 0
  %268 = vmatprep.subr.bf16.mxu0 0
  %269 = vmatpush1.bf16.msra.mxu0 0
  %270 = vmatprep.subr.bf16.mxu0 0
  %271 = vmatpush1.bf16.msra.mxu0 0
  %272 = vmatprep.subr.bf16.mxu0 0
  %273 = vmatpush1.bf16.msra.mxu0 0
  %274 = vmatprep.subr.bf16.mxu0 0
  %275 = vmatpush1.bf16.msra.mxu0 0
  %276 = vmatprep.subr.bf16.mxu0 0
  %277 = vmatpush1.bf16.msra.mxu0 0
  %278 = vmatprep.subr.bf16.mxu0 0
  %279 = vmatpush1.bf16.msra.mxu0 0
  %280 = vmatprep.subr.bf16.mxu0 0
  %281 = vmatpush1.bf16.msra.mxu0 0
  %282 = vmatprep.subr.bf16.mxu0 0
  %283 = vmatpush1.bf16.msra.mxu0 0
  %284 = vmatprep.subr.bf16.mxu0 0
  %285 = vmatpush1.bf16.msra.mxu0 0
  %286 = vmatprep.subr.bf16.mxu0 0
  %287 = vmatpush1.bf16.msra.mxu0 0
  %288 = vmatprep.subr.bf16.mxu0 0
  %289 = vmatpush1.bf16.msra.mxu0 0
  %290 = vmatprep.subr.bf16.mxu0 0
  %291 = vmatpush1.bf16.msra.mxu0 0
  %292 = vmatprep.mubr.bf16.mxu0 0
  %293 = vmatmul.mubr.bf16.gmra.mrb[0].mxu0 %v206
  %v294 = vpop.f32.mrb[0].mxu0
  %v295 = vadd.f32 %v246, %v294
  %v296 = vpop.f32.mrb[0].mxu0
  %v297 = vpop.f32.mrb[0].mxu0
  %v298 = vadd.f32 %v249, %v297
  %v299 = vpop.f32.mrb[0].mxu0
  %300 = vmatprep.mubr.bf16.mxu0 0
  %301 = vmatmul.mubr.bf16.gmra.mrb[0].mxu0 %v209
  %v302 = vpop.f32.mrb[0].mxu0
  %v303 = vadd.f32 %v254, %v302
  %v304 = vpop.f32.mrb[0].mxu0
  %v305 = vpop.f32.mrb[0].mxu0
  %v306 = vadd.f32 %v257, %v305
  %v307 = vpop.f32.mrb[0].mxu0
  %308 = vdwg.mxu0
  %v309 = vmax.f32 %v295, 0.0
  %v310 = vmax.f32 %v298, 0.0
  %v311 = vmax.f32 %v303, 0.0
  %v312 = vmax.f32 %v306, 0.0
  %v313 = vpack.c.bf16 %v310, %v309
  %v314 = vpack.c.bf16 %v312, %v311
  %v317 = vunpack.c.l.b16 %v313
  %v318 = vunpack.c.h.b16 %v313
  %v319 = vunpack.c.l.b16 %v314
  %v320 = vunpack.c.h.b16 %v314
  %v321 = vpack.c.b16 %v317, %v317
  %v322 = vpack.c.b16 %v318, %v318
  %v323 = vpack.c.b16 %v319, %v319
  %v324 = vpack.c.b16 %v320, %v320
  %vm329 = vcmask 257024
  %330 = vst.msk [vmem:[%s3] sm:$0xf] %vm329, %v321
  %331 = vst.msk [vmem:[%s3 + $0x4] sm:$0xf] %vm329, %v322
  %332 = vst.msk [vmem:[%s3 + $0x8] sm:$0xf] %vm329, %v323
  %333 = vst.msk [vmem:[%s3 + $0xc] sm:$0xf] %vm329, %v324
  // Predicated region
  $region14: #{resnet_generator_forward.13} parent=0 // pred_check
    _
  $region15: #{resnet_generator_forward.13} parent=0 // pred_check_branch
    %335 = sbr.rel (0) target = $region17
  $region16: #{resnet_generator_forward.13} parent=0 // pred_region
    _
  $region17: #{resnet_generator_forward.13} parent=0 // pred_fallthru
    _
  // Predicated region
  $region18: #{resnet_generator_forward.13} parent=0 // pred_check
    _
  $region19: #{resnet_generator_forward.13} parent=0 // pred_check_branch
    %337 = sbr.rel (0) target = $region21
  $region20: #{resnet_generator_forward.13} parent=0 // pred_region
    _
  $region21: #{resnet_generator_forward.13} parent=0 // pred_fallthru
    _

// kernel: tile.29
$region0: #{tile.29}
  %s0 = inlined_call_operand.vmem [shape: f32[4,16], index: 0, kind: input, shape index: {}]
  %s1 = inlined_call_operand.vmem [shape: f32[1,64], index: 1, kind: output, shape index: {}]
  $region1: #{tile.29} parent=0
    #allocation0 [shape = 'u8[4096]{0}', space=vmem, size = 0x1000, scoped, tag = 'scoped mem for output reshape']
    #allocation1 [shape = 'u8[4096]{0}', space=vmem, size = 0x1000, scoped, tag = 'scoped mem for input reshape']
    %s3 = sshllo.u32 0, 4
    %v4 = vld [vmem:[%s0] sm:%s3]
    %5 = vst [vmem:[#allocation1] sm:%s3] %v4
    %v6 = vld [vmem:[#allocation1] sm:$0x1]
    %vm7 = vcmask 130048
    %8 = vst.msk [vmem:[#allocation0] sm:$0x1] %vm7, %v6
    %s9 = scalar_lea.vmem [#allocation1], 3
    %v10 = vld [vmem:[%s9] sm:$0x1]
    %11 = vrot.lane.b32.xlu0 %v10, 48
    %v12 = vpop.permute.xlu0 %11
    %vm13 = vcmask 523648
    %14 = vst.msk [vmem:[#allocation0] sm:$0x1] %vm13, %v12
    %s15 = scalar_lea.vmem [#allocation1], 2
    %v16 = vld [vmem:[%s15] sm:$0x1]
    %17 = vrot.lane.b32.xlu0 %v16, 32
    %v18 = vpop.permute.xlu0 %17
    %vm19 = vcmask 392448
    %20 = vst.msk [vmem:[#allocation0] sm:$0x1] %vm19, %v18
    %s21 = scalar_lea.vmem [#allocation1], 1
    %v22 = vld [vmem:[%s21] sm:$0x1]
    %23 = vrot.lane.b32.xlu0 %v22, 16
    %v24 = vpop.permute.xlu0 %23
    %vm25 = vcmask 261248
    %26 = vst.msk [vmem:[#allocation0] sm:$0x1] %vm25, %v24
    %s28 = sshllo.u32 0, 1
    %v30 = vld [vmem:[#allocation0] sm:%s28]
    %s31 = sshllo.u32 0, 1
    %32 = vst [vmem:[%s1] sm:%s31] %v30

// kernel: resnet_generator_forward.14
$region0: #{resnet_generator_forward.14}
  #allocation0 [shape = 'u32[]', space=smem, size = 0x4, offset = 0x4, fixed_abs, tag = 'smem constant byte address 0x4 - core index']
  #allocation1 [shape = 'u32[144,128]{1,0:T(1,128)}', space=vmem, size = 0x12000, scoped, tag = 'internal scratch']
  %s0 = inlined_call_operand.vmem [shape: bf16[32,288], index: 0, kind: input, shape index: {}]
  %s1 = inlined_call_operand.vmem [shape: bf16[288,32], index: 1, kind: input, shape index: {}]
  %s2 = inlined_call_operand.vmem [shape: f32[1,32], index: 2, kind: input, shape index: {}]
  %s3 = inlined_call_operand.vmem [shape: bf16[32,32], index: 3, kind: input, shape index: {}]
  %s4 = inlined_call_operand.vmem [shape: bf16[32,32], index: 4, kind: output, shape index: {}]
  %s5 = sld [smem:[#allocation0]]
  $region26: #{resnet_generator_forward.14} parent=0
    _
  %s7 = ssub.s32 1, %s5
  %s8 = scalar_select 0, %s7, %s5
  // Predicated region
  $region2: #{resnet_generator_forward.14} parent=0 // pred_check
    _
  $region3: #{resnet_generator_forward.14} parent=0 // pred_check_branch
    %10 = sbr.rel (0) target = $region5
  $region4: #{resnet_generator_forward.14} parent=0 // pred_region
    _
  $region5: #{resnet_generator_forward.14} parent=0 // pred_fallthru
    _
  // Predicated region
  $region6: #{resnet_generator_forward.14} parent=0 // pred_check
    _
  $region7: #{resnet_generator_forward.14} parent=0 // pred_check_branch
    %12 = sbr.rel (0) target = $region9
  $region8: #{resnet_generator_forward.14} parent=0 // pred_region
    _
  $region9: #{resnet_generator_forward.14} parent=0 // pred_fallthru
    _
  // Predicated region
  $region10: #{resnet_generator_forward.14} parent=0 // pred_check
    _
  $region11: #{resnet_generator_forward.14} parent=0 // pred_check_branch
    %14 = sbr.rel (0) target = $region13
  $region12: #{resnet_generator_forward.14} parent=0 // pred_region
    _
  $region13: #{resnet_generator_forward.14} parent=0 // pred_fallthru
    _
  // Predicated region
  $region14: #{resnet_generator_forward.14} parent=0 // pred_check
    _
  $region15: #{resnet_generator_forward.14} parent=0 // pred_check_branch
    %16 = sbr.rel (0) target = $region17
  $region16: #{resnet_generator_forward.14} parent=0 // pred_region
    _
  $region17: #{resnet_generator_forward.14} parent=0 // pred_fallthru
    _
  %v18 = vld [vmem:[%s0] sm:$0xff]
  %v19 = vld [vmem:[%s0 + $0x8] sm:$0xf]
  %v20 = vld [vmem:[%s0 + $0xc] sm:$0xff]
  %v21 = vld [vmem:[%s0 + $0x14] sm:$0xf]
  %v22 = vld [vmem:[%s0 + $0x18] sm:$0xff]
  %v23 = vld [vmem:[%s0 + $0x20] sm:$0xf]
  %v24 = vld [vmem:[%s0 + $0x24] sm:$0xff]
  %v25 = vld [vmem:[%s0 + $0x2c] sm:$0xf]
  %v26 = vld [vmem:[%s1] sm:$0xf]
  %v27 = vld [vmem:[%s1 + $0x4] sm:$0xf]
  %v28 = vld [vmem:[%s1 + $0x8] sm:$0xf]
  %v29 = vld [vmem:[%s1 + $0xc] sm:$0xf]
  %v30 = vld [vmem:[%s1 + $0x10] sm:$0xf]
  %v31 = vld [vmem:[%s1 + $0x14] sm:$0xf]
  %v32 = vld [vmem:[%s1 + $0x18] sm:$0xf]
  %v33 = vld [vmem:[%s1 + $0x1c] sm:$0xf]
  %v34 = vld [vmem:[%s1 + $0x20] sm:$0xf]
  %v35 = vld [vmem:[%s1 + $0x24] sm:$0xf]
  %v36 = vld [vmem:[%s1 + $0x28] sm:$0xf]
  %v37 = vld [vmem:[%s1 + $0x2c] sm:$0xf]
  %v38 = vld [vmem:[%s1 + $0x30] sm:$0xf]
  %v39 = vld [vmem:[%s1 + $0x34] sm:$0xf]
  %v40 = vld [vmem:[%s1 + $0x38] sm:$0xf]
  %v41 = vld [vmem:[%s1 + $0x3c] sm:$0xf]
  %v42 = vld [vmem:[%s1 + $0x40] sm:$0xf]
  %v43 = vld [vmem:[%s1 + $0x44] sm:$0xf]
  %v44 = vld [vmem:[%s1 + $0x48] sm:$0xf]
  %v45 = vld [vmem:[%s1 + $0x4c] sm:$0xf]
  %v46 = vld [vmem:[%s1 + $0x50] sm:$0xf]
  %v47 = vld [vmem:[%s1 + $0x54] sm:$0xf]
  %v48 = vld [vmem:[%s1 + $0x58] sm:$0xf]
  %v49 = vld [vmem:[%s1 + $0x5c] sm:$0xf]
  %v50 = vld [vmem:[%s1 + $0x60] sm:$0xf]
  %v51 = vld [vmem:[%s1 + $0x64] sm:$0xf]
  %v52 = vld [vmem:[%s1 + $0x68] sm:$0xf]
  %v53 = vld [vmem:[%s1 + $0x6c] sm:$0xf]
  %v54 = vld [vmem:[%s1 + $0x70] sm:$0xf]
  %v55 = vld [vmem:[%s1 + $0x74] sm:$0xf]
  %v56 = vld [vmem:[%s1 + $0x78] sm:$0xf]
  %v57 = vld [vmem:[%s1 + $0x7c] sm:$0xf]
  %v58 = vld [vmem:[%s1 + $0x80] sm:$0xf]
  %v59 = vld [vmem:[%s1 + $0x84] sm:$0xf]
  %v60 = vld [vmem:[%s1 + $0x88] sm:$0xf]
  %v61 = vld [vmem:[%s1 + $0x8c] sm:$0xf]
  %v62 = vld [vmem:[%s2] sm:$0x1]
  %v64 = vlaneseq
  %v65 = vshrl.u32 %v64, 7
  %v66 = vsub.s32 0, %v65
  %v67 = vrot.slane %v62, %v66
  %v77 = vunpack.c.l.b16 %v18
  %v78 = vunpack.c.h.b16 %v18
  %v79 = vunpack.c.l.b16 %v19
  %v80 = vunpack.c.l.b16 %v20
  %v81 = vunpack.c.h.b16 %v20
  %v82 = vunpack.c.l.b16 %v21
  %v83 = vunpack.c.l.b16 %v22
  %v84 = vunpack.c.h.b16 %v22
  %v85 = vunpack.c.l.b16 %v23
  %v86 = vunpack.c.l.b16 %v24
  %v87 = vunpack.c.h.b16 %v24
  %v88 = vunpack.c.l.b16 %v25
  %v89 = vpack.c.b16 %v80, %v77
  %v90 = vpack.c.b16 %v81, %v78
  %v91 = vpack.c.b16 %v82, %v79
  %v92 = vpack.c.b16 %v86, %v83
  %v93 = vpack.c.b16 %v87, %v84
  %v94 = vpack.c.b16 %v88, %v85
  %v135 = vunpack.c.l.b16 %v26
  %v136 = vunpack.c.l.b16 %v27
  %v137 = vunpack.c.l.b16 %v28
  %v138 = vunpack.c.l.b16 %v29
  %v139 = vunpack.c.l.b16 %v30
  %v140 = vunpack.c.l.b16 %v31
  %v141 = vunpack.c.l.b16 %v32
  %v142 = vunpack.c.l.b16 %v33
  %v143 = vunpack.c.l.b16 %v34
  %v144 = vunpack.c.l.b16 %v35
  %v145 = vunpack.c.l.b16 %v36
  %v146 = vunpack.c.l.b16 %v37
  %v147 = vunpack.c.l.b16 %v38
  %v148 = vunpack.c.l.b16 %v39
  %v149 = vunpack.c.l.b16 %v40
  %v150 = vunpack.c.l.b16 %v41
  %v151 = vunpack.c.l.b16 %v42
  %v152 = vunpack.c.l.b16 %v43
  %v153 = vunpack.c.l.b16 %v44
  %v154 = vunpack.c.l.b16 %v45
  %v155 = vunpack.c.l.b16 %v46
  %v156 = vunpack.c.l.b16 %v47
  %v157 = vunpack.c.l.b16 %v48
  %v158 = vunpack.c.l.b16 %v49
  %v159 = vunpack.c.l.b16 %v50
  %v160 = vunpack.c.l.b16 %v51
  %v161 = vunpack.c.l.b16 %v52
  %v162 = vunpack.c.l.b16 %v53
  %v163 = vunpack.c.l.b16 %v54
  %v164 = vunpack.c.l.b16 %v55
  %v165 = vunpack.c.l.b16 %v56
  %v166 = vunpack.c.l.b16 %v57
  %v167 = vunpack.c.l.b16 %v58
  %v168 = vunpack.c.l.b16 %v59
  %v169 = vunpack.c.l.b16 %v60
  %v170 = vunpack.c.l.b16 %v61
  %v171 = vpack.c.b16 %v136, %v135
  %v172 = vpack.c.b16 %v138, %v137
  %v173 = vpack.c.b16 %v140, %v139
  %v174 = vpack.c.b16 %v142, %v141
  %v175 = vpack.c.b16 %v144, %v143
  %v176 = vpack.c.b16 %v146, %v145
  %v177 = vpack.c.b16 %v148, %v147
  %v178 = vpack.c.b16 %v150, %v149
  %v179 = vpack.c.b16 %v152, %v151
  %v180 = vpack.c.b16 %v154, %v153
  %v181 = vpack.c.b16 %v156, %v155
  %v182 = vpack.c.b16 %v158, %v157
  %v183 = vpack.c.b16 %v160, %v159
  %v184 = vpack.c.b16 %v162, %v161
  %v185 = vpack.c.b16 %v164, %v163
  %v186 = vpack.c.b16 %v166, %v165
  %v187 = vpack.c.b16 %v168, %v167
  %v188 = vpack.c.b16 %v170, %v169
  %vm207 = vcmask 261120
  %v209 = vsel %vm207, %v91, 0
  %v212 = vsel %vm207, %v94, 0
  %214 = vmatprep.subr.bf16.mxu0 0
  %215 = vmatpush1.bf16.msra.mxu0 %v171
  %216 = vmatprep.subr.bf16.mxu0 0
  %217 = vmatpush1.bf16.msra.mxu0 %v172
  %218 = vmatprep.subr.bf16.mxu0 0
  %219 = vmatpush1.bf16.msra.mxu0 %v173
  %220 = vmatprep.subr.bf16.mxu0 0
  %221 = vmatpush1.bf16.msra.mxu0 %v174
  %222 = vmatprep.subr.bf16.mxu0 0
  %223 = vmatpush1.bf16.msra.mxu0 %v175
  %224 = vmatprep.subr.bf16.mxu0 0
  %225 = vmatpush1.bf16.msra.mxu0 %v176
  %226 = vmatprep.subr.bf16.mxu0 0
  %227 = vmatpush1.bf16.msra.mxu0 %v177
  %228 = vmatprep.subr.bf16.mxu0 0
  %229 = vmatpush1.bf16.msra.mxu0 %v178
  %230 = vmatprep.subr.bf16.mxu0 0
  %231 = vmatpush1.bf16.msra.mxu0 %v179
  %232 = vmatprep.subr.bf16.mxu0 0
  %233 = vmatpush1.bf16.msra.mxu0 %v180
  %234 = vmatprep.subr.bf16.mxu0 0
  %235 = vmatpush1.bf16.msra.mxu0 %v181
  %236 = vmatprep.subr.bf16.mxu0 0
  %237 = vmatpush1.bf16.msra.mxu0 %v182
  %238 = vmatprep.subr.bf16.mxu0 0
  %239 = vmatpush1.bf16.msra.mxu0 %v183
  %240 = vmatprep.subr.bf16.mxu0 0
  %241 = vmatpush1.bf16.msra.mxu0 %v184
  %242 = vmatprep.subr.bf16.mxu0 0
  %243 = vmatpush1.bf16.msra.mxu0 %v185
  %244 = vmatprep.subr.bf16.mxu0 0
  %245 = vmatpush1.bf16.msra.mxu0 %v186
  %246 = vmatprep.mubr.bf16.mxu0 %v90
  %247 = vmatmul.mubr.bf16.gmra.mrb[0].mxu0 %v89
  %v248 = vpop.f32.mrb[0].mxu0
  %v249 = vadd.f32 %v67, %v248
  %v250 = vpop.f32.mrb[0].mxu0
  %v251 = vpop.f32.mrb[0].mxu0
  %v252 = vadd.f32 %v67, %v251
  %v253 = vpop.f32.mrb[0].mxu0
  %254 = vmatprep.mubr.bf16.mxu0 %v93
  %255 = vmatmul.mubr.bf16.gmra.mrb[0].mxu0 %v92
  %v256 = vpop.f32.mrb[0].mxu0
  %v257 = vadd.f32 %v67, %v256
  %v258 = vpop.f32.mrb[0].mxu0
  %v259 = vpop.f32.mrb[0].mxu0
  %v260 = vadd.f32 %v67, %v259
  %v261 = vpop.f32.mrb[0].mxu0
  %262 = vdwg.mxu0
  %263 = vmatprep.subr.bf16.mxu0 0
  %264 = vmatpush1.bf16.msra.mxu0 %v187
  %265 = vmatprep.subr.bf16.mxu0 0
  %266 = vmatpush1.bf16.msra.mxu0 %v188
  %267 = vmatprep.subr.bf16.mxu0 0
  %268 = vmatpush1.bf16.msra.mxu0 0
  %269 = vmatprep.subr.bf16.mxu0 0
  %270 = vmatpush1.bf16.msra.mxu0 0
  %271 = vmatprep.subr.bf16.mxu0 0
  %272 = vmatpush1.bf16.msra.mxu0 0
  %273 = vmatprep.subr.bf16.mxu0 0
  %274 = vmatpush1.bf16.msra.mxu0 0
  %275 = vmatprep.subr.bf16.mxu0 0
  %276 = vmatpush1.bf16.msra.mxu0 0
  %277 = vmatprep.subr.bf16.mxu0 0
  %278 = vmatpush1.bf16.msra.mxu0 0
  %279 = vmatprep.subr.bf16.mxu0 0
  %280 = vmatpush1.bf16.msra.mxu0 0
  %281 = vmatprep.subr.bf16.mxu0 0
  %282 = vmatpush1.bf16.msra.mxu0 0
  %283 = vmatprep.subr.bf16.mxu0 0
  %284 = vmatpush1.bf16.msra.mxu0 0
  %285 = vmatprep.subr.bf16.mxu0 0
  %286 = vmatpush1.bf16.msra.mxu0 0
  %287 = vmatprep.subr.bf16.mxu0 0
  %288 = vmatpush1.bf16.msra.mxu0 0
  %289 = vmatprep.subr.bf16.mxu0 0
  %290 = vmatpush1.bf16.msra.mxu0 0
  %291 = vmatprep.subr.bf16.mxu0 0
  %292 = vmatpush1.bf16.msra.mxu0 0
  %293 = vmatprep.subr.bf16.mxu0 0
  %294 = vmatpush1.bf16.msra.mxu0 0
  %295 = vmatprep.mubr.bf16.mxu0 0
  %296 = vmatmul.mubr.bf16.gmra.mrb[0].mxu0 %v209
  %v297 = vpop.f32.mrb[0].mxu0
  %v298 = vadd.f32 %v249, %v297
  %v299 = vpop.f32.mrb[0].mxu0
  %v300 = vpop.f32.mrb[0].mxu0
  %v301 = vadd.f32 %v252, %v300
  %v302 = vpop.f32.mrb[0].mxu0
  %303 = vmatprep.mubr.bf16.mxu0 0
  %304 = vmatmul.mubr.bf16.gmra.mrb[0].mxu0 %v212
  %v305 = vpop.f32.mrb[0].mxu0
  %v306 = vadd.f32 %v257, %v305
  %v307 = vpop.f32.mrb[0].mxu0
  %v308 = vpop.f32.mrb[0].mxu0
  %v309 = vadd.f32 %v260, %v308
  %v310 = vpop.f32.mrb[0].mxu0
  %311 = vdwg.mxu0
  %v312 = vld [vmem:[%s3] sm:$0xf]
  %v313 = vld [vmem:[%s3 + $0x4] sm:$0xf]
  %v314 = vld [vmem:[%s3 + $0x8] sm:$0xf]
  %v315 = vld [vmem:[%s3 + $0xc] sm:$0xf]
  %v316 = vunpack.c.l.bf16 %v312
  %v317 = vunpack.c.l.bf16 %v313
  %v318 = vunpack.c.l.bf16 %v314
  %v319 = vunpack.c.l.bf16 %v315
  %v320 = vadd.f32 %v298, %v316
  %v321 = vadd.f32 %v301, %v317
  %v322 = vadd.f32 %v306, %v318
  %v323 = vadd.f32 %v309, %v319
  %v324 = vpack.c.bf16 %v321, %v320
  %v325 = vpack.c.bf16 %v323, %v322
  %v328 = vunpack.c.l.b16 %v324
  %v329 = vunpack.c.h.b16 %v324
  %v330 = vunpack.c.l.b16 %v325
  %v331 = vunpack.c.h.b16 %v325
  %v332 = vpack.c.b16 %v328, %v328
  %v333 = vpack.c.b16 %v329, %v329
  %v334 = vpack.c.b16 %v330, %v330
  %v335 = vpack.c.b16 %v331, %v331
  %vm340 = vcmask 257024
  %341 = vst.msk [vmem:[%s4] sm:$0xf] %vm340, %v332
  %342 = vst.msk [vmem:[%s4 + $0x4] sm:$0xf] %vm340, %v333
  %343 = vst.msk [vmem:[%s4 + $0x8] sm:$0xf] %vm340, %v334
  %344 = vst.msk [vmem:[%s4 + $0xc] sm:$0xf] %vm340, %v335
  // Predicated region
  $region18: #{resnet_generator_forward.14} parent=0 // pred_check
    _
  $region19: #{resnet_generator_forward.14} parent=0 // pred_check_branch
    %346 = sbr.rel (0) target = $region21
  $region20: #{resnet_generator_forward.14} parent=0 // pred_region
    _
  $region21: #{resnet_generator_forward.14} parent=0 // pred_fallthru
    _
  // Predicated region
  $region22: #{resnet_generator_forward.14} parent=0 // pred_check
    _
  $region23: #{resnet_generator_forward.14} parent=0 // pred_check_branch
    %348 = sbr.rel (0) target = $region25
  $region24: #{resnet_generator_forward.14} parent=0 // pred_region
    _
  $region25: #{resnet_generator_forward.14} parent=0 // pred_fallthru
    _

// kernel: mul.87
$region0: #{mul.87}
  %s0 = inlined_call_operand.vmem [shape: f32[4,8], index: 0, kind: input, shape index: {}]
  %s1 = inlined_call_operand.vmem [shape: f32[32], index: 1, kind: output, shape index: {}]
  $region1: #{mul.87} parent=0
    #allocation0 [shape = 'u8[4096]{0}', space=vmem, size = 0x1000, scoped, tag = 'scoped mem for output reshape']
    #allocation1 [shape = 'u8[4096]{0}', space=vmem, size = 0x1000, scoped, tag = 'scoped mem for input reshape']
    %s3 = sshllo.u32 0, 4
    %v4 = vld [vmem:[%s0] sm:%s3]
    %5 = vst [vmem:[#allocation1] sm:%s3] %v4
    %v6 = vld [vmem:[#allocation1] sm:$0x1]
    %vm7 = vcmask 64512
    %8 = vst.msk [vmem:[#allocation0] sm:$0x1] %vm7, %v6
    %s9 = scalar_lea.vmem [#allocation1], 3
    %v10 = vld [vmem:[%s9] sm:$0x1]
    %11 = vrot.lane.b32.xlu0 %v10, 24
    %v12 = vpop.permute.xlu0 %11
    %vm13 = vcmask 261312
    %14 = vst.msk [vmem:[#allocation0] sm:$0x1] %vm13, %v12
    %s15 = scalar_lea.vmem [#allocation1], 2
    %v16 = vld [vmem:[%s15] sm:$0x1]
    %17 = vrot.lane.b32.xlu0 %v16, 16
    %v18 = vpop.permute.xlu0 %17
    %vm19 = vcmask 195712
    %20 = vst.msk [vmem:[#allocation0] sm:$0x1] %vm19, %v18
    %s21 = scalar_lea.vmem [#allocation1], 1
    %v22 = vld [vmem:[%s21] sm:$0x1]
    %23 = vrot.lane.b32.xlu0 %v22, 8
    %v24 = vpop.permute.xlu0 %23
    %vm25 = vcmask 130112
    %26 = vst.msk [vmem:[#allocation0] sm:$0x1] %vm25, %v24
    %s28 = sshllo.u32 0, 1
    %v30 = vld [vmem:[#allocation0] sm:%s28]
    %s31 = sshllo.u32 0, 1
    %32 = vst [vmem:[%s1] sm:%s31] %v30

// kernel: tile.33
$region0: #{tile.33}
  #allocation0 [shape = 's32[1]{0}', space=sflag, size = 0x4, scoped, tag = 'scoped memory for tile.33']
  %s0 = inlined_call_operand.vmem [shape: f32[8], index: 0, kind: input, shape index: {}]
  %s1 = inlined_call_operand.vmem [shape: f32[4,8], index: 1, kind: output, shape index: {}]
  // Predicated region
  $region2: #{tile.33} parent=0 // pred_check
    _
  $region3: #{tile.33} parent=0 // pred_check_branch
    %3 = sbr.rel (0) target = $region5
  $region4: #{tile.33} parent=0 // pred_region
    _
  $region5: #{tile.33} parent=0 // pred_fallthru
    _
  %v4 = vld [vmem:[%s0] ss:$0 sm:$0xff]
  %5 = vst [vmem:[%s1] sm:$0xf] %v4

// kernel: resnet_generator_forward.17
$region0: #{resnet_generator_forward.17}
  #allocation0 [shape = 'u32[]', space=smem, size = 0x4, offset = 0x4, fixed_abs, tag = 'smem constant byte address 0x4 - core index']
  #allocation1 [shape = 'u32[144,128]{1,0:T(1,128)}', space=vmem, size = 0x12000, scoped, tag = 'internal scratch']
  %s0 = inlined_call_operand.vmem [shape: bf16[32,128], index: 0, kind: input, shape index: {}]
  %s1 = inlined_call_operand.vmem [shape: bf16[128,64], index: 1, kind: input, shape index: {}]
  %s2 = inlined_call_operand.vmem [shape: f32[1,64], index: 2, kind: input, shape index: {}]
  %s3 = inlined_call_operand.vmem [shape: bf16[32,64], index: 3, kind: output, shape index: {}]
  %s4 = sld [smem:[#allocation0]]
  $region22: #{resnet_generator_forward.17} parent=0
    _
  %s6 = ssub.s32 1, %s4
  %s7 = scalar_select 0, %s6, %s4
  // Predicated region
  $region2: #{resnet_generator_forward.17} parent=0 // pred_check
    _
  $region3: #{resnet_generator_forward.17} parent=0 // pred_check_branch
    %9 = sbr.rel (0) target = $region5
  $region4: #{resnet_generator_forward.17} parent=0 // pred_region
    _
  $region5: #{resnet_generator_forward.17} parent=0 // pred_fallthru
    _
  // Predicated region
  $region6: #{resnet_generator_forward.17} parent=0 // pred_check
    _
  $region7: #{resnet_generator_forward.17} parent=0 // pred_check_branch
    %11 = sbr.rel (0) target = $region9
  $region8: #{resnet_generator_forward.17} parent=0 // pred_region
    _
  $region9: #{resnet_generator_forward.17} parent=0 // pred_fallthru
    _
  // Predicated region
  $region10: #{resnet_generator_forward.17} parent=0 // pred_check
    _
  $region11: #{resnet_generator_forward.17} parent=0 // pred_check_branch
    %13 = sbr.rel (0) target = $region13
  $region12: #{resnet_generator_forward.17} parent=0 // pred_region
    _
  $region13: #{resnet_generator_forward.17} parent=0 // pred_fallthru
    _
  %v15 = vld [vmem:[%s0] sm:$0xf]
  %v16 = vld [vmem:[%s0 + $0x4] sm:$0xf]
  %v17 = vld [vmem:[%s0 + $0x8] sm:$0xf]
  %v18 = vld [vmem:[%s0 + $0xc] sm:$0xf]
  %v19 = vld [vmem:[%s1] sm:$0xf]
  %v20 = vld [vmem:[%s1 + $0x4] sm:$0xf]
  %v21 = vld [vmem:[%s1 + $0x8] sm:$0xf]
  %v22 = vld [vmem:[%s1 + $0xc] sm:$0xf]
  %v23 = vld [vmem:[%s1 + $0x10] sm:$0xf]
  %v24 = vld [vmem:[%s1 + $0x14] sm:$0xf]
  %v25 = vld [vmem:[%s1 + $0x18] sm:$0xf]
  %v26 = vld [vmem:[%s1 + $0x1c] sm:$0xf]
  %v27 = vld [vmem:[%s1 + $0x20] sm:$0xf]
  %v28 = vld [vmem:[%s1 + $0x24] sm:$0xf]
  %v29 = vld [vmem:[%s1 + $0x28] sm:$0xf]
  %v30 = vld [vmem:[%s1 + $0x2c] sm:$0xf]
  %v31 = vld [vmem:[%s1 + $0x30] sm:$0xf]
  %v32 = vld [vmem:[%s1 + $0x34] sm:$0xf]
  %v33 = vld [vmem:[%s1 + $0x38] sm:$0xf]
  %v34 = vld [vmem:[%s1 + $0x3c] sm:$0xf]
  %v35 = vld [vmem:[%s2] sm:$0x1]
  %v37 = vlaneseq
  %v38 = vshrl.u32 %v37, 7
  %v39 = vsub.s32 0, %v38
  %v40 = vrot.slane %v35, %v39
  %v46 = vunpack.c.l.b16 %v15
  %v47 = vunpack.c.l.b16 %v16
  %v48 = vunpack.c.l.b16 %v17
  %v49 = vunpack.c.l.b16 %v18
  %v50 = vpack.c.b16 %v47, %v46
  %v51 = vpack.c.b16 %v49, %v48
  %v70 = vunpack.c.l.b16 %v19
  %v71 = vunpack.c.l.b16 %v20
  %v72 = vunpack.c.l.b16 %v21
  %v73 = vunpack.c.l.b16 %v22
  %v74 = vunpack.c.l.b16 %v23
  %v75 = vunpack.c.l.b16 %v24
  %v76 = vunpack.c.l.b16 %v25
  %v77 = vunpack.c.l.b16 %v26
  %v78 = vunpack.c.l.b16 %v27
  %v79 = vunpack.c.l.b16 %v28
  %v80 = vunpack.c.l.b16 %v29
  %v81 = vunpack.c.l.b16 %v30
  %v82 = vunpack.c.l.b16 %v31
  %v83 = vunpack.c.l.b16 %v32
  %v84 = vunpack.c.l.b16 %v33
  %v85 = vunpack.c.l.b16 %v34
  %v86 = vpack.c.b16 %v71, %v70
  %v87 = vpack.c.b16 %v73, %v72
  %v88 = vpack.c.b16 %v75, %v74
  %v89 = vpack.c.b16 %v77, %v76
  %v90 = vpack.c.b16 %v79, %v78
  %v91 = vpack.c.b16 %v81, %v80
  %v92 = vpack.c.b16 %v83, %v82
  %v93 = vpack.c.b16 %v85, %v84
  %102 = vmatprep.subr.bf16.mxu0 0
  %103 = vmatpush1.bf16.msra.mxu0 %v86
  %104 = vmatprep.subr.bf16.mxu0 0
  %105 = vmatpush1.bf16.msra.mxu0 %v87
  %106 = vmatprep.subr.bf16.mxu0 0
  %107 = vmatpush1.bf16.msra.mxu0 %v88
  %108 = vmatprep.subr.bf16.mxu0 0
  %109 = vmatpush1.bf16.msra.mxu0 %v89
  %110 = vmatprep.subr.bf16.mxu0 0
  %111 = vmatpush1.bf16.msra.mxu0 %v90
  %112 = vmatprep.subr.bf16.mxu0 0
  %113 = vmatpush1.bf16.msra.mxu0 %v91
  %114 = vmatprep.subr.bf16.mxu0 0
  %115 = vmatpush1.bf16.msra.mxu0 %v92
  %116 = vmatprep.subr.bf16.mxu0 0
  %117 = vmatpush1.bf16.msra.mxu0 %v93
  %118 = vmatprep.subr.bf16.mxu0 0
  %119 = vmatpush1.bf16.msra.mxu0 0
  %120 = vmatprep.subr.bf16.mxu0 0
  %121 = vmatpush1.bf16.msra.mxu0 0
  %122 = vmatprep.subr.bf16.mxu0 0
  %123 = vmatpush1.bf16.msra.mxu0 0
  %124 = vmatprep.subr.bf16.mxu0 0
  %125 = vmatpush1.bf16.msra.mxu0 0
  %126 = vmatprep.subr.bf16.mxu0 0
  %127 = vmatpush1.bf16.msra.mxu0 0
  %128 = vmatprep.subr.bf16.mxu0 0
  %129 = vmatpush1.bf16.msra.mxu0 0
  %130 = vmatprep.subr.bf16.mxu0 0
  %131 = vmatpush1.bf16.msra.mxu0 0
  %132 = vmatprep.subr.bf16.mxu0 0
  %133 = vmatpush1.bf16.msra.mxu0 0
  %134 = vmatprep.mubr.bf16.mxu0 0
  %135 = vmatmul.mubr.bf16.gmra.mrb[0].mxu0 %v50
  %v136 = vpop.f32.mrb[0].mxu0
  %v137 = vadd.f32 %v40, %v136
  %v138 = vpop.f32.mrb[0].mxu0
  %v139 = vpop.f32.mrb[0].mxu0
  %v140 = vadd.f32 %v40, %v139
  %v141 = vpop.f32.mrb[0].mxu0
  %142 = vmatprep.mubr.bf16.mxu0 0
  %143 = vmatmul.mubr.bf16.gmra.mrb[0].mxu0 %v51
  %v144 = vpop.f32.mrb[0].mxu0
  %v145 = vadd.f32 %v40, %v144
  %v146 = vpop.f32.mrb[0].mxu0
  %v147 = vpop.f32.mrb[0].mxu0
  %v148 = vadd.f32 %v40, %v147
  %v149 = vpop.f32.mrb[0].mxu0
  %150 = vdwg.mxu0
  %v151 = vmax.f32 %v137, 0.0
  %v152 = vmax.f32 %v140, 0.0
  %v153 = vmax.f32 %v145, 0.0
  %v154 = vmax.f32 %v148, 0.0
  %v155 = vpack.c.bf16 %v152, %v151
  %v156 = vpack.c.bf16 %v154, %v153
  %v159 = vunpack.c.l.b16 %v155
  %v160 = vunpack.c.h.b16 %v155
  %v161 = vunpack.c.l.b16 %v156
  %v162 = vunpack.c.h.b16 %v156
  %v163 = vpack.c.b16 %v159, %v159
  %v164 = vpack.c.b16 %v160, %v160
  %v165 = vpack.c.b16 %v161, %v161
  %v166 = vpack.c.b16 %v162, %v162
  %vm171 = vcmask 519168
  %172 = vst.msk [vmem:[%s3] sm:$0xf] %vm171, %v163
  %173 = vst.msk [vmem:[%s3 + $0x4] sm:$0xf] %vm171, %v164
  %174 = vst.msk [vmem:[%s3 + $0x8] sm:$0xf] %vm171, %v165
  %175 = vst.msk [vmem:[%s3 + $0xc] sm:$0xf] %vm171, %v166
  // Predicated region
  $region14: #{resnet_generator_forward.17} parent=0 // pred_check
    _
  $region15: #{resnet_generator_forward.17} parent=0 // pred_check_branch
    %177 = sbr.rel (0) target = $region17
  $region16: #{resnet_generator_forward.17} parent=0 // pred_region
    _
  $region17: #{resnet_generator_forward.17} parent=0 // pred_fallthru
    _
  // Predicated region
  $region18: #{resnet_generator_forward.17} parent=0 // pred_check
    _
  $region19: #{resnet_generator_forward.17} parent=0 // pred_check_branch
    %179 = sbr.rel (0) target = $region21
  $region20: #{resnet_generator_forward.17} parent=0 // pred_region
    _
  $region21: #{resnet_generator_forward.17} parent=0 // pred_fallthru
    _

// kernel: tile.39
$region0: #{tile.39}
  %s0 = inlined_call_operand.vmem [shape: f32[4,8], index: 0, kind: input, shape index: {}]
  %s1 = inlined_call_operand.vmem [shape: f32[1,32], index: 1, kind: output, shape index: {}]
  $region1: #{tile.39} parent=0
    #allocation0 [shape = 'u8[4096]{0}', space=vmem, size = 0x1000, scoped, tag = 'scoped mem for output reshape']
    #allocation1 [shape = 'u8[4096]{0}', space=vmem, size = 0x1000, scoped, tag = 'scoped mem for input reshape']
    %s3 = sshllo.u32 0, 4
    %v4 = vld [vmem:[%s0] sm:%s3]
    %5 = vst [vmem:[#allocation1] sm:%s3] %v4
    %v6 = vld [vmem:[#allocation1] sm:$0x1]
    %vm7 = vcmask 64512
    %8 = vst.msk [vmem:[#allocation0] sm:$0x1] %vm7, %v6
    %s9 = scalar_lea.vmem [#allocation1], 3
    %v10 = vld [vmem:[%s9] sm:$0x1]
    %11 = vrot.lane.b32.xlu0 %v10, 24
    %v12 = vpop.permute.xlu0 %11
    %vm13 = vcmask 261312
    %14 = vst.msk [vmem:[#allocation0] sm:$0x1] %vm13, %v12
    %s15 = scalar_lea.vmem [#allocation1], 2
    %v16 = vld [vmem:[%s15] sm:$0x1]
    %17 = vrot.lane.b32.xlu0 %v16, 16
    %v18 = vpop.permute.xlu0 %17
    %vm19 = vcmask 195712
    %20 = vst.msk [vmem:[#allocation0] sm:$0x1] %vm19, %v18
    %s21 = scalar_lea.vmem [#allocation1], 1
    %v22 = vld [vmem:[%s21] sm:$0x1]
    %23 = vrot.lane.b32.xlu0 %v22, 8
    %v24 = vpop.permute.xlu0 %23
    %vm25 = vcmask 130112
    %26 = vst.msk [vmem:[#allocation0] sm:$0x1] %vm25, %v24
    %s28 = sshllo.u32 0, 1
    %v30 = vld [vmem:[#allocation0] sm:%s28]
    %s31 = sshllo.u32 0, 1
    %32 = vst [vmem:[%s1] sm:%s31] %v30

// kernel: resnet_generator_forward.18
$region0: #{resnet_generator_forward.18}
  #allocation0 [shape = 'u32[]', space=smem, size = 0x4, offset = 0x4, fixed_abs, tag = 'smem constant byte address 0x4 - core index']
  #allocation1 [shape = 'u32[144,128]{1,0:T(1,128)}', space=vmem, size = 0x12000, scoped, tag = 'internal scratch']
  %s0 = inlined_call_operand.vmem [shape: bf16[128,64], index: 0, kind: input, shape index: {}]
  %s1 = inlined_call_operand.vmem [shape: bf16[64,32], index: 1, kind: input, shape index: {}]
  %s2 = inlined_call_operand.vmem [shape: f32[1,32], index: 2, kind: input, shape index: {}]
  %s3 = inlined_call_operand.vmem [shape: bf16[128,32], index: 3, kind: output, shape index: {}]
  %s4 = sld [smem:[#allocation0]]
  $region22: #{resnet_generator_forward.18} parent=0
    _
  %s6 = ssub.s32 1, %s4
  %s7 = scalar_select 0, %s6, %s4
  // Predicated region
  $region2: #{resnet_generator_forward.18} parent=0 // pred_check
    _
  $region3: #{resnet_generator_forward.18} parent=0 // pred_check_branch
    %9 = sbr.rel (0) target = $region5
  $region4: #{resnet_generator_forward.18} parent=0 // pred_region
    _
  $region5: #{resnet_generator_forward.18} parent=0 // pred_fallthru
    _
  // Predicated region
  $region6: #{resnet_generator_forward.18} parent=0 // pred_check
    _
  $region7: #{resnet_generator_forward.18} parent=0 // pred_check_branch
    %11 = sbr.rel (0) target = $region9
  $region8: #{resnet_generator_forward.18} parent=0 // pred_region
    _
  $region9: #{resnet_generator_forward.18} parent=0 // pred_fallthru
    _
  // Predicated region
  $region10: #{resnet_generator_forward.18} parent=0 // pred_check
    _
  $region11: #{resnet_generator_forward.18} parent=0 // pred_check_branch
    %13 = sbr.rel (0) target = $region13
  $region12: #{resnet_generator_forward.18} parent=0 // pred_region
    _
  $region13: #{resnet_generator_forward.18} parent=0 // pred_fallthru
    _
  %v15 = vld [vmem:[%s0] sm:$0xf]
  %v16 = vld [vmem:[%s0 + $0x4] sm:$0xf]
  %v17 = vld [vmem:[%s0 + $0x8] sm:$0xf]
  %v18 = vld [vmem:[%s0 + $0xc] sm:$0xf]
  %v19 = vld [vmem:[%s0 + $0x10] sm:$0xf]
  %v20 = vld [vmem:[%s0 + $0x14] sm:$0xf]
  %v21 = vld [vmem:[%s0 + $0x18] sm:$0xf]
  %v22 = vld [vmem:[%s0 + $0x1c] sm:$0xf]
  %v23 = vld [vmem:[%s0 + $0x20] sm:$0xf]
  %v24 = vld [vmem:[%s0 + $0x24] sm:$0xf]
  %v25 = vld [vmem:[%s0 + $0x28] sm:$0xf]
  %v26 = vld [vmem:[%s0 + $0x2c] sm:$0xf]
  %v27 = vld [vmem:[%s0 + $0x30] sm:$0xf]
  %v28 = vld [vmem:[%s0 + $0x34] sm:$0xf]
  %v29 = vld [vmem:[%s0 + $0x38] sm:$0xf]
  %v30 = vld [vmem:[%s0 + $0x3c] sm:$0xf]
  %v31 = vld [vmem:[%s1] sm:$0xf]
  %v32 = vld [vmem:[%s1 + $0x4] sm:$0xf]
  %v33 = vld [vmem:[%s1 + $0x8] sm:$0xf]
  %v34 = vld [vmem:[%s1 + $0xc] sm:$0xf]
  %v35 = vld [vmem:[%s1 + $0x10] sm:$0xf]
  %v36 = vld [vmem:[%s1 + $0x14] sm:$0xf]
  %v37 = vld [vmem:[%s1 + $0x18] sm:$0xf]
  %v38 = vld [vmem:[%s1 + $0x1c] sm:$0xf]
  %v39 = vld [vmem:[%s2] sm:$0x1]
  %v41 = vlaneseq
  %v42 = vshrl.u32 %v41, 7
  %v43 = vsub.s32 0, %v42
  %v44 = vrot.slane %v39, %v43
  %v62 = vunpack.c.l.b16 %v15
  %v63 = vunpack.c.l.b16 %v16
  %v64 = vunpack.c.l.b16 %v17
  %v65 = vunpack.c.l.b16 %v18
  %v66 = vunpack.c.l.b16 %v19
  %v67 = vunpack.c.l.b16 %v20
  %v68 = vunpack.c.l.b16 %v21
  %v69 = vunpack.c.l.b16 %v22
  %v70 = vunpack.c.l.b16 %v23
  %v71 = vunpack.c.l.b16 %v24
  %v72 = vunpack.c.l.b16 %v25
  %v73 = vunpack.c.l.b16 %v26
  %v74 = vunpack.c.l.b16 %v27
  %v75 = vunpack.c.l.b16 %v28
  %v76 = vunpack.c.l.b16 %v29
  %v77 = vunpack.c.l.b16 %v30
  %v78 = vpack.c.b16 %v63, %v62
  %v79 = vpack.c.b16 %v65, %v64
  %v80 = vpack.c.b16 %v67, %v66
  %v81 = vpack.c.b16 %v69, %v68
  %v82 = vpack.c.b16 %v71, %v70
  %v83 = vpack.c.b16 %v73, %v72
  %v84 = vpack.c.b16 %v75, %v74
  %v85 = vpack.c.b16 %v77, %v76
  %v94 = vunpack.c.l.b16 %v31
  %v95 = vunpack.c.l.b16 %v32
  %v96 = vunpack.c.l.b16 %v33
  %v97 = vunpack.c.l.b16 %v34
  %v98 = vunpack.c.l.b16 %v35
  %v99 = vunpack.c.l.b16 %v36
  %v100 = vunpack.c.l.b16 %v37
  %v101 = vunpack.c.l.b16 %v38
  %v102 = vpack.c.b16 %v95, %v94
  %v103 = vpack.c.b16 %v97, %v96
  %v104 = vpack.c.b16 %v99, %v98
  %v105 = vpack.c.b16 %v101, %v100
  %vm110 = vcmask 523264
  %v112 = vsel %vm110, %v78, 0
  %v115 = vsel %vm110, %v79, 0
  %v118 = vsel %vm110, %v80, 0
  %v121 = vsel %vm110, %v81, 0
  %v124 = vsel %vm110, %v82, 0
  %v127 = vsel %vm110, %v83, 0
  %v130 = vsel %vm110, %v84, 0
  %v133 = vsel %vm110, %v85, 0
  %135 = vmatprep.subr.bf16.mxu0 0
  %136 = vmatpush1.bf16.msra.mxu0 %v102
  %137 = vmatprep.subr.bf16.mxu0 0
  %138 = vmatpush1.bf16.msra.mxu0 %v103
  %139 = vmatprep.subr.bf16.mxu0 0
  %140 = vmatpush1.bf16.msra.mxu0 %v104
  %141 = vmatprep.subr.bf16.mxu0 0
  %142 = vmatpush1.bf16.msra.mxu0 %v105
  %143 = vmatprep.subr.bf16.mxu0 0
  %144 = vmatpush1.bf16.msra.mxu0 0
  %145 = vmatprep.subr.bf16.mxu0 0
  %146 = vmatpush1.bf16.msra.mxu0 0
  %147 = vmatprep.subr.bf16.mxu0 0
  %148 = vmatpush1.bf16.msra.mxu0 0
  %149 = vmatprep.subr.bf16.mxu0 0
  %150 = vmatpush1.bf16.msra.mxu0 0
  %151 = vmatprep.subr.bf16.mxu0 0
  %152 = vmatpush1.bf16.msra.mxu0 0
  %153 = vmatprep.subr.bf16.mxu0 0
  %154 = vmatpush1.bf16.msra.mxu0 0
  %155 = vmatprep.subr.bf16.mxu0 0
  %156 = vmatpush1.bf16.msra.mxu0 0
  %157 = vmatprep.subr.bf16.mxu0 0
  %158 = vmatpush1.bf16.msra.mxu0 0
  %159 = vmatprep.subr.bf16.mxu0 0
  %160 = vmatpush1.bf16.msra.mxu0 0
  %161 = vmatprep.subr.bf16.mxu0 0
  %162 = vmatpush1.bf16.msra.mxu0 0
  %163 = vmatprep.subr.bf16.mxu0 0
  %164 = vmatpush1.bf16.msra.mxu0 0
  %165 = vmatprep.subr.bf16.mxu0 0
  %166 = vmatpush1.bf16.msra.mxu0 0
  %167 = vmatprep.mubr.bf16.mxu0 0
  %168 = vmatmul.mubr.bf16.gmra.mrb[0].mxu0 %v112
  %v169 = vpop.f32.mrb[0].mxu0
  %v170 = vadd.f32 %v44, %v169
  %v171 = vpop.f32.mrb[0].mxu0
  %v172 = vpop.f32.mrb[0].mxu0
  %v173 = vadd.f32 %v44, %v172
  %v174 = vpop.f32.mrb[0].mxu0
  %175 = vmatprep.mubr.bf16.mxu0 0
  %176 = vmatmul.mubr.bf16.gmra.mrb[0].mxu0 %v115
  %v177 = vpop.f32.mrb[0].mxu0
  %v178 = vadd.f32 %v44, %v177
  %v179 = vpop.f32.mrb[0].mxu0
  %v180 = vpop.f32.mrb[0].mxu0
  %v181 = vadd.f32 %v44, %v180
  %v182 = vpop.f32.mrb[0].mxu0
  %183 = vmatprep.mubr.bf16.mxu0 0
  %184 = vmatmul.mubr.bf16.gmra.mrb[0].mxu0 %v118
  %v185 = vpop.f32.mrb[0].mxu0
  %v186 = vadd.f32 %v44, %v185
  %v187 = vpop.f32.mrb[0].mxu0
  %v188 = vpop.f32.mrb[0].mxu0
  %v189 = vadd.f32 %v44, %v188
  %v190 = vpop.f32.mrb[0].mxu0
  %191 = vmatprep.mubr.bf16.mxu0 0
  %192 = vmatmul.mubr.bf16.gmra.mrb[0].mxu0 %v121
  %v193 = vpop.f32.mrb[0].mxu0
  %v194 = vadd.f32 %v44, %v193
  %v195 = vpop.f32.mrb[0].mxu0
  %v196 = vpop.f32.mrb[0].mxu0
  %v197 = vadd.f32 %v44, %v196
  %v198 = vpop.f32.mrb[0].mxu0
  %199 = vmatprep.mubr.bf16.mxu0 0
  %200 = vmatmul.mubr.bf16.gmra.mrb[0].mxu0 %v124
  %v201 = vpop.f32.mrb[0].mxu0
  %v202 = vadd.f32 %v44, %v201
  %v203 = vpop.f32.mrb[0].mxu0
  %v204 = vpop.f32.mrb[0].mxu0
  %v205 = vadd.f32 %v44, %v204
  %v206 = vpop.f32.mrb[0].mxu0
  %207 = vmatprep.mubr.bf16.mxu0 0
  %208 = vmatmul.mubr.bf16.gmra.mrb[0].mxu0 %v127
  %v209 = vpop.f32.mrb[0].mxu0
  %v210 = vadd.f32 %v44, %v209
  %v211 = vpop.f32.mrb[0].mxu0
  %v212 = vpop.f32.mrb[0].mxu0
  %v213 = vadd.f32 %v44, %v212
  %v214 = vpop.f32.mrb[0].mxu0
  %215 = vmatprep.mubr.bf16.mxu0 0
  %216 = vmatmul.mubr.bf16.gmra.mrb[0].mxu0 %v130
  %v217 = vpop.f32.mrb[0].mxu0
  %v218 = vadd.f32 %v44, %v217
  %v219 = vpop.f32.mrb[0].mxu0
  %v220 = vpop.f32.mrb[0].mxu0
  %v221 = vadd.f32 %v44, %v220
  %v222 = vpop.f32.mrb[0].mxu0
  %223 = vmatprep.mubr.bf16.mxu0 0
  %224 = vmatmul.mubr.bf16.gmra.mrb[0].mxu0 %v133
  %v225 = vpop.f32.mrb[0].mxu0
  %v226 = vadd.f32 %v44, %v225
  %v227 = vpop.f32.mrb[0].mxu0
  %v228 = vpop.f32.mrb[0].mxu0
  %v229 = vadd.f32 %v44, %v228
  %v230 = vpop.f32.mrb[0].mxu0
  %231 = vdwg.mxu0
  %v232 = vmax.f32 %v170, 0.0
  %v233 = vmax.f32 %v173, 0.0
  %v234 = vmax.f32 %v178, 0.0
  %v235 = vmax.f32 %v181, 0.0
  %v236 = vmax.f32 %v186, 0.0
  %v237 = vmax.f32 %v189, 0.0
  %v238 = vmax.f32 %v194, 0.0
  %v239 = vmax.f32 %v197, 0.0
  %v240 = vmax.f32 %v202, 0.0
  %v241 = vmax.f32 %v205, 0.0
  %v242 = vmax.f32 %v210, 0.0
  %v243 = vmax.f32 %v213, 0.0
  %v244 = vmax.f32 %v218, 0.0
  %v245 = vmax.f32 %v221, 0.0
  %v246 = vmax.f32 %v226, 0.0
  %v247 = vmax.f32 %v229, 0.0
  %v248 = vpack.c.bf16 %v233, %v232
  %v249 = vpack.c.bf16 %v235, %v234
  %v250 = vpack.c.bf16 %v237, %v236
  %v251 = vpack.c.bf16 %v239, %v238
  %v252 = vpack.c.bf16 %v241, %v240
  %v253 = vpack.c.bf16 %v243, %v242
  %v254 = vpack.c.bf16 %v245, %v244
  %v255 = vpack.c.bf16 %v247, %v246
  %v264 = vunpack.c.l.b16 %v248
  %v265 = vunpack.c.h.b16 %v248
  %v266 = vunpack.c.l.b16 %v249
  %v267 = vunpack.c.h.b16 %v249
  %v268 = vunpack.c.l.b16 %v250
  %v269 = vunpack.c.h.b16 %v250
  %v270 = vunpack.c.l.b16 %v251
  %v271 = vunpack.c.h.b16 %v251
  %v272 = vunpack.c.l.b16 %v252
  %v273 = vunpack.c.h.b16 %v252
  %v274 = vunpack.c.l.b16 %v253
  %v275 = vunpack.c.h.b16 %v253
  %v276 = vunpack.c.l.b16 %v254
  %v277 = vunpack.c.h.b16 %v254
  %v278 = vunpack.c.l.b16 %v255
  %v279 = vunpack.c.h.b16 %v255
  %v280 = vpack.c.b16 %v264, %v264
  %v281 = vpack.c.b16 %v265, %v265
  %v282 = vpack.c.b16 %v266, %v266
  %v283 = vpack.c.b16 %v267, %v267
  %v284 = vpack.c.b16 %v268, %v268
  %v285 = vpack.c.b16 %v269, %v269
  %v286 = vpack.c.b16 %v270, %v270
  %v287 = vpack.c.b16 %v271, %v271
  %v288 = vpack.c.b16 %v272, %v272
  %v289 = vpack.c.b16 %v273, %v273
  %v290 = vpack.c.b16 %v274, %v274
  %v291 = vpack.c.b16 %v275, %v275
  %v292 = vpack.c.b16 %v276, %v276
  %v293 = vpack.c.b16 %v277, %v277
  %v294 = vpack.c.b16 %v278, %v278
  %v295 = vpack.c.b16 %v279, %v279
  %vm312 = vcmask 257024
  %313 = vst.msk [vmem:[%s3] sm:$0xf] %vm312, %v280
  %314 = vst.msk [vmem:[%s3 + $0x4] sm:$0xf] %vm312, %v281
  %315 = vst.msk [vmem:[%s3 + $0x8] sm:$0xf] %vm312, %v282
  %316 = vst.msk [vmem:[%s3 + $0xc] sm:$0xf] %vm312, %v283
  %317 = vst.msk [vmem:[%s3 + $0x10] sm:$0xf] %vm312, %v284
  %318 = vst.msk [vmem:[%s3 + $0x14] sm:$0xf] %vm312, %v285
  %319 = vst.msk [vmem:[%s3 + $0x18] sm:$0xf] %vm312, %v286
  %320 = vst.msk [vmem:[%s3 + $0x1c] sm:$0xf] %vm312, %v287
  %321 = vst.msk [vmem:[%s3 + $0x20] sm:$0xf] %vm312, %v288
  %322 = vst.msk [vmem:[%s3 + $0x24] sm:$0xf] %vm312, %v289
  %323 = vst.msk [vmem:[%s3 + $0x28] sm:$0xf] %vm312, %v290
  %324 = vst.msk [vmem:[%s3 + $0x2c] sm:$0xf] %vm312, %v291
  %325 = vst.msk [vmem:[%s3 + $0x30] sm:$0xf] %vm312, %v292
  %326 = vst.msk [vmem:[%s3 + $0x34] sm:$0xf] %vm312, %v293
  %327 = vst.msk [vmem:[%s3 + $0x38] sm:$0xf] %vm312, %v294
  %328 = vst.msk [vmem:[%s3 + $0x3c] sm:$0xf] %vm312, %v295
  // Predicated region
  $region14: #{resnet_generator_forward.18} parent=0 // pred_check
    _
  $region15: #{resnet_generator_forward.18} parent=0 // pred_check_branch
    %330 = sbr.rel (0) target = $region17
  $region16: #{resnet_generator_forward.18} parent=0 // pred_region
    _
  $region17: #{resnet_generator_forward.18} parent=0 // pred_fallthru
    _
  // Predicated region
  $region18: #{resnet_generator_forward.18} parent=0 // pred_check
    _
  $region19: #{resnet_generator_forward.18} parent=0 // pred_check_branch
    %332 = sbr.rel (0) target = $region21
  $region20: #{resnet_generator_forward.18} parent=0 // pred_region
    _
  $region21: #{resnet_generator_forward.18} parent=0 // pred_fallthru
    _

// kernel: resnet_generator_forward.19
$region0: #{resnet_generator_forward.19}
  #allocation0 [shape = 'u32[]', space=smem, size = 0x4, offset = 0x4, fixed_abs, tag = 'smem constant byte address 0x4 - core index']
  #allocation1 [shape = 'u32[144,128]{1,0:T(1,128)}', space=vmem, size = 0x12000, scoped, tag = 'internal scratch']
  %s0 = inlined_call_operand.vmem [shape: bf16[512,400], index: 0, kind: input, shape index: {}]
  %s1 = inlined_call_operand.vmem [shape: bf16[400,3], index: 1, kind: input, shape index: {}]
  %s2 = inlined_call_operand.vmem [shape: f32[1,3], index: 2, kind: input, shape index: {}]
  %s3 = inlined_call_operand.vmem [shape: f32[512,3], index: 3, kind: output, shape index: {}]
  %s4 = sld [smem:[#allocation0]]
  $region22: #{resnet_generator_forward.19} parent=0
    _
  %s6 = ssub.s32 1, %s4
  %s7 = scalar_select 0, %s6, %s4
  // Predicated region
  $region2: #{resnet_generator_forward.19} parent=0 // pred_check
    _
  $region3: #{resnet_generator_forward.19} parent=0 // pred_check_branch
    %9 = sbr.rel (0) target = $region5
  $region4: #{resnet_generator_forward.19} parent=0 // pred_region
    _
  $region5: #{resnet_generator_forward.19} parent=0 // pred_fallthru
    _
  // Predicated region
  $region6: #{resnet_generator_forward.19} parent=0 // pred_check
    _
  $region7: #{resnet_generator_forward.19} parent=0 // pred_check_branch
    %11 = sbr.rel (0) target = $region9
  $region8: #{resnet_generator_forward.19} parent=0 // pred_region
    _
  $region9: #{resnet_generator_forward.19} parent=0 // pred_fallthru
    _
  // Predicated region
  $region10: #{resnet_generator_forward.19} parent=0 // pred_check
    _
  $region11: #{resnet_generator_forward.19} parent=0 // pred_check_branch
    %13 = sbr.rel (0) target = $region13
  $region12: #{resnet_generator_forward.19} parent=0 // pred_region
    _
  $region13: #{resnet_generator_forward.19} parent=0 // pred_fallthru
    _
  %v15 = vld [vmem:[%s0] sm:$0xff]
  %v16 = vld [vmem:[%s0 + $0x8] sm:$0xff]
  %v17 = vld [vmem:[%s0 + $0x10] sm:$0xff]
  %v18 = vld [vmem:[%s0 + $0x18] sm:$0xff]
  %v19 = vld [vmem:[%s0 + $0x20] sm:$0xff]
  %v20 = vld [vmem:[%s0 + $0x28] sm:$0xff]
  %v21 = vld [vmem:[%s0 + $0x30] sm:$0xff]
  %v22 = vld [vmem:[%s0 + $0x38] sm:$0xff]
  %v23 = vld [vmem:[%s0 + $0x40] sm:$0xff]
  %v24 = vld [vmem:[%s0 + $0x48] sm:$0xff]
  %v25 = vld [vmem:[%s0 + $0x50] sm:$0xff]
  %v26 = vld [vmem:[%s0 + $0x58] sm:$0xff]
  %v27 = vld [vmem:[%s0 + $0x60] sm:$0xff]
  %v28 = vld [vmem:[%s0 + $0x68] sm:$0xff]
  %v29 = vld [vmem:[%s0 + $0x70] sm:$0xff]
  %v30 = vld [vmem:[%s0 + $0x78] sm:$0xff]
  %v31 = vld [vmem:[%s0 + $0x80] sm:$0xff]
  %v32 = vld [vmem:[%s0 + $0x88] sm:$0xff]
  %v33 = vld [vmem:[%s0 + $0x90] sm:$0xff]
  %v34 = vld [vmem:[%s0 + $0x98] sm:$0xff]
  %v35 = vld [vmem:[%s0 + $0xa0] sm:$0xff]
  %v36 = vld [vmem:[%s0 + $0xa8] sm:$0xff]
  %v37 = vld [vmem:[%s0 + $0xb0] sm:$0xff]
  %v38 = vld [vmem:[%s0 + $0xb8] sm:$0xff]
  %v39 = vld [vmem:[%s0 + $0xc0] sm:$0xff]
  %v40 = vld [vmem:[%s0 + $0xc8] sm:$0xff]
  %v41 = vld [vmem:[%s0 + $0xd0] sm:$0xff]
  %v42 = vld [vmem:[%s0 + $0xd8] sm:$0xff]
  %v43 = vld [vmem:[%s0 + $0xe0] sm:$0xff]
  %v44 = vld [vmem:[%s0 + $0xe8] sm:$0xff]
  %v45 = vld [vmem:[%s0 + $0xf0] sm:$0xff]
  %v46 = vld [vmem:[%s0 + $0xf8] sm:$0xff]
  %v47 = vld [vmem:[%s0 + $0x100] sm:$0xff]
  %v48 = vld [vmem:[%s0 + $0x108] sm:$0xff]
  %v49 = vld [vmem:[%s0 + $0x110] sm:$0xff]
  %v50 = vld [vmem:[%s0 + $0x118] sm:$0xff]
  %v51 = vld [vmem:[%s0 + $0x120] sm:$0xff]
  %v52 = vld [vmem:[%s0 + $0x128] sm:$0xff]
  %v53 = vld [vmem:[%s0 + $0x130] sm:$0xff]
  %v54 = vld [vmem:[%s0 + $0x138] sm:$0xff]
  %v55 = vld [vmem:[%s0 + $0x140] sm:$0xff]
  %v56 = vld [vmem:[%s0 + $0x148] sm:$0xff]
  %v57 = vld [vmem:[%s0 + $0x150] sm:$0xff]
  %v58 = vld [vmem:[%s0 + $0x158] sm:$0xff]
  %v59 = vld [vmem:[%s0 + $0x160] sm:$0xff]
  %v60 = vld [vmem:[%s0 + $0x168] sm:$0xff]
  %v61 = vld [vmem:[%s0 + $0x170] sm:$0xff]
  %v62 = vld [vmem:[%s0 + $0x178] sm:$0xff]
  %v63 = vld [vmem:[%s0 + $0x180] sm:$0xff]
  %v64 = vld [vmem:[%s0 + $0x188] sm:$0xff]
  %v65 = vld [vmem:[%s0 + $0x190] sm:$0xff]
  %v66 = vld [vmem:[%s0 + $0x198] sm:$0xff]
  %v67 = vld [vmem:[%s0 + $0x1a0] sm:$0xff]
  %v68 = vld [vmem:[%s0 + $0x1a8] sm:$0xff]
  %v69 = vld [vmem:[%s0 + $0x1b0] sm:$0xff]
  %v70 = vld [vmem:[%s0 + $0x1b8] sm:$0xff]
  %v71 = vld [vmem:[%s0 + $0x1c0] sm:$0xff]
  %v72 = vld [vmem:[%s0 + $0x1c8] sm:$0xff]
  %v73 = vld [vmem:[%s0 + $0x1d0] sm:$0xff]
  %v74 = vld [vmem:[%s0 + $0x1d8] sm:$0xff]
  %v75 = vld [vmem:[%s0 + $0x1e0] sm:$0xff]
  %v76 = vld [vmem:[%s0 + $0x1e8] sm:$0xff]
  %v77 = vld [vmem:[%s0 + $0x1f0] sm:$0xff]
  %v78 = vld [vmem:[%s0 + $0x1f8] sm:$0xff]
  %v79 = vld [vmem:[%s0 + $0x200] sm:$0xff]
  %v80 = vld [vmem:[%s0 + $0x208] sm:$0xff]
  %v81 = vld [vmem:[%s0 + $0x210] sm:$0xff]
  %v82 = vld [vmem:[%s0 + $0x218] sm:$0xff]
  %v83 = vld [vmem:[%s0 + $0x220] sm:$0xff]
  %v84 = vld [vmem:[%s0 + $0x228] sm:$0xff]
  %v85 = vld [vmem:[%s0 + $0x230] sm:$0xff]
  %v86 = vld [vmem:[%s0 + $0x238] sm:$0xff]
  %v87 = vld [vmem:[%s0 + $0x240] sm:$0xff]
  %v88 = vld [vmem:[%s0 + $0x248] sm:$0xff]
  %v89 = vld [vmem:[%s0 + $0x250] sm:$0xff]
  %v90 = vld [vmem:[%s0 + $0x258] sm:$0xff]
  %v91 = vld [vmem:[%s0 + $0x260] sm:$0xff]
  %v92 = vld [vmem:[%s0 + $0x268] sm:$0xff]
  %v93 = vld [vmem:[%s0 + $0x270] sm:$0xff]
  %v94 = vld [vmem:[%s0 + $0x278] sm:$0xff]
  %v95 = vld [vmem:[%s0 + $0x280] sm:$0xff]
  %v96 = vld [vmem:[%s0 + $0x288] sm:$0xff]
  %v97 = vld [vmem:[%s0 + $0x290] sm:$0xff]
  %v98 = vld [vmem:[%s0 + $0x298] sm:$0xff]
  %v99 = vld [vmem:[%s0 + $0x2a0] sm:$0xff]
  %v100 = vld [vmem:[%s0 + $0x2a8] sm:$0xff]
  %v101 = vld [vmem:[%s0 + $0x2b0] sm:$0xff]
  %v102 = vld [vmem:[%s0 + $0x2b8] sm:$0xff]
  %v103 = vld [vmem:[%s0 + $0x2c0] sm:$0xff]
  %v104 = vld [vmem:[%s0 + $0x2c8] sm:$0xff]
  %v105 = vld [vmem:[%s0 + $0x2d0] sm:$0xff]
  %v106 = vld [vmem:[%s0 + $0x2d8] sm:$0xff]
  %v107 = vld [vmem:[%s0 + $0x2e0] sm:$0xff]
  %v108 = vld [vmem:[%s0 + $0x2e8] sm:$0xff]
  %v109 = vld [vmem:[%s0 + $0x2f0] sm:$0xff]
  %v110 = vld [vmem:[%s0 + $0x2f8] sm:$0xff]
  %v111 = vld [vmem:[%s0 + $0x300] sm:$0xff]
  %v112 = vld [vmem:[%s0 + $0x308] sm:$0xff]
  %v113 = vld [vmem:[%s0 + $0x310] sm:$0xff]
  %v114 = vld [vmem:[%s0 + $0x318] sm:$0xff]
  %v115 = vld [vmem:[%s0 + $0x320] sm:$0xff]
  %v116 = vld [vmem:[%s0 + $0x328] sm:$0xff]
  %v117 = vld [vmem:[%s0 + $0x330] sm:$0xff]
  %v118 = vld [vmem:[%s0 + $0x338] sm:$0xff]
  %v119 = vld [vmem:[%s0 + $0x340] sm:$0xff]
  %v120 = vld [vmem:[%s0 + $0x348] sm:$0xff]
  %v121 = vld [vmem:[%s0 + $0x350] sm:$0xff]
  %v122 = vld [vmem:[%s0 + $0x358] sm:$0xff]
  %v123 = vld [vmem:[%s0 + $0x360] sm:$0xff]
  %v124 = vld [vmem:[%s0 + $0x368] sm:$0xff]
  %v125 = vld [vmem:[%s0 + $0x370] sm:$0xff]
  %v126 = vld [vmem:[%s0 + $0x378] sm:$0xff]
  %v127 = vld [vmem:[%s0 + $0x380] sm:$0xff]
  %v128 = vld [vmem:[%s0 + $0x388] sm:$0xff]
  %v129 = vld [vmem:[%s0 + $0x390] sm:$0xff]
  %v130 = vld [vmem:[%s0 + $0x398] sm:$0xff]
  %v131 = vld [vmem:[%s0 + $0x3a0] sm:$0xff]
  %v132 = vld [vmem:[%s0 + $0x3a8] sm:$0xff]
  %v133 = vld [vmem:[%s0 + $0x3b0] sm:$0xff]
  %v134 = vld [vmem:[%s0 + $0x3b8] sm:$0xff]
  %v135 = vld [vmem:[%s0 + $0x3c0] sm:$0xff]
  %v136 = vld [vmem:[%s0 + $0x3c8] sm:$0xff]
  %v137 = vld [vmem:[%s0 + $0x3d0] sm:$0xff]
  %v138 = vld [vmem:[%s0 + $0x3d8] sm:$0xff]
  %v139 = vld [vmem:[%s0 + $0x3e0] sm:$0xff]
  %v140 = vld [vmem:[%s0 + $0x3e8] sm:$0xff]
  %v141 = vld [vmem:[%s0 + $0x3f0] sm:$0xff]
  %v142 = vld [vmem:[%s0 + $0x3f8] sm:$0xff]
  %v143 = vld [vmem:[%s1] sm:$0xf]
  %v144 = vld [vmem:[%s1 + $0x4] sm:$0xf]
  %v145 = vld [vmem:[%s1 + $0x8] sm:$0xf]
  %v146 = vld [vmem:[%s1 + $0xc] sm:$0xf]
  %v147 = vld [vmem:[%s1 + $0x10] sm:$0xf]
  %v148 = vld [vmem:[%s1 + $0x14] sm:$0xf]
  %v149 = vld [vmem:[%s1 + $0x18] sm:$0xf]
  %v150 = vld [vmem:[%s1 + $0x1c] sm:$0xf]
  %v151 = vld [vmem:[%s1 + $0x20] sm:$0xf]
  %v152 = vld [vmem:[%s1 + $0x24] sm:$0xf]
  %v153 = vld [vmem:[%s1 + $0x28] sm:$0xf]
  %v154 = vld [vmem:[%s1 + $0x2c] sm:$0xf]
  %v155 = vld [vmem:[%s1 + $0x30] sm:$0xf]
  %v156 = vld [vmem:[%s1 + $0x34] sm:$0xf]
  %v157 = vld [vmem:[%s1 + $0x38] sm:$0xf]
  %v158 = vld [vmem:[%s1 + $0x3c] sm:$0xf]
  %v159 = vld [vmem:[%s1 + $0x40] sm:$0xf]
  %v160 = vld [vmem:[%s1 + $0x44] sm:$0xf]
  %v161 = vld [vmem:[%s1 + $0x48] sm:$0xf]
  %v162 = vld [vmem:[%s1 + $0x4c] sm:$0xf]
  %v163 = vld [vmem:[%s1 + $0x50] sm:$0xf]
  %v164 = vld [vmem:[%s1 + $0x54] sm:$0xf]
  %v165 = vld [vmem:[%s1 + $0x58] sm:$0xf]
  %v166 = vld [vmem:[%s1 + $0x5c] sm:$0xf]
  %v167 = vld [vmem:[%s1 + $0x60] sm:$0xf]
  %v168 = vld [vmem:[%s1 + $0x64] sm:$0xf]
  %v169 = vld [vmem:[%s1 + $0x68] sm:$0xf]
  %v170 = vld [vmem:[%s1 + $0x6c] sm:$0xf]
  %v171 = vld [vmem:[%s1 + $0x70] sm:$0xf]
  %v172 = vld [vmem:[%s1 + $0x74] sm:$0xf]
  %v173 = vld [vmem:[%s1 + $0x78] sm:$0xf]
  %v174 = vld [vmem:[%s1 + $0x7c] sm:$0xf]
  %v175 = vld [vmem:[%s1 + $0x80] sm:$0xf]
  %v176 = vld [vmem:[%s1 + $0x84] sm:$0xf]
  %v177 = vld [vmem:[%s1 + $0x88] sm:$0xf]
  %v178 = vld [vmem:[%s1 + $0x8c] sm:$0xf]
  %v179 = vld [vmem:[%s1 + $0x90] sm:$0xf]
  %v180 = vld [vmem:[%s1 + $0x94] sm:$0xf]
  %v181 = vld [vmem:[%s1 + $0x98] sm:$0xf]
  %v182 = vld [vmem:[%s1 + $0x9c] sm:$0xf]
  %v183 = vld [vmem:[%s1 + $0xa0] sm:$0xf]
  %v184 = vld [vmem:[%s1 + $0xa4] sm:$0xf]
  %v185 = vld [vmem:[%s1 + $0xa8] sm:$0xf]
  %v186 = vld [vmem:[%s1 + $0xac] sm:$0xf]
  %v187 = vld [vmem:[%s1 + $0xb0] sm:$0xf]
  %v188 = vld [vmem:[%s1 + $0xb4] sm:$0xf]
  %v189 = vld [vmem:[%s1 + $0xb8] sm:$0xf]
  %v190 = vld [vmem:[%s1 + $0xbc] sm:$0xf]
  %v191 = vld [vmem:[%s1 + $0xc0] sm:$0xf]
  %v192 = vld [vmem:[%s1 + $0xc4] sm:$0xf]
  %v193 = vld [vmem:[%s2] sm:$0x1]
  %v195 = vlaneseq
  %v196 = vshrl.u32 %v195, 7
  %v197 = vsub.s32 0, %v196
  %v198 = vrot.slane %v193, %v197
  %v328 = vunpack.c.l.b16 %v15
  %v329 = vunpack.c.h.b16 %v15
  %v330 = vunpack.c.l.b16 %v16
  %v331 = vunpack.c.h.b16 %v16
  %v332 = vunpack.c.l.b16 %v17
  %v333 = vunpack.c.h.b16 %v17
  %v334 = vunpack.c.l.b16 %v18
  %v335 = vunpack.c.h.b16 %v18
  %v336 = vunpack.c.l.b16 %v19
  %v337 = vunpack.c.h.b16 %v19
  %v338 = vunpack.c.l.b16 %v20
  %v339 = vunpack.c.h.b16 %v20
  %v340 = vunpack.c.l.b16 %v21
  %v341 = vunpack.c.h.b16 %v21
  %v342 = vunpack.c.l.b16 %v22
  %v343 = vunpack.c.h.b16 %v22
  %v344 = vunpack.c.l.b16 %v23
  %v345 = vunpack.c.h.b16 %v23
  %v346 = vunpack.c.l.b16 %v24
  %v347 = vunpack.c.h.b16 %v24
  %v348 = vunpack.c.l.b16 %v25
  %v349 = vunpack.c.h.b16 %v25
  %v350 = vunpack.c.l.b16 %v26
  %v351 = vunpack.c.h.b16 %v26
  %v352 = vunpack.c.l.b16 %v27
  %v353 = vunpack.c.h.b16 %v27
  %v354 = vunpack.c.l.b16 %v28
  %v355 = vunpack.c.h.b16 %v28
  %v356 = vunpack.c.l.b16 %v29
  %v357 = vunpack.c.h.b16 %v29
  %v358 = vunpack.c.l.b16 %v30
  %v359 = vunpack.c.h.b16 %v30
  %v360 = vunpack.c.l.b16 %v31
  %v361 = vunpack.c.h.b16 %v31
  %v362 = vunpack.c.l.b16 %v32
  %v363 = vunpack.c.h.b16 %v32
  %v364 = vunpack.c.l.b16 %v33
  %v365 = vunpack.c.h.b16 %v33
  %v366 = vunpack.c.l.b16 %v34
  %v367 = vunpack.c.h.b16 %v34
  %v368 = vunpack.c.l.b16 %v35
  %v369 = vunpack.c.h.b16 %v35
  %v370 = vunpack.c.l.b16 %v36
  %v371 = vunpack.c.h.b16 %v36
  %v372 = vunpack.c.l.b16 %v37
  %v373 = vunpack.c.h.b16 %v37
  %v374 = vunpack.c.l.b16 %v38
  %v375 = vunpack.c.h.b16 %v38
  %v376 = vunpack.c.l.b16 %v39
  %v377 = vunpack.c.h.b16 %v39
  %v378 = vunpack.c.l.b16 %v40
  %v379 = vunpack.c.h.b16 %v40
  %v380 = vunpack.c.l.b16 %v41
  %v381 = vunpack.c.h.b16 %v41
  %v382 = vunpack.c.l.b16 %v42
  %v383 = vunpack.c.h.b16 %v42
  %v384 = vunpack.c.l.b16 %v43
  %v385 = vunpack.c.h.b16 %v43
  %v386 = vunpack.c.l.b16 %v44
  %v387 = vunpack.c.h.b16 %v44
  %v388 = vunpack.c.l.b16 %v45
  %v389 = vunpack.c.h.b16 %v45
  %v390 = vunpack.c.l.b16 %v46
  %v391 = vunpack.c.h.b16 %v46
  %v392 = vunpack.c.l.b16 %v47
  %v393 = vunpack.c.h.b16 %v47
  %v394 = vunpack.c.l.b16 %v48
  %v395 = vunpack.c.h.b16 %v48
  %v396 = vunpack.c.l.b16 %v49
  %v397 = vunpack.c.h.b16 %v49
  %v398 = vunpack.c.l.b16 %v50
  %v399 = vunpack.c.h.b16 %v50
  %v400 = vunpack.c.l.b16 %v51
  %v401 = vunpack.c.h.b16 %v51
  %v402 = vunpack.c.l.b16 %v52
  %v403 = vunpack.c.h.b16 %v52
  %v404 = vunpack.c.l.b16 %v53
  %v405 = vunpack.c.h.b16 %v53
  %v406 = vunpack.c.l.b16 %v54
  %v407 = vunpack.c.h.b16 %v54
  %v408 = vunpack.c.l.b16 %v55
  %v409 = vunpack.c.h.b16 %v55
  %v410 = vunpack.c.l.b16 %v56
  %v411 = vunpack.c.h.b16 %v56
  %v412 = vunpack.c.l.b16 %v57
  %v413 = vunpack.c.h.b16 %v57
  %v414 = vunpack.c.l.b16 %v58
  %v415 = vunpack.c.h.b16 %v58
  %v416 = vunpack.c.l.b16 %v59
  %v417 = vunpack.c.h.b16 %v59
  %v418 = vunpack.c.l.b16 %v60
  %v419 = vunpack.c.h.b16 %v60
  %v420 = vunpack.c.l.b16 %v61
  %v421 = vunpack.c.h.b16 %v61
  %v422 = vunpack.c.l.b16 %v62
  %v423 = vunpack.c.h.b16 %v62
  %v424 = vunpack.c.l.b16 %v63
  %v425 = vunpack.c.h.b16 %v63
  %v426 = vunpack.c.l.b16 %v64
  %v427 = vunpack.c.h.b16 %v64
  %v428 = vunpack.c.l.b16 %v65
  %v429 = vunpack.c.h.b16 %v65
  %v430 = vunpack.c.l.b16 %v66
  %v431 = vunpack.c.h.b16 %v66
  %v432 = vunpack.c.l.b16 %v67
  %v433 = vunpack.c.h.b16 %v67
  %v434 = vunpack.c.l.b16 %v68
  %v435 = vunpack.c.h.b16 %v68
  %v436 = vunpack.c.l.b16 %v69
  %v437 = vunpack.c.h.b16 %v69
  %v438 = vunpack.c.l.b16 %v70
  %v439 = vunpack.c.h.b16 %v70
  %v440 = vunpack.c.l.b16 %v71
  %v441 = vunpack.c.h.b16 %v71
  %v442 = vunpack.c.l.b16 %v72
  %v443 = vunpack.c.h.b16 %v72
  %v444 = vunpack.c.l.b16 %v73
  %v445 = vunpack.c.h.b16 %v73
  %v446 = vunpack.c.l.b16 %v74
  %v447 = vunpack.c.h.b16 %v74
  %v448 = vunpack.c.l.b16 %v75
  %v449 = vunpack.c.h.b16 %v75
  %v450 = vunpack.c.l.b16 %v76
  %v451 = vunpack.c.h.b16 %v76
  %v452 = vunpack.c.l.b16 %v77
  %v453 = vunpack.c.h.b16 %v77
  %v454 = vunpack.c.l.b16 %v78
  %v455 = vunpack.c.h.b16 %v78
  %v456 = vunpack.c.l.b16 %v79
  %v457 = vunpack.c.h.b16 %v79
  %v458 = vunpack.c.l.b16 %v80
  %v459 = vunpack.c.h.b16 %v80
  %v460 = vunpack.c.l.b16 %v81
  %v461 = vunpack.c.h.b16 %v81
  %v462 = vunpack.c.l.b16 %v82
  %v463 = vunpack.c.h.b16 %v82
  %v464 = vunpack.c.l.b16 %v83
  %v465 = vunpack.c.h.b16 %v83
  %v466 = vunpack.c.l.b16 %v84
  %v467 = vunpack.c.h.b16 %v84
  %v468 = vunpack.c.l.b16 %v85
  %v469 = vunpack.c.h.b16 %v85
  %v470 = vunpack.c.l.b16 %v86
  %v471 = vunpack.c.h.b16 %v86
  %v472 = vunpack.c.l.b16 %v87
  %v473 = vunpack.c.h.b16 %v87
  %v474 = vunpack.c.l.b16 %v88
  %v475 = vunpack.c.h.b16 %v88
  %v476 = vunpack.c.l.b16 %v89
  %v477 = vunpack.c.h.b16 %v89
  %v478 = vunpack.c.l.b16 %v90
  %v479 = vunpack.c.h.b16 %v90
  %v480 = vunpack.c.l.b16 %v91
  %v481 = vunpack.c.h.b16 %v91
  %v482 = vunpack.c.l.b16 %v92
  %v483 = vunpack.c.h.b16 %v92
  %v484 = vunpack.c.l.b16 %v93
  %v485 = vunpack.c.h.b16 %v93
  %v486 = vunpack.c.l.b16 %v94
  %v487 = vunpack.c.h.b16 %v94
  %v488 = vunpack.c.l.b16 %v95
  %v489 = vunpack.c.h.b16 %v95
  %v490 = vunpack.c.l.b16 %v96
  %v491 = vunpack.c.h.b16 %v96
  %v492 = vunpack.c.l.b16 %v97
  %v493 = vunpack.c.h.b16 %v97
  %v494 = vunpack.c.l.b16 %v98
  %v495 = vunpack.c.h.b16 %v98
  %v496 = vunpack.c.l.b16 %v99
  %v497 = vunpack.c.h.b16 %v99
  %v498 = vunpack.c.l.b16 %v100
  %v499 = vunpack.c.h.b16 %v100
  %v500 = vunpack.c.l.b16 %v101
  %v501 = vunpack.c.h.b16 %v101
  %v502 = vunpack.c.l.b16 %v102
  %v503 = vunpack.c.h.b16 %v102
  %v504 = vunpack.c.l.b16 %v103
  %v505 = vunpack.c.h.b16 %v103
  %v506 = vunpack.c.l.b16 %v104
  %v507 = vunpack.c.h.b16 %v104
  %v508 = vunpack.c.l.b16 %v105
  %v509 = vunpack.c.h.b16 %v105
  %v510 = vunpack.c.l.b16 %v106
  %v511 = vunpack.c.h.b16 %v106
  %v512 = vunpack.c.l.b16 %v107
  %v513 = vunpack.c.h.b16 %v107
  %v514 = vunpack.c.l.b16 %v108
  %v515 = vunpack.c.h.b16 %v108
  %v516 = vunpack.c.l.b16 %v109
  %v517 = vunpack.c.h.b16 %v109
  %v518 = vunpack.c.l.b16 %v110
  %v519 = vunpack.c.h.b16 %v110
  %v520 = vunpack.c.l.b16 %v111
  %v521 = vunpack.c.h.b16 %v111
  %v522 = vunpack.c.l.b16 %v112
  %v523 = vunpack.c.h.b16 %v112
  %v524 = vunpack.c.l.b16 %v113
  %v525 = vunpack.c.h.b16 %v113
  %v526 = vunpack.c.l.b16 %v114
  %v527 = vunpack.c.h.b16 %v114
  %v528 = vunpack.c.l.b16 %v115
  %v529 = vunpack.c.h.b16 %v115
  %v530 = vunpack.c.l.b16 %v116
  %v531 = vunpack.c.h.b16 %v116
  %v532 = vunpack.c.l.b16 %v117
  %v533 = vunpack.c.h.b16 %v117
  %v534 = vunpack.c.l.b16 %v118
  %v535 = vunpack.c.h.b16 %v118
  %v536 = vunpack.c.l.b16 %v119
  %v537 = vunpack.c.h.b16 %v119
  %v538 = vunpack.c.l.b16 %v120
  %v539 = vunpack.c.h.b16 %v120
  %v540 = vunpack.c.l.b16 %v121
  %v541 = vunpack.c.h.b16 %v121
  %v542 = vunpack.c.l.b16 %v122
  %v543 = vunpack.c.h.b16 %v122
  %v544 = vunpack.c.l.b16 %v123
  %v545 = vunpack.c.h.b16 %v123
  %v546 = vunpack.c.l.b16 %v124
  %v547 = vunpack.c.h.b16 %v124
  %v548 = vunpack.c.l.b16 %v125
  %v549 = vunpack.c.h.b16 %v125
  %v550 = vunpack.c.l.b16 %v126
  %v551 = vunpack.c.h.b16 %v126
  %v552 = vunpack.c.l.b16 %v127
  %v553 = vunpack.c.h.b16 %v127
  %v554 = vunpack.c.l.b16 %v128
  %v555 = vunpack.c.h.b16 %v128
  %v556 = vunpack.c.l.b16 %v129
  %v557 = vunpack.c.h.b16 %v129
  %v558 = vunpack.c.l.b16 %v130
  %v559 = vunpack.c.h.b16 %v130
  %v560 = vunpack.c.l.b16 %v131
  %v561 = vunpack.c.h.b16 %v131
  %v562 = vunpack.c.l.b16 %v132
  %v563 = vunpack.c.h.b16 %v132
  %v564 = vunpack.c.l.b16 %v133
  %v565 = vunpack.c.h.b16 %v133
  %v566 = vunpack.c.l.b16 %v134
  %v567 = vunpack.c.h.b16 %v134
  %v568 = vunpack.c.l.b16 %v135
  %v569 = vunpack.c.h.b16 %v135
  %v570 = vunpack.c.l.b16 %v136
  %v571 = vunpack.c.h.b16 %v136
  %v572 = vunpack.c.l.b16 %v137
  %v573 = vunpack.c.h.b16 %v137
  %v574 = vunpack.c.l.b16 %v138
  %v575 = vunpack.c.h.b16 %v138
  %v576 = vunpack.c.l.b16 %v139
  %v577 = vunpack.c.h.b16 %v139
  %v578 = vunpack.c.l.b16 %v140
  %v579 = vunpack.c.h.b16 %v140
  %v580 = vunpack.c.l.b16 %v141
  %v581 = vunpack.c.h.b16 %v141
  %v582 = vunpack.c.l.b16 %v142
  %v583 = vunpack.c.h.b16 %v142
  %v584 = vpack.c.b16 %v332, %v328
  %v585 = vpack.c.b16 %v333, %v329
  %v586 = vpack.c.b16 %v334, %v330
  %v587 = vpack.c.b16 %v335, %v331
  %v588 = vpack.c.b16 %v340, %v336
  %v589 = vpack.c.b16 %v341, %v337
  %v590 = vpack.c.b16 %v342, %v338
  %v591 = vpack.c.b16 %v343, %v339
  %v592 = vpack.c.b16 %v348, %v344
  %v593 = vpack.c.b16 %v349, %v345
  %v594 = vpack.c.b16 %v350, %v346
  %v595 = vpack.c.b16 %v351, %v347
  %v596 = vpack.c.b16 %v356, %v352
  %v597 = vpack.c.b16 %v357, %v353
  %v598 = vpack.c.b16 %v358, %v354
  %v599 = vpack.c.b16 %v359, %v355
  %v600 = vpack.c.b16 %v364, %v360
  %v601 = vpack.c.b16 %v365, %v361
  %v602 = vpack.c.b16 %v366, %v362
  %v603 = vpack.c.b16 %v367, %v363
  %v604 = vpack.c.b16 %v372, %v368
  %v605 = vpack.c.b16 %v373, %v369
  %v606 = vpack.c.b16 %v374, %v370
  %v607 = vpack.c.b16 %v375, %v371
  %v608 = vpack.c.b16 %v380, %v376
  %v609 = vpack.c.b16 %v381, %v377
  %v610 = vpack.c.b16 %v382, %v378
  %v611 = vpack.c.b16 %v383, %v379
  %v612 = vpack.c.b16 %v388, %v384
  %v613 = vpack.c.b16 %v389, %v385
  %v614 = vpack.c.b16 %v390, %v386
  %v615 = vpack.c.b16 %v391, %v387
  %v616 = vpack.c.b16 %v396, %v392
  %v617 = vpack.c.b16 %v397, %v393
  %v618 = vpack.c.b16 %v398, %v394
  %v619 = vpack.c.b16 %v399, %v395
  %v620 = vpack.c.b16 %v404, %v400
  %v621 = vpack.c.b16 %v405, %v401
  %v622 = vpack.c.b16 %v406, %v402
  %v623 = vpack.c.b16 %v407, %v403
  %v624 = vpack.c.b16 %v412, %v408
  %v625 = vpack.c.b16 %v413, %v409
  %v626 = vpack.c.b16 %v414, %v410
  %v627 = vpack.c.b16 %v415, %v411
  %v628 = vpack.c.b16 %v420, %v416
  %v629 = vpack.c.b16 %v421, %v417
  %v630 = vpack.c.b16 %v422, %v418
  %v631 = vpack.c.b16 %v423, %v419
  %v632 = vpack.c.b16 %v428, %v424
  %v633 = vpack.c.b16 %v429, %v425
  %v634 = vpack.c.b16 %v430, %v426
  %v635 = vpack.c.b16 %v431, %v427
  %v636 = vpack.c.b16 %v436, %v432
  %v637 = vpack.c.b16 %v437, %v433
  %v638 = vpack.c.b16 %v438, %v434
  %v639 = vpack.c.b16 %v439, %v435
  %v640 = vpack.c.b16 %v444, %v440
  %v641 = vpack.c.b16 %v445, %v441
  %v642 = vpack.c.b16 %v446, %v442
  %v643 = vpack.c.b16 %v447, %v443
  %v644 = vpack.c.b16 %v452, %v448
  %v645 = vpack.c.b16 %v453, %v449
  %v646 = vpack.c.b16 %v454, %v450
  %v647 = vpack.c.b16 %v455, %v451
  %v648 = vpack.c.b16 %v460, %v456
  %v649 = vpack.c.b16 %v461, %v457
  %v650 = vpack.c.b16 %v462, %v458
  %v651 = vpack.c.b16 %v463, %v459
  %v652 = vpack.c.b16 %v468, %v464
  %v653 = vpack.c.b16 %v469, %v465
  %v654 = vpack.c.b16 %v470, %v466
  %v655 = vpack.c.b16 %v471, %v467
  %v656 = vpack.c.b16 %v476, %v472
  %v657 = vpack.c.b16 %v477, %v473
  %v658 = vpack.c.b16 %v478, %v474
  %v659 = vpack.c.b16 %v479, %v475
  %v660 = vpack.c.b16 %v484, %v480
  %v661 = vpack.c.b16 %v485, %v481
  %v662 = vpack.c.b16 %v486, %v482
  %v663 = vpack.c.b16 %v487, %v483
  %v664 = vpack.c.b16 %v492, %v488
  %v665 = vpack.c.b16 %v493, %v489
  %v666 = vpack.c.b16 %v494, %v490
  %v667 = vpack.c.b16 %v495, %v491
  %v668 = vpack.c.b16 %v500, %v496
  %v669 = vpack.c.b16 %v501, %v497
  %v670 = vpack.c.b16 %v502, %v498
  %v671 = vpack.c.b16 %v503, %v499
  %v672 = vpack.c.b16 %v508, %v504
  %v673 = vpack.c.b16 %v509, %v505
  %v674 = vpack.c.b16 %v510, %v506
  %v675 = vpack.c.b16 %v511, %v507
  %v676 = vpack.c.b16 %v516, %v512
  %v677 = vpack.c.b16 %v517, %v513
  %v678 = vpack.c.b16 %v518, %v514
  %v679 = vpack.c.b16 %v519, %v515
  %v680 = vpack.c.b16 %v524, %v520
  %v681 = vpack.c.b16 %v525, %v521
  %v682 = vpack.c.b16 %v526, %v522
  %v683 = vpack.c.b16 %v527, %v523
  %v684 = vpack.c.b16 %v532, %v528
  %v685 = vpack.c.b16 %v533, %v529
  %v686 = vpack.c.b16 %v534, %v530
  %v687 = vpack.c.b16 %v535, %v531
  %v688 = vpack.c.b16 %v540, %v536
  %v689 = vpack.c.b16 %v541, %v537
  %v690 = vpack.c.b16 %v542, %v538
  %v691 = vpack.c.b16 %v543, %v539
  %v692 = vpack.c.b16 %v548, %v544
  %v693 = vpack.c.b16 %v549, %v545
  %v694 = vpack.c.b16 %v550, %v546
  %v695 = vpack.c.b16 %v551, %v547
  %v696 = vpack.c.b16 %v556, %v552
  %v697 = vpack.c.b16 %v557, %v553
  %v698 = vpack.c.b16 %v558, %v554
  %v699 = vpack.c.b16 %v559, %v555
  %v700 = vpack.c.b16 %v564, %v560
  %v701 = vpack.c.b16 %v565, %v561
  %v702 = vpack.c.b16 %v566, %v562
  %v703 = vpack.c.b16 %v567, %v563
  %v704 = vpack.c.b16 %v572, %v568
  %v705 = vpack.c.b16 %v573, %v569
  %v706 = vpack.c.b16 %v574, %v570
  %v707 = vpack.c.b16 %v575, %v571
  %v708 = vpack.c.b16 %v580, %v576
  %v709 = vpack.c.b16 %v581, %v577
  %v710 = vpack.c.b16 %v582, %v578
  %v711 = vpack.c.b16 %v583, %v579
  %v858 = vunpack.c.l.b16 %v143
  %v859 = vunpack.c.l.b16 %v144
  %v860 = vunpack.c.l.b16 %v145
  %v861 = vunpack.c.l.b16 %v146
  %v862 = vunpack.c.l.b16 %v147
  %v863 = vunpack.c.l.b16 %v148
  %v864 = vunpack.c.l.b16 %v149
  %v865 = vunpack.c.l.b16 %v150
  %v866 = vunpack.c.l.b16 %v151
  %v867 = vunpack.c.l.b16 %v152
  %v868 = vunpack.c.l.b16 %v153
  %v869 = vunpack.c.l.b16 %v154
  %v870 = vunpack.c.l.b16 %v155
  %v871 = vunpack.c.l.b16 %v156
  %v872 = vunpack.c.l.b16 %v157
  %v873 = vunpack.c.l.b16 %v158
  %v874 = vunpack.c.l.b16 %v159
  %v875 = vunpack.c.l.b16 %v160
  %v876 = vunpack.c.l.b16 %v161
  %v877 = vunpack.c.l.b16 %v162
  %v878 = vunpack.c.l.b16 %v163
  %v879 = vunpack.c.l.b16 %v164
  %v880 = vunpack.c.l.b16 %v165
  %v881 = vunpack.c.l.b16 %v166
  %v882 = vunpack.c.l.b16 %v167
  %v883 = vunpack.c.l.b16 %v168
  %v884 = vunpack.c.l.b16 %v169
  %v885 = vunpack.c.l.b16 %v170
  %v886 = vunpack.c.l.b16 %v171
  %v887 = vunpack.c.l.b16 %v172
  %v888 = vunpack.c.l.b16 %v173
  %v889 = vunpack.c.l.b16 %v174
  %v890 = vunpack.c.l.b16 %v175
  %v891 = vunpack.c.l.b16 %v176
  %v892 = vunpack.c.l.b16 %v177
  %v893 = vunpack.c.l.b16 %v178
  %v894 = vunpack.c.l.b16 %v179
  %v895 = vunpack.c.l.b16 %v180
  %v896 = vunpack.c.l.b16 %v181
  %v897 = vunpack.c.l.b16 %v182
  %v898 = vunpack.c.l.b16 %v183
  %v899 = vunpack.c.l.b16 %v184
  %v900 = vunpack.c.l.b16 %v185
  %v901 = vunpack.c.l.b16 %v186
  %v902 = vunpack.c.l.b16 %v187
  %v903 = vunpack.c.l.b16 %v188
  %v904 = vunpack.c.l.b16 %v189
  %v905 = vunpack.c.l.b16 %v190
  %v906 = vunpack.c.l.b16 %v191
  %v907 = vunpack.c.l.b16 %v192
  %v908 = vpack.c.b16 %v859, %v858
  %v909 = vpack.c.b16 %v861, %v860
  %v910 = vpack.c.b16 %v863, %v862
  %v911 = vpack.c.b16 %v865, %v864
  %v912 = vpack.c.b16 %v867, %v866
  %v913 = vpack.c.b16 %v869, %v868
  %v914 = vpack.c.b16 %v871, %v870
  %v915 = vpack.c.b16 %v873, %v872
  %v916 = vpack.c.b16 %v875, %v874
  %v917 = vpack.c.b16 %v877, %v876
  %v918 = vpack.c.b16 %v879, %v878
  %v919 = vpack.c.b16 %v881, %v880
  %v920 = vpack.c.b16 %v883, %v882
  %v921 = vpack.c.b16 %v885, %v884
  %v922 = vpack.c.b16 %v887, %v886
  %v923 = vpack.c.b16 %v889, %v888
  %v924 = vpack.c.b16 %v891, %v890
  %v925 = vpack.c.b16 %v893, %v892
  %v926 = vpack.c.b16 %v895, %v894
  %v927 = vpack.c.b16 %v897, %v896
  %v928 = vpack.c.b16 %v899, %v898
  %v929 = vpack.c.b16 %v901, %v900
  %v930 = vpack.c.b16 %v903, %v902
  %v931 = vpack.c.b16 %v905, %v904
  %v932 = vpack.c.b16 %v907, %v906
  %vm958 = vcmask 130048
  %v960 = vsel %vm958, %v587, 0
  %v963 = vsel %vm958, %v591, 0
  %v966 = vsel %vm958, %v595, 0
  %v969 = vsel %vm958, %v599, 0
  %v972 = vsel %vm958, %v603, 0
  %v975 = vsel %vm958, %v607, 0
  %v978 = vsel %vm958, %v611, 0
  %v981 = vsel %vm958, %v615, 0
  %v984 = vsel %vm958, %v619, 0
  %v987 = vsel %vm958, %v623, 0
  %v990 = vsel %vm958, %v627, 0
  %v993 = vsel %vm958, %v631, 0
  %v996 = vsel %vm958, %v635, 0
  %v999 = vsel %vm958, %v639, 0
  %v1002 = vsel %vm958, %v643, 0
  %v1005 = vsel %vm958, %v647, 0
  %v1008 = vsel %vm958, %v651, 0
  %v1011 = vsel %vm958, %v655, 0
  %v1014 = vsel %vm958, %v659, 0
  %v1017 = vsel %vm958, %v663, 0
  %v1020 = vsel %vm958, %v667, 0
  %v1023 = vsel %vm958, %v671, 0
  %v1026 = vsel %vm958, %v675, 0
  %v1029 = vsel %vm958, %v679, 0
  %v1032 = vsel %vm958, %v683, 0
  %v1035 = vsel %vm958, %v687, 0
  %v1038 = vsel %vm958, %v691, 0
  %v1041 = vsel %vm958, %v695, 0
  %v1044 = vsel %vm958, %v699, 0
  %v1047 = vsel %vm958, %v703, 0
  %v1050 = vsel %vm958, %v707, 0
  %v1053 = vsel %vm958, %v711, 0
  %1055 = vmatprep.subr.bf16.mxu0 0
  %1056 = vmatpush1.bf16.msra.mxu0 %v908
  %1057 = vmatprep.subr.bf16.mxu0 0
  %1058 = vmatpush1.bf16.msra.mxu0 %v909
  %1059 = vmatprep.subr.bf16.mxu0 0
  %1060 = vmatpush1.bf16.msra.mxu0 %v910
  %1061 = vmatprep.subr.bf16.mxu0 0
  %1062 = vmatpush1.bf16.msra.mxu0 %v911
  %1063 = vmatprep.subr.bf16.mxu0 0
  %1064 = vmatpush1.bf16.msra.mxu0 %v912
  %1065 = vmatprep.subr.bf16.mxu0 0
  %1066 = vmatpush1.bf16.msra.mxu0 %v913
  %1067 = vmatprep.subr.bf16.mxu0 0
  %1068 = vmatpush1.bf16.msra.mxu0 %v914
  %1069 = vmatprep.subr.bf16.mxu0 0
  %1070 = vmatpush1.bf16.msra.mxu0 %v915
  %1071 = vmatprep.subr.bf16.mxu0 0
  %1072 = vmatpush1.bf16.msra.mxu0 %v916
  %1073 = vmatprep.subr.bf16.mxu0 0
  %1074 = vmatpush1.bf16.msra.mxu0 %v917
  %1075 = vmatprep.subr.bf16.mxu0 0
  %1076 = vmatpush1.bf16.msra.mxu0 %v918
  %1077 = vmatprep.subr.bf16.mxu0 0
  %1078 = vmatpush1.bf16.msra.mxu0 %v919
  %1079 = vmatprep.subr.bf16.mxu0 0
  %1080 = vmatpush1.bf16.msra.mxu0 %v920
  %1081 = vmatprep.subr.bf16.mxu0 0
  %1082 = vmatpush1.bf16.msra.mxu0 %v921
  %1083 = vmatprep.subr.bf16.mxu0 0
  %1084 = vmatpush1.bf16.msra.mxu0 %v922
  %1085 = vmatprep.subr.bf16.mxu0 0
  %1086 = vmatpush1.bf16.msra.mxu0 %v923
  %1087 = vmatprep.mubr.bf16.mxu0 %v585
  %1088 = vmatmul.mubr.bf16.gmra.mrb[0].mxu0 %v584
  %v1089 = vpop.f32.mrb[0].mxu0
  %v1090 = vadd.f32 %v198, %v1089
  %v1091 = vpop.f32.mrb[0].mxu0
  %v1092 = vpop.f32.mrb[0].mxu0
  %v1093 = vadd.f32 %v198, %v1092
  %v1094 = vpop.f32.mrb[0].mxu0
  %1095 = vmatprep.mubr.bf16.mxu0 %v589
  %1096 = vmatmul.mubr.bf16.gmra.mrb[0].mxu0 %v588
  %v1097 = vpop.f32.mrb[0].mxu0
  %v1098 = vadd.f32 %v198, %v1097
  %v1099 = vpop.f32.mrb[0].mxu0
  %v1100 = vpop.f32.mrb[0].mxu0
  %v1101 = vadd.f32 %v198, %v1100
  %v1102 = vpop.f32.mrb[0].mxu0
  %1103 = vmatprep.mubr.bf16.mxu0 %v593
  %1104 = vmatmul.mubr.bf16.gmra.mrb[0].mxu0 %v592
  %v1105 = vpop.f32.mrb[0].mxu0
  %v1106 = vadd.f32 %v198, %v1105
  %v1107 = vpop.f32.mrb[0].mxu0
  %v1108 = vpop.f32.mrb[0].mxu0
  %v1109 = vadd.f32 %v198, %v1108
  %v1110 = vpop.f32.mrb[0].mxu0
  %1111 = vmatprep.mubr.bf16.mxu0 %v597
  %1112 = vmatmul.mubr.bf16.gmra.mrb[0].mxu0 %v596
  %v1113 = vpop.f32.mrb[0].mxu0
  %v1114 = vadd.f32 %v198, %v1113
  %v1115 = vpop.f32.mrb[0].mxu0
  %v1116 = vpop.f32.mrb[0].mxu0
  %v1117 = vadd.f32 %v198, %v1116
  %v1118 = vpop.f32.mrb[0].mxu0
  %1119 = vmatprep.mubr.bf16.mxu0 %v601
  %1120 = vmatmul.mubr.bf16.gmra.mrb[0].mxu0 %v600
  %v1121 = vpop.f32.mrb[0].mxu0
  %v1122 = vadd.f32 %v198, %v1121
  %v1123 = vpop.f32.mrb[0].mxu0
  %v1124 = vpop.f32.mrb[0].mxu0
  %v1125 = vadd.f32 %v198, %v1124
  %v1126 = vpop.f32.mrb[0].mxu0
  %1127 = vmatprep.mubr.bf16.mxu0 %v605
  %1128 = vmatmul.mubr.bf16.gmra.mrb[0].mxu0 %v604
  %v1129 = vpop.f32.mrb[0].mxu0
  %v1130 = vadd.f32 %v198, %v1129
  %v1131 = vpop.f32.mrb[0].mxu0
  %v1132 = vpop.f32.mrb[0].mxu0
  %v1133 = vadd.f32 %v198, %v1132
  %v1134 = vpop.f32.mrb[0].mxu0
  %1135 = vmatprep.mubr.bf16.mxu0 %v609
  %1136 = vmatmul.mubr.bf16.gmra.mrb[0].mxu0 %v608
  %v1137 = vpop.f32.mrb[0].mxu0
  %v1138 = vadd.f32 %v198, %v1137
  %v1139 = vpop.f32.mrb[0].mxu0
  %v1140 = vpop.f32.mrb[0].mxu0
  %v1141 = vadd.f32 %v198, %v1140
  %v1142 = vpop.f32.mrb[0].mxu0
  %1143 = vmatprep.mubr.bf16.mxu0 %v613
  %1144 = vmatmul.mubr.bf16.gmra.mrb[0].mxu0 %v612
  %v1145 = vpop.f32.mrb[0].mxu0
  %v1146 = vadd.f32 %v198, %v1145
  %v1147 = vpop.f32.mrb[0].mxu0
  %v1148 = vpop.f32.mrb[0].mxu0
  %v1149 = vadd.f32 %v198, %v1148
  %v1150 = vpop.f32.mrb[0].mxu0
  %1151 = vmatprep.mubr.bf16.mxu0 %v617
  %1152 = vmatmul.mubr.bf16.gmra.mrb[0].mxu0 %v616
  %v1153 = vpop.f32.mrb[0].mxu0
  %v1154 = vadd.f32 %v198, %v1153
  %v1155 = vpop.f32.mrb[0].mxu0
  %v1156 = vpop.f32.mrb[0].mxu0
  %v1157 = vadd.f32 %v198, %v1156
  %v1158 = vpop.f32.mrb[0].mxu0
  %1159 = vmatprep.mubr.bf16.mxu0 %v621
  %1160 = vmatmul.mubr.bf16.gmra.mrb[0].mxu0 %v620
  %v1161 = vpop.f32.mrb[0].mxu0
  %v1162 = vadd.f32 %v198, %v1161
  %v1163 = vpop.f32.mrb[0].mxu0
  %v1164 = vpop.f32.mrb[0].mxu0
  %v1165 = vadd.f32 %v198, %v1164
  %v1166 = vpop.f32.mrb[0].mxu0
  %1167 = vmatprep.mubr.bf16.mxu0 %v625
  %1168 = vmatmul.mubr.bf16.gmra.mrb[0].mxu0 %v624
  %v1169 = vpop.f32.mrb[0].mxu0
  %v1170 = vadd.f32 %v198, %v1169
  %v1171 = vpop.f32.mrb[0].mxu0
  %v1172 = vpop.f32.mrb[0].mxu0
  %v1173 = vadd.f32 %v198, %v1172
  %v1174 = vpop.f32.mrb[0].mxu0
  %1175 = vmatprep.mubr.bf16.mxu0 %v629
  %1176 = vmatmul.mubr.bf16.gmra.mrb[0].mxu0 %v628
  %v1177 = vpop.f32.mrb[0].mxu0
  %v1178 = vadd.f32 %v198, %v1177
  %v1179 = vpop.f32.mrb[0].mxu0
  %v1180 = vpop.f32.mrb[0].mxu0
  %v1181 = vadd.f32 %v198, %v1180
  %v1182 = vpop.f32.mrb[0].mxu0
  %1183 = vmatprep.mubr.bf16.mxu0 %v633
  %1184 = vmatmul.mubr.bf16.gmra.mrb[0].mxu0 %v632
  %v1185 = vpop.f32.mrb[0].mxu0
  %v1186 = vadd.f32 %v198, %v1185
  %v1187 = vpop.f32.mrb[0].mxu0
  %v1188 = vpop.f32.mrb[0].mxu0
  %v1189 = vadd.f32 %v198, %v1188
  %v1190 = vpop.f32.mrb[0].mxu0
  %1191 = vmatprep.mubr.bf16.mxu0 %v637
  %1192 = vmatmul.mubr.bf16.gmra.mrb[0].mxu0 %v636
  %v1193 = vpop.f32.mrb[0].mxu0
  %v1194 = vadd.f32 %v198, %v1193
  %v1195 = vpop.f32.mrb[0].mxu0
  %v1196 = vpop.f32.mrb[0].mxu0
  %v1197 = vadd.f32 %v198, %v1196
  %v1198 = vpop.f32.mrb[0].mxu0
  %1199 = vmatprep.mubr.bf16.mxu0 %v641
  %1200 = vmatmul.mubr.bf16.gmra.mrb[0].mxu0 %v640
  %v1201 = vpop.f32.mrb[0].mxu0
  %v1202 = vadd.f32 %v198, %v1201
  %v1203 = vpop.f32.mrb[0].mxu0
  %v1204 = vpop.f32.mrb[0].mxu0
  %v1205 = vadd.f32 %v198, %v1204
  %v1206 = vpop.f32.mrb[0].mxu0
  %1207 = vmatprep.mubr.bf16.mxu0 %v645
  %1208 = vmatmul.mubr.bf16.gmra.mrb[0].mxu0 %v644
  %v1209 = vpop.f32.mrb[0].mxu0
  %v1210 = vadd.f32 %v198, %v1209
  %v1211 = vpop.f32.mrb[0].mxu0
  %v1212 = vpop.f32.mrb[0].mxu0
  %v1213 = vadd.f32 %v198, %v1212
  %v1214 = vpop.f32.mrb[0].mxu0
  %1215 = vmatprep.mubr.bf16.mxu0 %v649
  %1216 = vmatmul.mubr.bf16.gmra.mrb[0].mxu0 %v648
  %v1217 = vpop.f32.mrb[0].mxu0
  %v1218 = vadd.f32 %v198, %v1217
  %v1219 = vpop.f32.mrb[0].mxu0
  %v1220 = vpop.f32.mrb[0].mxu0
  %v1221 = vadd.f32 %v198, %v1220
  %v1222 = vpop.f32.mrb[0].mxu0
  %1223 = vmatprep.mubr.bf16.mxu0 %v653
  %1224 = vmatmul.mubr.bf16.gmra.mrb[0].mxu0 %v652
  %v1225 = vpop.f32.mrb[0].mxu0
  %v1226 = vadd.f32 %v198, %v1225
  %v1227 = vpop.f32.mrb[0].mxu0
  %v1228 = vpop.f32.mrb[0].mxu0
  %v1229 = vadd.f32 %v198, %v1228
  %v1230 = vpop.f32.mrb[0].mxu0
  %1231 = vmatprep.mubr.bf16.mxu0 %v657
  %1232 = vmatmul.mubr.bf16.gmra.mrb[0].mxu0 %v656
  %v1233 = vpop.f32.mrb[0].mxu0
  %v1234 = vadd.f32 %v198, %v1233
  %v1235 = vpop.f32.mrb[0].mxu0
  %v1236 = vpop.f32.mrb[0].mxu0
  %v1237 = vadd.f32 %v198, %v1236
  %v1238 = vpop.f32.mrb[0].mxu0
  %1239 = vmatprep.mubr.bf16.mxu0 %v661
  %1240 = vmatmul.mubr.bf16.gmra.mrb[0].mxu0 %v660
  %v1241 = vpop.f32.mrb[0].mxu0
  %v1242 = vadd.f32 %v198, %v1241
  %v1243 = vpop.f32.mrb[0].mxu0
  %v1244 = vpop.f32.mrb[0].mxu0
  %v1245 = vadd.f32 %v198, %v1244
  %v1246 = vpop.f32.mrb[0].mxu0
  %1247 = vmatprep.mubr.bf16.mxu0 %v665
  %1248 = vmatmul.mubr.bf16.gmra.mrb[0].mxu0 %v664
  %v1249 = vpop.f32.mrb[0].mxu0
  %v1250 = vadd.f32 %v198, %v1249
  %v1251 = vpop.f32.mrb[0].mxu0
  %v1252 = vpop.f32.mrb[0].mxu0
  %v1253 = vadd.f32 %v198, %v1252
  %v1254 = vpop.f32.mrb[0].mxu0
  %1255 = vmatprep.mubr.bf16.mxu0 %v669
  %1256 = vmatmul.mubr.bf16.gmra.mrb[0].mxu0 %v668
  %v1257 = vpop.f32.mrb[0].mxu0
  %v1258 = vadd.f32 %v198, %v1257
  %v1259 = vpop.f32.mrb[0].mxu0
  %v1260 = vpop.f32.mrb[0].mxu0
  %v1261 = vadd.f32 %v198, %v1260
  %v1262 = vpop.f32.mrb[0].mxu0
  %1263 = vmatprep.mubr.bf16.mxu0 %v673
  %1264 = vmatmul.mubr.bf16.gmra.mrb[0].mxu0 %v672
  %v1265 = vpop.f32.mrb[0].mxu0
  %v1266 = vadd.f32 %v198, %v1265
  %v1267 = vpop.f32.mrb[0].mxu0
  %v1268 = vpop.f32.mrb[0].mxu0
  %v1269 = vadd.f32 %v198, %v1268
  %v1270 = vpop.f32.mrb[0].mxu0
  %1271 = vmatprep.mubr.bf16.mxu0 %v677
  %1272 = vmatmul.mubr.bf16.gmra.mrb[0].mxu0 %v676
  %v1273 = vpop.f32.mrb[0].mxu0
  %v1274 = vadd.f32 %v198, %v1273
  %v1275 = vpop.f32.mrb[0].mxu0
  %v1276 = vpop.f32.mrb[0].mxu0
  %v1277 = vadd.f32 %v198, %v1276
  %v1278 = vpop.f32.mrb[0].mxu0
  %1279 = vmatprep.mubr.bf16.mxu0 %v681
  %1280 = vmatmul.mubr.bf16.gmra.mrb[0].mxu0 %v680
  %v1281 = vpop.f32.mrb[0].mxu0
  %v1282 = vadd.f32 %v198, %v1281
  %v1283 = vpop.f32.mrb[0].mxu0
  %v1284 = vpop.f32.mrb[0].mxu0
  %v1285 = vadd.f32 %v198, %v1284
  %v1286 = vpop.f32.mrb[0].mxu0
  %1287 = vmatprep.mubr.bf16.mxu0 %v685
  %1288 = vmatmul.mubr.bf16.gmra.mrb[0].mxu0 %v684
  %v1289 = vpop.f32.mrb[0].mxu0
  %v1290 = vadd.f32 %v198, %v1289
  %v1291 = vpop.f32.mrb[0].mxu0
  %v1292 = vpop.f32.mrb[0].mxu0
  %v1293 = vadd.f32 %v198, %v1292
  %v1294 = vpop.f32.mrb[0].mxu0
  %1295 = vmatprep.mubr.bf16.mxu0 %v689
  %1296 = vmatmul.mubr.bf16.gmra.mrb[0].mxu0 %v688
  %v1297 = vpop.f32.mrb[0].mxu0
  %v1298 = vadd.f32 %v198, %v1297
  %v1299 = vpop.f32.mrb[0].mxu0
  %v1300 = vpop.f32.mrb[0].mxu0
  %v1301 = vadd.f32 %v198, %v1300
  %v1302 = vpop.f32.mrb[0].mxu0
  %1303 = vmatprep.mubr.bf16.mxu0 %v693
  %1304 = vmatmul.mubr.bf16.gmra.mrb[0].mxu0 %v692
  %v1305 = vpop.f32.mrb[0].mxu0
  %v1306 = vadd.f32 %v198, %v1305
  %v1307 = vpop.f32.mrb[0].mxu0
  %v1308 = vpop.f32.mrb[0].mxu0
  %v1309 = vadd.f32 %v198, %v1308
  %v1310 = vpop.f32.mrb[0].mxu0
  %1311 = vmatprep.mubr.bf16.mxu0 %v697
  %1312 = vmatmul.mubr.bf16.gmra.mrb[0].mxu0 %v696
  %v1313 = vpop.f32.mrb[0].mxu0
  %v1314 = vadd.f32 %v198, %v1313
  %v1315 = vpop.f32.mrb[0].mxu0
  %v1316 = vpop.f32.mrb[0].mxu0
  %v1317 = vadd.f32 %v198, %v1316
  %v1318 = vpop.f32.mrb[0].mxu0
  %1319 = vmatprep.mubr.bf16.mxu0 %v701
  %1320 = vmatmul.mubr.bf16.gmra.mrb[0].mxu0 %v700
  %v1321 = vpop.f32.mrb[0].mxu0
  %v1322 = vadd.f32 %v198, %v1321
  %v1323 = vpop.f32.mrb[0].mxu0
  %v1324 = vpop.f32.mrb[0].mxu0
  %v1325 = vadd.f32 %v198, %v1324
  %v1326 = vpop.f32.mrb[0].mxu0
  %1327 = vmatprep.mubr.bf16.mxu0 %v705
  %1328 = vmatmul.mubr.bf16.gmra.mrb[0].mxu0 %v704
  %v1329 = vpop.f32.mrb[0].mxu0
  %v1330 = vadd.f32 %v198, %v1329
  %v1331 = vpop.f32.mrb[0].mxu0
  %v1332 = vpop.f32.mrb[0].mxu0
  %v1333 = vadd.f32 %v198, %v1332
  %v1334 = vpop.f32.mrb[0].mxu0
  %1335 = vmatprep.mubr.bf16.mxu0 %v709
  %1336 = vmatmul.mubr.bf16.gmra.mrb[0].mxu0 %v708
  %v1337 = vpop.f32.mrb[0].mxu0
  %v1338 = vadd.f32 %v198, %v1337
  %v1339 = vpop.f32.mrb[0].mxu0
  %v1340 = vpop.f32.mrb[0].mxu0
  %v1341 = vadd.f32 %v198, %v1340
  %v1342 = vpop.f32.mrb[0].mxu0
  %1343 = vdwg.mxu0
  %1344 = vmatprep.subr.bf16.mxu0 0
  %1345 = vmatpush1.bf16.msra.mxu0 %v924
  %1346 = vmatprep.subr.bf16.mxu0 0
  %1347 = vmatpush1.bf16.msra.mxu0 %v925
  %1348 = vmatprep.subr.bf16.mxu0 0
  %1349 = vmatpush1.bf16.msra.mxu0 %v926
  %1350 = vmatprep.subr.bf16.mxu0 0
  %1351 = vmatpush1.bf16.msra.mxu0 %v927
  %1352 = vmatprep.subr.bf16.mxu0 0
  %1353 = vmatpush1.bf16.msra.mxu0 %v928
  %1354 = vmatprep.subr.bf16.mxu0 0
  %1355 = vmatpush1.bf16.msra.mxu0 %v929
  %1356 = vmatprep.subr.bf16.mxu0 0
  %1357 = vmatpush1.bf16.msra.mxu0 %v930
  %1358 = vmatprep.subr.bf16.mxu0 0
  %1359 = vmatpush1.bf16.msra.mxu0 %v931
  %1360 = vmatprep.subr.bf16.mxu0 0
  %1361 = vmatpush1.bf16.msra.mxu0 %v932
  %1362 = vmatprep.subr.bf16.mxu0 0
  %1363 = vmatpush1.bf16.msra.mxu0 0
  %1364 = vmatprep.subr.bf16.mxu0 0
  %1365 = vmatpush1.bf16.msra.mxu0 0
  %1366 = vmatprep.subr.bf16.mxu0 0
  %1367 = vmatpush1.bf16.msra.mxu0 0
  %1368 = vmatprep.subr.bf16.mxu0 0
  %1369 = vmatpush1.bf16.msra.mxu0 0
  %1370 = vmatprep.subr.bf16.mxu0 0
  %1371 = vmatpush1.bf16.msra.mxu0 0
  %1372 = vmatprep.subr.bf16.mxu0 0
  %1373 = vmatpush1.bf16.msra.mxu0 0
  %1374 = vmatprep.subr.bf16.mxu0 0
  %1375 = vmatpush1.bf16.msra.mxu0 0
  %1376 = vmatprep.mubr.bf16.mxu0 %v960
  %1377 = vmatmul.mubr.bf16.gmra.mrb[0].mxu0 %v586
  %v1378 = vpop.f32.mrb[0].mxu0
  %v1379 = vadd.f32 %v1090, %v1378
  %v1380 = vpop.f32.mrb[0].mxu0
  %v1381 = vpop.f32.mrb[0].mxu0
  %v1382 = vadd.f32 %v1093, %v1381
  %v1383 = vpop.f32.mrb[0].mxu0
  %1384 = vmatprep.mubr.bf16.mxu0 %v963
  %1385 = vmatmul.mubr.bf16.gmra.mrb[0].mxu0 %v590
  %v1386 = vpop.f32.mrb[0].mxu0
  %v1387 = vadd.f32 %v1098, %v1386
  %v1388 = vpop.f32.mrb[0].mxu0
  %v1389 = vpop.f32.mrb[0].mxu0
  %v1390 = vadd.f32 %v1101, %v1389
  %v1391 = vpop.f32.mrb[0].mxu0
  %1392 = vmatprep.mubr.bf16.mxu0 %v966
  %1393 = vmatmul.mubr.bf16.gmra.mrb[0].mxu0 %v594
  %v1394 = vpop.f32.mrb[0].mxu0
  %v1395 = vadd.f32 %v1106, %v1394
  %v1396 = vpop.f32.mrb[0].mxu0
  %v1397 = vpop.f32.mrb[0].mxu0
  %v1398 = vadd.f32 %v1109, %v1397
  %v1399 = vpop.f32.mrb[0].mxu0
  %1400 = vmatprep.mubr.bf16.mxu0 %v969
  %1401 = vmatmul.mubr.bf16.gmra.mrb[0].mxu0 %v598
  %v1402 = vpop.f32.mrb[0].mxu0
  %v1403 = vadd.f32 %v1114, %v1402
  %v1404 = vpop.f32.mrb[0].mxu0
  %v1405 = vpop.f32.mrb[0].mxu0
  %v1406 = vadd.f32 %v1117, %v1405
  %v1407 = vpop.f32.mrb[0].mxu0
  %1408 = vmatprep.mubr.bf16.mxu0 %v972
  %1409 = vmatmul.mubr.bf16.gmra.mrb[0].mxu0 %v602
  %v1410 = vpop.f32.mrb[0].mxu0
  %v1411 = vadd.f32 %v1122, %v1410
  %v1412 = vpop.f32.mrb[0].mxu0
  %v1413 = vpop.f32.mrb[0].mxu0
  %v1414 = vadd.f32 %v1125, %v1413
  %v1415 = vpop.f32.mrb[0].mxu0
  %1416 = vmatprep.mubr.bf16.mxu0 %v975
  %1417 = vmatmul.mubr.bf16.gmra.mrb[0].mxu0 %v606
  %v1418 = vpop.f32.mrb[0].mxu0
  %v1419 = vadd.f32 %v1130, %v1418
  %v1420 = vpop.f32.mrb[0].mxu0
  %v1421 = vpop.f32.mrb[0].mxu0
  %v1422 = vadd.f32 %v1133, %v1421
  %v1423 = vpop.f32.mrb[0].mxu0
  %1424 = vmatprep.mubr.bf16.mxu0 %v978
  %1425 = vmatmul.mubr.bf16.gmra.mrb[0].mxu0 %v610
  %v1426 = vpop.f32.mrb[0].mxu0
  %v1427 = vadd.f32 %v1138, %v1426
  %v1428 = vpop.f32.mrb[0].mxu0
  %v1429 = vpop.f32.mrb[0].mxu0
  %v1430 = vadd.f32 %v1141, %v1429
  %v1431 = vpop.f32.mrb[0].mxu0
  %1432 = vmatprep.mubr.bf16.mxu0 %v981
  %1433 = vmatmul.mubr.bf16.gmra.mrb[0].mxu0 %v614
  %v1434 = vpop.f32.mrb[0].mxu0
  %v1435 = vadd.f32 %v1146, %v1434
  %v1436 = vpop.f32.mrb[0].mxu0
  %v1437 = vpop.f32.mrb[0].mxu0
  %v1438 = vadd.f32 %v1149, %v1437
  %v1439 = vpop.f32.mrb[0].mxu0
  %1440 = vmatprep.mubr.bf16.mxu0 %v984
  %1441 = vmatmul.mubr.bf16.gmra.mrb[0].mxu0 %v618
  %v1442 = vpop.f32.mrb[0].mxu0
  %v1443 = vadd.f32 %v1154, %v1442
  %v1444 = vpop.f32.mrb[0].mxu0
  %v1445 = vpop.f32.mrb[0].mxu0
  %v1446 = vadd.f32 %v1157, %v1445
  %v1447 = vpop.f32.mrb[0].mxu0
  %1448 = vmatprep.mubr.bf16.mxu0 %v987
  %1449 = vmatmul.mubr.bf16.gmra.mrb[0].mxu0 %v622
  %v1450 = vpop.f32.mrb[0].mxu0
  %v1451 = vadd.f32 %v1162, %v1450
  %v1452 = vpop.f32.mrb[0].mxu0
  %v1453 = vpop.f32.mrb[0].mxu0
  %v1454 = vadd.f32 %v1165, %v1453
  %v1455 = vpop.f32.mrb[0].mxu0
  %1456 = vmatprep.mubr.bf16.mxu0 %v990
  %1457 = vmatmul.mubr.bf16.gmra.mrb[0].mxu0 %v626
  %v1458 = vpop.f32.mrb[0].mxu0
  %v1459 = vadd.f32 %v1170, %v1458
  %v1460 = vpop.f32.mrb[0].mxu0
  %v1461 = vpop.f32.mrb[0].mxu0
  %v1462 = vadd.f32 %v1173, %v1461
  %v1463 = vpop.f32.mrb[0].mxu0
  %1464 = vmatprep.mubr.bf16.mxu0 %v993
  %1465 = vmatmul.mubr.bf16.gmra.mrb[0].mxu0 %v630
  %v1466 = vpop.f32.mrb[0].mxu0
  %v1467 = vadd.f32 %v1178, %v1466
  %v1468 = vpop.f32.mrb[0].mxu0
  %v1469 = vpop.f32.mrb[0].mxu0
  %v1470 = vadd.f32 %v1181, %v1469
  %v1471 = vpop.f32.mrb[0].mxu0
  %1472 = vmatprep.mubr.bf16.mxu0 %v996
  %1473 = vmatmul.mubr.bf16.gmra.mrb[0].mxu0 %v634
  %v1474 = vpop.f32.mrb[0].mxu0
  %v1475 = vadd.f32 %v1186, %v1474
  %v1476 = vpop.f32.mrb[0].mxu0
  %v1477 = vpop.f32.mrb[0].mxu0
  %v1478 = vadd.f32 %v1189, %v1477
  %v1479 = vpop.f32.mrb[0].mxu0
  %1480 = vmatprep.mubr.bf16.mxu0 %v999
  %1481 = vmatmul.mubr.bf16.gmra.mrb[0].mxu0 %v638
  %v1482 = vpop.f32.mrb[0].mxu0
  %v1483 = vadd.f32 %v1194, %v1482
  %v1484 = vpop.f32.mrb[0].mxu0
  %v1485 = vpop.f32.mrb[0].mxu0
  %v1486 = vadd.f32 %v1197, %v1485
  %v1487 = vpop.f32.mrb[0].mxu0
  %1488 = vmatprep.mubr.bf16.mxu0 %v1002
  %1489 = vmatmul.mubr.bf16.gmra.mrb[0].mxu0 %v642
  %v1490 = vpop.f32.mrb[0].mxu0
  %v1491 = vadd.f32 %v1202, %v1490
  %v1492 = vpop.f32.mrb[0].mxu0
  %v1493 = vpop.f32.mrb[0].mxu0
  %v1494 = vadd.f32 %v1205, %v1493
  %v1495 = vpop.f32.mrb[0].mxu0
  %1496 = vmatprep.mubr.bf16.mxu0 %v1005
  %1497 = vmatmul.mubr.bf16.gmra.mrb[0].mxu0 %v646
  %v1498 = vpop.f32.mrb[0].mxu0
  %v1499 = vadd.f32 %v1210, %v1498
  %v1500 = vpop.f32.mrb[0].mxu0
  %v1501 = vpop.f32.mrb[0].mxu0
  %v1502 = vadd.f32 %v1213, %v1501
  %v1503 = vpop.f32.mrb[0].mxu0
  %1504 = vmatprep.mubr.bf16.mxu0 %v1008
  %1505 = vmatmul.mubr.bf16.gmra.mrb[0].mxu0 %v650
  %v1506 = vpop.f32.mrb[0].mxu0
  %v1507 = vadd.f32 %v1218, %v1506
  %v1508 = vpop.f32.mrb[0].mxu0
  %v1509 = vpop.f32.mrb[0].mxu0
  %v1510 = vadd.f32 %v1221, %v1509
  %v1511 = vpop.f32.mrb[0].mxu0
  %1512 = vmatprep.mubr.bf16.mxu0 %v1011
  %1513 = vmatmul.mubr.bf16.gmra.mrb[0].mxu0 %v654
  %v1514 = vpop.f32.mrb[0].mxu0
  %v1515 = vadd.f32 %v1226, %v1514
  %v1516 = vpop.f32.mrb[0].mxu0
  %v1517 = vpop.f32.mrb[0].mxu0
  %v1518 = vadd.f32 %v1229, %v1517
  %v1519 = vpop.f32.mrb[0].mxu0
  %1520 = vmatprep.mubr.bf16.mxu0 %v1014
  %1521 = vmatmul.mubr.bf16.gmra.mrb[0].mxu0 %v658
  %v1522 = vpop.f32.mrb[0].mxu0
  %v1523 = vadd.f32 %v1234, %v1522
  %v1524 = vpop.f32.mrb[0].mxu0
  %v1525 = vpop.f32.mrb[0].mxu0
  %v1526 = vadd.f32 %v1237, %v1525
  %v1527 = vpop.f32.mrb[0].mxu0
  %1528 = vmatprep.mubr.bf16.mxu0 %v1017
  %1529 = vmatmul.mubr.bf16.gmra.mrb[0].mxu0 %v662
  %v1530 = vpop.f32.mrb[0].mxu0
  %v1531 = vadd.f32 %v1242, %v1530
  %v1532 = vpop.f32.mrb[0].mxu0
  %v1533 = vpop.f32.mrb[0].mxu0
  %v1534 = vadd.f32 %v1245, %v1533
  %v1535 = vpop.f32.mrb[0].mxu0
  %1536 = vmatprep.mubr.bf16.mxu0 %v1020
  %1537 = vmatmul.mubr.bf16.gmra.mrb[0].mxu0 %v666
  %v1538 = vpop.f32.mrb[0].mxu0
  %v1539 = vadd.f32 %v1250, %v1538
  %v1540 = vpop.f32.mrb[0].mxu0
  %v1541 = vpop.f32.mrb[0].mxu0
  %v1542 = vadd.f32 %v1253, %v1541
  %v1543 = vpop.f32.mrb[0].mxu0
  %1544 = vmatprep.mubr.bf16.mxu0 %v1023
  %1545 = vmatmul.mubr.bf16.gmra.mrb[0].mxu0 %v670
  %v1546 = vpop.f32.mrb[0].mxu0
  %v1547 = vadd.f32 %v1258, %v1546
  %v1548 = vpop.f32.mrb[0].mxu0
  %v1549 = vpop.f32.mrb[0].mxu0
  %v1550 = vadd.f32 %v1261, %v1549
  %v1551 = vpop.f32.mrb[0].mxu0
  %1552 = vmatprep.mubr.bf16.mxu0 %v1026
  %1553 = vmatmul.mubr.bf16.gmra.mrb[0].mxu0 %v674
  %v1554 = vpop.f32.mrb[0].mxu0
  %v1555 = vadd.f32 %v1266, %v1554
  %v1556 = vpop.f32.mrb[0].mxu0
  %v1557 = vpop.f32.mrb[0].mxu0
  %v1558 = vadd.f32 %v1269, %v1557
  %v1559 = vpop.f32.mrb[0].mxu0
  %1560 = vmatprep.mubr.bf16.mxu0 %v1029
  %1561 = vmatmul.mubr.bf16.gmra.mrb[0].mxu0 %v678
  %v1562 = vpop.f32.mrb[0].mxu0
  %v1563 = vadd.f32 %v1274, %v1562
  %v1564 = vpop.f32.mrb[0].mxu0
  %v1565 = vpop.f32.mrb[0].mxu0
  %v1566 = vadd.f32 %v1277, %v1565
  %v1567 = vpop.f32.mrb[0].mxu0
  %1568 = vmatprep.mubr.bf16.mxu0 %v1032
  %1569 = vmatmul.mubr.bf16.gmra.mrb[0].mxu0 %v682
  %v1570 = vpop.f32.mrb[0].mxu0
  %v1571 = vadd.f32 %v1282, %v1570
  %v1572 = vpop.f32.mrb[0].mxu0
  %v1573 = vpop.f32.mrb[0].mxu0
  %v1574 = vadd.f32 %v1285, %v1573
  %v1575 = vpop.f32.mrb[0].mxu0
  %1576 = vmatprep.mubr.bf16.mxu0 %v1035
  %1577 = vmatmul.mubr.bf16.gmra.mrb[0].mxu0 %v686
  %v1578 = vpop.f32.mrb[0].mxu0
  %v1579 = vadd.f32 %v1290, %v1578
  %v1580 = vpop.f32.mrb[0].mxu0
  %v1581 = vpop.f32.mrb[0].mxu0
  %v1582 = vadd.f32 %v1293, %v1581
  %v1583 = vpop.f32.mrb[0].mxu0
  %1584 = vmatprep.mubr.bf16.mxu0 %v1038
  %1585 = vmatmul.mubr.bf16.gmra.mrb[0].mxu0 %v690
  %v1586 = vpop.f32.mrb[0].mxu0
  %v1587 = vadd.f32 %v1298, %v1586
  %v1588 = vpop.f32.mrb[0].mxu0
  %v1589 = vpop.f32.mrb[0].mxu0
  %v1590 = vadd.f32 %v1301, %v1589
  %v1591 = vpop.f32.mrb[0].mxu0
  %1592 = vmatprep.mubr.bf16.mxu0 %v1041
  %1593 = vmatmul.mubr.bf16.gmra.mrb[0].mxu0 %v694
  %v1594 = vpop.f32.mrb[0].mxu0
  %v1595 = vadd.f32 %v1306, %v1594
  %v1596 = vpop.f32.mrb[0].mxu0
  %v1597 = vpop.f32.mrb[0].mxu0
  %v1598 = vadd.f32 %v1309, %v1597
  %v1599 = vpop.f32.mrb[0].mxu0
  %1600 = vmatprep.mubr.bf16.mxu0 %v1044
  %1601 = vmatmul.mubr.bf16.gmra.mrb[0].mxu0 %v698
  %v1602 = vpop.f32.mrb[0].mxu0
  %v1603 = vadd.f32 %v1314, %v1602
  %v1604 = vpop.f32.mrb[0].mxu0
  %v1605 = vpop.f32.mrb[0].mxu0
  %v1606 = vadd.f32 %v1317, %v1605
  %v1607 = vpop.f32.mrb[0].mxu0
  %1608 = vmatprep.mubr.bf16.mxu0 %v1047
  %1609 = vmatmul.mubr.bf16.gmra.mrb[0].mxu0 %v702
  %v1610 = vpop.f32.mrb[0].mxu0
  %v1611 = vadd.f32 %v1322, %v1610
  %v1612 = vpop.f32.mrb[0].mxu0
  %v1613 = vpop.f32.mrb[0].mxu0
  %v1614 = vadd.f32 %v1325, %v1613
  %v1615 = vpop.f32.mrb[0].mxu0
  %1616 = vmatprep.mubr.bf16.mxu0 %v1050
  %1617 = vmatmul.mubr.bf16.gmra.mrb[0].mxu0 %v706
  %v1618 = vpop.f32.mrb[0].mxu0
  %v1619 = vadd.f32 %v1330, %v1618
  %v1620 = vpop.f32.mrb[0].mxu0
  %v1621 = vpop.f32.mrb[0].mxu0
  %v1622 = vadd.f32 %v1333, %v1621
  %v1623 = vpop.f32.mrb[0].mxu0
  %1624 = vmatprep.mubr.bf16.mxu0 %v1053
  %1625 = vmatmul.mubr.bf16.gmra.mrb[0].mxu0 %v710
  %v1626 = vpop.f32.mrb[0].mxu0
  %v1627 = vadd.f32 %v1338, %v1626
  %v1628 = vpop.f32.mrb[0].mxu0
  %v1629 = vpop.f32.mrb[0].mxu0
  %v1630 = vadd.f32 %v1341, %v1629
  %v1631 = vpop.f32.mrb[0].mxu0
  %1632 = vdwg.mxu0
  %v1633 = vtanh.pop %v1379
  %v1634 = vtanh.pop %v1382
  %v1635 = vtanh.pop %v1387
  %v1636 = vtanh.pop %v1390
  %v1637 = vtanh.pop %v1395
  %v1638 = vtanh.pop %v1398
  %v1639 = vtanh.pop %v1403
  %v1640 = vtanh.pop %v1406
  %v1641 = vtanh.pop %v1411
  %v1642 = vtanh.pop %v1414
  %v1643 = vtanh.pop %v1419
  %v1644 = vtanh.pop %v1422
  %v1645 = vtanh.pop %v1427
  %v1646 = vtanh.pop %v1430
  %v1647 = vtanh.pop %v1435
  %v1648 = vtanh.pop %v1438
  %v1649 = vtanh.pop %v1443
  %v1650 = vtanh.pop %v1446
  %v1651 = vtanh.pop %v1451
  %v1652 = vtanh.pop %v1454
  %v1653 = vtanh.pop %v1459
  %v1654 = vtanh.pop %v1462
  %v1655 = vtanh.pop %v1467
  %v1656 = vtanh.pop %v1470
  %v1657 = vtanh.pop %v1475
  %v1658 = vtanh.pop %v1478
  %v1659 = vtanh.pop %v1483
  %v1660 = vtanh.pop %v1486
  %v1661 = vtanh.pop %v1491
  %v1662 = vtanh.pop %v1494
  %v1663 = vtanh.pop %v1499
  %v1664 = vtanh.pop %v1502
  %v1665 = vtanh.pop %v1507
  %v1666 = vtanh.pop %v1510
  %v1667 = vtanh.pop %v1515
  %v1668 = vtanh.pop %v1518
  %v1669 = vtanh.pop %v1523
  %v1670 = vtanh.pop %v1526
  %v1671 = vtanh.pop %v1531
  %v1672 = vtanh.pop %v1534
  %v1673 = vtanh.pop %v1539
  %v1674 = vtanh.pop %v1542
  %v1675 = vtanh.pop %v1547
  %v1676 = vtanh.pop %v1550
  %v1677 = vtanh.pop %v1555
  %v1678 = vtanh.pop %v1558
  %v1679 = vtanh.pop %v1563
  %v1680 = vtanh.pop %v1566
  %v1681 = vtanh.pop %v1571
  %v1682 = vtanh.pop %v1574
  %v1683 = vtanh.pop %v1579
  %v1684 = vtanh.pop %v1582
  %v1685 = vtanh.pop %v1587
  %v1686 = vtanh.pop %v1590
  %v1687 = vtanh.pop %v1595
  %v1688 = vtanh.pop %v1598
  %v1689 = vtanh.pop %v1603
  %v1690 = vtanh.pop %v1606
  %v1691 = vtanh.pop %v1611
  %v1692 = vtanh.pop %v1614
  %v1693 = vtanh.pop %v1619
  %v1694 = vtanh.pop %v1622
  %v1695 = vtanh.pop %v1627
  %v1696 = vtanh.pop %v1630
  %vm1697 = vcmask 23552
  %1698 = vst.msk [vmem:[%s3] sm:$0xff] %vm1697, %v1633
  %1699 = vst.msk [vmem:[%s3 + $0x8] sm:$0xff] %vm1697, %v1634
  %1700 = vst.msk [vmem:[%s3 + $0x10] sm:$0xff] %vm1697, %v1635
  %1701 = vst.msk [vmem:[%s3 + $0x18] sm:$0xff] %vm1697, %v1636
  %1702 = vst.msk [vmem:[%s3 + $0x20] sm:$0xff] %vm1697, %v1637
  %1703 = vst.msk [vmem:[%s3 + $0x28] sm:$0xff] %vm1697, %v1638
  %1704 = vst.msk [vmem:[%s3 + $0x30] sm:$0xff] %vm1697, %v1639
  %1705 = vst.msk [vmem:[%s3 + $0x38] sm:$0xff] %vm1697, %v1640
  %1706 = vst.msk [vmem:[%s3 + $0x40] sm:$0xff] %vm1697, %v1641
  %1707 = vst.msk [vmem:[%s3 + $0x48] sm:$0xff] %vm1697, %v1642
  %1708 = vst.msk [vmem:[%s3 + $0x50] sm:$0xff] %vm1697, %v1643
  %1709 = vst.msk [vmem:[%s3 + $0x58] sm:$0xff] %vm1697, %v1644
  %1710 = vst.msk [vmem:[%s3 + $0x60] sm:$0xff] %vm1697, %v1645
  %1711 = vst.msk [vmem:[%s3 + $0x68] sm:$0xff] %vm1697, %v1646
  %1712 = vst.msk [vmem:[%s3 + $0x70] sm:$0xff] %vm1697, %v1647
  %1713 = vst.msk [vmem:[%s3 + $0x78] sm:$0xff] %vm1697, %v1648
  %1714 = vst.msk [vmem:[%s3 + $0x80] sm:$0xff] %vm1697, %v1649
  %1715 = vst.msk [vmem:[%s3 + $0x88] sm:$0xff] %vm1697, %v1650
  %1716 = vst.msk [vmem:[%s3 + $0x90] sm:$0xff] %vm1697, %v1651
  %1717 = vst.msk [vmem:[%s3 + $0x98] sm:$0xff] %vm1697, %v1652
  %1718 = vst.msk [vmem:[%s3 + $0xa0] sm:$0xff] %vm1697, %v1653
  %1719 = vst.msk [vmem:[%s3 + $0xa8] sm:$0xff] %vm1697, %v1654
  %1720 = vst.msk [vmem:[%s3 + $0xb0] sm:$0xff] %vm1697, %v1655
  %1721 = vst.msk [vmem:[%s3 + $0xb8] sm:$0xff] %vm1697, %v1656
  %1722 = vst.msk [vmem:[%s3 + $0xc0] sm:$0xff] %vm1697, %v1657
  %1723 = vst.msk [vmem:[%s3 + $0xc8] sm:$0xff] %vm1697, %v1658
  %1724 = vst.msk [vmem:[%s3 + $0xd0] sm:$0xff] %vm1697, %v1659
  %1725 = vst.msk [vmem:[%s3 + $0xd8] sm:$0xff] %vm1697, %v1660
  %1726 = vst.msk [vmem:[%s3 + $0xe0] sm:$0xff] %vm1697, %v1661
  %1727 = vst.msk [vmem:[%s3 + $0xe8] sm:$0xff] %vm1697, %v1662
  %1728 = vst.msk [vmem:[%s3 + $0xf0] sm:$0xff] %vm1697, %v1663
  %1729 = vst.msk [vmem:[%s3 + $0xf8] sm:$0xff] %vm1697, %v1664
  %1730 = vst.msk [vmem:[%s3 + $0x100] sm:$0xff] %vm1697, %v1665
  %1731 = vst.msk [vmem:[%s3 + $0x108] sm:$0xff] %vm1697, %v1666
  %1732 = vst.msk [vmem:[%s3 + $0x110] sm:$0xff] %vm1697, %v1667
  %1733 = vst.msk [vmem:[%s3 + $0x118] sm:$0xff] %vm1697, %v1668
  %1734 = vst.msk [vmem:[%s3 + $0x120] sm:$0xff] %vm1697, %v1669
  %1735 = vst.msk [vmem:[%s3 + $0x128] sm:$0xff] %vm1697, %v1670
  %1736 = vst.msk [vmem:[%s3 + $0x130] sm:$0xff] %vm1697, %v1671
  %1737 = vst.msk [vmem:[%s3 + $0x138] sm:$0xff] %vm1697, %v1672
  %1738 = vst.msk [vmem:[%s3 + $0x140] sm:$0xff] %vm1697, %v1673
  %1739 = vst.msk [vmem:[%s3 + $0x148] sm:$0xff] %vm1697, %v1674
  %1740 = vst.msk [vmem:[%s3 + $0x150] sm:$0xff] %vm1697, %v1675
  %1741 = vst.msk [vmem:[%s3 + $0x158] sm:$0xff] %vm1697, %v1676
  %1742 = vst.msk [vmem:[%s3 + $0x160] sm:$0xff] %vm1697, %v1677
  %1743 = vst.msk [vmem:[%s3 + $0x168] sm:$0xff] %vm1697, %v1678
  %1744 = vst.msk [vmem:[%s3 + $0x170] sm:$0xff] %vm1697, %v1679
  %1745 = vst.msk [vmem:[%s3 + $0x178] sm:$0xff] %vm1697, %v1680
  %1746 = vst.msk [vmem:[%s3 + $0x180] sm:$0xff] %vm1697, %v1681
  %1747 = vst.msk [vmem:[%s3 + $0x188] sm:$0xff] %vm1697, %v1682
  %1748 = vst.msk [vmem:[%s3 + $0x190] sm:$0xff] %vm1697, %v1683
  %1749 = vst.msk [vmem:[%s3 + $0x198] sm:$0xff] %vm1697, %v1684
  %1750 = vst.msk [vmem:[%s3 + $0x1a0] sm:$0xff] %vm1697, %v1685
  %1751 = vst.msk [vmem:[%s3 + $0x1a8] sm:$0xff] %vm1697, %v1686
  %1752 = vst.msk [vmem:[%s3 + $0x1b0] sm:$0xff] %vm1697, %v1687
  %1753 = vst.msk [vmem:[%s3 + $0x1b8] sm:$0xff] %vm1697, %v1688
  %1754 = vst.msk [vmem:[%s3 + $0x1c0] sm:$0xff] %vm1697, %v1689
  %1755 = vst.msk [vmem:[%s3 + $0x1c8] sm:$0xff] %vm1697, %v1690
  %1756 = vst.msk [vmem:[%s3 + $0x1d0] sm:$0xff] %vm1697, %v1691
  %1757 = vst.msk [vmem:[%s3 + $0x1d8] sm:$0xff] %vm1697, %v1692
  %1758 = vst.msk [vmem:[%s3 + $0x1e0] sm:$0xff] %vm1697, %v1693
  %1759 = vst.msk [vmem:[%s3 + $0x1e8] sm:$0xff] %vm1697, %v1694
  %1760 = vst.msk [vmem:[%s3 + $0x1f0] sm:$0xff] %vm1697, %v1695
  %1761 = vst.msk [vmem:[%s3 + $0x1f8] sm:$0xff] %vm1697, %v1696
  // Predicated region
  $region14: #{resnet_generator_forward.19} parent=0 // pred_check
    _
  $region15: #{resnet_generator_forward.19} parent=0 // pred_check_branch
    %1763 = sbr.rel (0) target = $region17
  $region16: #{resnet_generator_forward.19} parent=0 // pred_region
    _
  $region17: #{resnet_generator_forward.19} parent=0 // pred_fallthru
    _
  // Predicated region
  $region18: #{resnet_generator_forward.19} parent=0 // pred_check
    _
  $region19: #{resnet_generator_forward.19} parent=0 // pred_check_branch
    %1765 = sbr.rel (0) target = $region21
  $region20: #{resnet_generator_forward.19} parent=0 // pred_region
    _
  $region21: #{resnet_generator_forward.19} parent=0 // pred_fallthru
    _

</llo_original>
